<compile_context>
chip_gen: v5e
topology: v5e:2x2
jax: 0.10.0
libtpu: 0.0.40
codegen_flags: <defaults>
</compile_context>

<pallas_src>
import numpy as np

import jax
import jax.numpy as jnp
from jax import lax
from jax.experimental import pallas as pl
from jax.experimental.pallas import tpu as pltpu

EPS = 1e-5          # nn.BatchNorm2d default eps
P = 32              # per-sample row pitch (28x28 image + padding headroom)
PAD = 8             # top/bottom zero margin rows in activation scratches
SLAB_W = 224        # packed parameter slab lane width

_VMEM = pl.BlockSpec(memory_space=pltpu.MemorySpace.VMEM)

# ----------------------------------------------------------------------------
# Packed parameter slab layout (name -> (row offset, rows, cols)), 8-row align
# ----------------------------------------------------------------------------
_SLAB_ENTRIES = [
    ("wb1_0", 30, 224), ("wb1_1", 30, 224), ("wb1_2", 30, 224), ("aff1", 3, 224),
    ("wc1", 224, 112), ("aff2", 3, 112),
    ("wb2_0", 112, 224), ("wb2_1", 112, 224), ("wb2_2", 112, 224), ("aff3", 3, 224),
    ("wc2", 224, 112), ("aff4", 3, 112),
    ("wb3_0", 112, 160), ("wb3_1", 112, 160), ("wb3_2", 112, 160), ("aff5", 3, 160),
    ("wb4_0", 160, 96), ("wb4_1", 160, 96), ("wb4_2", 160, 96), ("aff6", 3, 96),
    ("wc5", 96, 96), ("aff7", 3, 96),
    ("wfc_0", 96, 10), ("wfc_1", 96, 10), ("wfc_2", 96, 10), ("bfc", 1, 10),
]


def _layout():
    off, offs = 0, {}
    for name, nrows, ncols in _SLAB_ENTRIES:
        offs[name] = (off, nrows, ncols)
        off += (nrows + 7) // 8 * 8
    return offs, off


_SLAB_OFF, SLAB_ROWS = _layout()


# ----------------------------------------------------------------------------
# The fused Pallas kernel
# ----------------------------------------------------------------------------
def _net_kernel(x_ref, w_ref, out_ref, a1, a2, a3, a4, a5, a6, a7):
    f32 = jnp.float32
    n = out_ref.shape[0]
    R = n * P

    def blk(name):
        r0, nr, nc = _SLAB_OFF[name]
        return w_ref[pl.ds(r0, nr), pl.ds(0, nc)]

    def affine(z, name, relu):
        """y = scale * relu?(z + bias) + shift   (conv bias + eval-mode BN)."""
        a = blk(name)                               # (3, width)
        z = z + a[0:1, :]
        if relu:
            z = jnp.maximum(z, 0.0)
        return z * a[1:2, :] + a[2:3, :]

    # Zero-init all activation scratches: margin rows / unwritten lanes must
    # read back as exact zeros (they act as the conv/pool zero padding).
    for s in (a1, a2, a3, a4, a5, a6, a7):
        s[...] = jnp.zeros(s.shape, f32)

    # ---- Layer1: Conv3x3(pad=1) -> ReLU -> BN -------------------------------
    # dest rows [1, R-1); tap di reads x rows [di, R-3+di] (in-bounds).
    acc = jnp.zeros((R - 2, 28 * 8), f32)
    for di in range(3):
        acc = acc + jnp.dot(x_ref[pl.ds(di, R - 2), :], blk("wb1_%d" % di),
                            preferred_element_type=f32)
    a1[pl.ds(PAD + 1, R - 2), pl.ds(0, 224)] = affine(acc, "aff1", relu=True)

    # ---- Layer1: MaxPool2x2 -> Conv1x1 -> BN (Dropout = id) ------------------
    # 2x2 pool = max over (row, row+1) x (lane block w, w+1); the following
    # block-diagonal 1x1-conv weight reads only even-w blocks and compacts them.
    pooled = jnp.maximum(
        jnp.maximum(a1[pl.ds(PAD, R), pl.ds(0, 224)],
                    a1[pl.ds(PAD, R), pl.ds(8, 224)]),
        jnp.maximum(a1[pl.ds(PAD + 1, R), pl.ds(0, 224)],
                    a1[pl.ds(PAD + 1, R), pl.ds(8, 224)]))
    y = affine(jnp.dot(pooled, blk("wc1"), preferred_element_type=f32),
               "aff2", relu=False)
    # Keep only the 14 valid stride-2 rows (r = 1,3,...,27 per sample) so the
    # next 'same' conv sees true zero padding above/below each sample.
    r = lax.broadcasted_iota(jnp.int32, (R, 1), 0) % P
    valid = jnp.logical_and(r % 2 == 1, r < 28).astype(f32)
    a2[pl.ds(PAD, R), :] = y * valid

    # ---- Layer2: Conv3x3(pad=1) -> ReLU -> BN (vertical stride 2) ------------
    acc = jnp.zeros((R, 14 * 16), f32)
    for di in range(3):
        acc = acc + jnp.dot(a2[pl.ds(PAD + 2 * (di - 1), R), :],
                            blk("wb2_%d" % di), preferred_element_type=f32)
    a3[pl.ds(PAD, R), pl.ds(0, 224)] = affine(acc, "aff3", relu=True)

    # ---- Layer2: MaxPool2x2 -> Conv1x1 -> BN ---------------------------------
    pooled = jnp.maximum(
        jnp.maximum(a3[pl.ds(PAD, R), pl.ds(0, 224)],
                    a3[pl.ds(PAD, R), pl.ds(16, 224)]),
        jnp.maximum(a3[pl.ds(PAD + 2, R), pl.ds(0, 224)],
                    a3[pl.ds(PAD + 2, R), pl.ds(16, 224)]))
    a4[pl.ds(PAD, R), :] = affine(
        jnp.dot(pooled, blk("wc2"), preferred_element_type=f32),
        "aff4", relu=False)

    # ---- Layer3: Conv3x3(valid) -> ReLU -> BN (vertical stride 4) ------------
    acc = jnp.zeros((R, 5 * 32), f32)
    for di in range(3):
        acc = acc + jnp.dot(a4[pl.ds(PAD + 4 * di, R), :],
                            blk("wb3_%d" % di), preferred_element_type=f32)
    a5[pl.ds(PAD, R), :] = affine(acc, "aff5", relu=True)

    # ---- Layer4: Conv3x3(valid) -> ReLU -> BN --------------------------------
    acc = jnp.zeros((R, 3 * 32), f32)
    for di in range(3):
        acc = acc + jnp.dot(a5[pl.ds(PAD + 4 * di, R), :],
                            blk("wb4_%d" % di), preferred_element_type=f32)
    a6[pl.ds(PAD, R), :] = affine(acc, "aff6", relu=True)

    # ---- Layer5: Conv1x1 -> ReLU -> BN ---------------------------------------
    a7[pl.ds(PAD, R), :] = affine(
        jnp.dot(a6[pl.ds(PAD, R), :], blk("wc5"), preferred_element_type=f32),
        "aff7", relu=True)

    # ---- FC on the 9 valid taps + vectorized log_softmax ---------------------
    logits = jnp.zeros((n, 10), f32) + blk("bfc")
    for h in range(3):
        rows = a7[pl.ds(PAD + 1 + 4 * h, n, stride=P), :]        # (n, 96)
        logits = logits + jnp.dot(rows, blk("wfc_%d" % h),
                                  preferred_element_type=f32)
    m = jnp.max(logits, axis=-1, keepdims=True)
    z = logits - m
    lse = jnp.log(jnp.sum(jnp.exp(z), axis=-1, keepdims=True))
    out_ref[...] = z - lse


# ----------------------------------------------------------------------------
# Trace-time parameter repacking into one lane-dense slab (done once)
# ----------------------------------------------------------------------------
def _conv3_band(w, win, wout, win_of):
    """(cout,cin,3,3) -> 3 banded matrices (win*cin, wout*cout), one per di."""
    w = np.asarray(w, np.float32)
    cout, cin = w.shape[0], w.shape[1]
    out = np.zeros((3, win * cin, wout * cout), np.float32)
    for di in range(3):
        for dj in range(3):
            tap = w[:, :, di, dj].T                          # (cin, cout)
            for wo in range(wout):
                wi = win_of(wo, dj)
                if 0 <= wi < win:
                    out[di, wi * cin:(wi + 1) * cin,
                        wo * cout:(wo + 1) * cout] = tap
    return out


def _conv1_band(w, win, wout, win_of):
    """1x1 conv as a block-diagonal (optionally column-compacting) matrix."""
    w = np.asarray(w, np.float32)
    cout, cin = w.shape[0], w.shape[1]
    tap = w[:, :, 0, 0].T
    out = np.zeros((win * cin, wout * cout), np.float32)
    for wo in range(wout):
        wi = win_of(wo)
        out[wi * cin:(wi + 1) * cin, wo * cout:(wo + 1) * cout] = tap
    return out


def _affine_rows(b, bn, wout):
    """[bias; BN scale; BN shift] tiled over the spatial lane blocks."""
    gamma, beta, mean, var = (np.asarray(t, np.float32) for t in bn)
    scale = gamma / np.sqrt(var + EPS)
    shift = beta - mean * scale
    rows = np.stack([np.asarray(b, np.float32), scale, shift], axis=0)
    return np.tile(rows, (1, wout))                          # (3, wout*C)


def prepare_kernel_params(params):
    ops = {}
    wb1 = _conv3_band(params["l1_conv1"][0], 30, 28, lambda wo, dj: wo + dj)
    wb2 = _conv3_band(params["l2_conv1"][0], 14, 14, lambda wo, dj: wo + dj - 1)
    wb3 = _conv3_band(params["l3_conv"][0], 7, 5, lambda wo, dj: wo + dj)
    wb4 = _conv3_band(params["l4_conv"][0], 5, 3, lambda wo, dj: wo + dj)
    for di in range(3):
        ops["wb1_%d" % di] = wb1[di]
        ops["wb2_%d" % di] = wb2[di]
        ops["wb3_%d" % di] = wb3[di]
        ops["wb4_%d" % di] = wb4[di]
    ops["wc1"] = _conv1_band(params["l1_conv2"][0], 28, 14, lambda q: 2 * q)
    ops["wc2"] = _conv1_band(params["l2_conv2"][0], 14, 7, lambda q: 2 * q)
    ops["wc5"] = _conv1_band(params["l5_conv"][0], 3, 3, lambda q: q)
    ops["aff1"] = _affine_rows(params["l1_conv1"][1], params["l1_bn1"], 28)
    ops["aff2"] = _affine_rows(params["l1_conv2"][1], params["l1_bn2"], 14)
    ops["aff3"] = _affine_rows(params["l2_conv1"][1], params["l2_bn1"], 14)
    ops["aff4"] = _affine_rows(params["l2_conv2"][1], params["l2_bn2"], 7)
    ops["aff5"] = _affine_rows(params["l3_conv"][1], params["l3_bn"], 5)
    ops["aff6"] = _affine_rows(params["l4_conv"][1], params["l4_bn"], 3)
    ops["aff7"] = _affine_rows(params["l5_conv"][1], params["l5_bn"], 3)

    w_fc, b_fc = params["fc"]
    wfc = np.asarray(w_fc, np.float32).reshape(10, 32, 3, 3)   # (k, c, h, w)
    for h in range(3):
        mat = np.zeros((96, 10), np.float32)
        for w in range(3):
            mat[w * 32:(w + 1) * 32, :] = wfc[:, :, h, w].T    # lane = w*32 + c
        ops["wfc_%d" % h] = mat
    ops["bfc"] = np.asarray(b_fc, np.float32).reshape(1, 10)

    slab = np.zeros((SLAB_ROWS, SLAB_W), np.float32)
    for name, (r0, nr, nc) in _SLAB_OFF.items():
        arr = np.asarray(ops[name], np.float32)
        assert arr.shape == (nr, nc), (name, arr.shape, (nr, nc))
        slab[r0:r0 + nr, :nc] = arr
    return jnp.asarray(slab)


# ----------------------------------------------------------------------------
# Forward pass (single gridless pallas_call, everything VMEM-resident)
# ----------------------------------------------------------------------------
def net_forward(slab, x_nchw):
    n = x_nchw.shape[0]
    R = n * P

    # Place each 28x28 image on a 32-row / 30-col padded grid (1 zero row on
    # top, 3 below; 1 zero col left/right) and flatten to (n*32, 30).
    img = x_nchw.astype(jnp.float32)[:, 0]                    # (n, 28, 28)
    xg = jnp.pad(img, ((0, 0), (1, 3), (1, 1)))               # (n, 32, 30)
    x_flat = xg.reshape(R, 30)

    rows = R + 2 * PAD
    scratch = [
        pltpu.VMEM((rows, 232), jnp.float32),   # L1 conv output (+8 pool lanes)
        pltpu.VMEM((rows, 112), jnp.float32),   # L1 output (masked)
        pltpu.VMEM((rows, 240), jnp.float32),   # L2 conv output (+16 pool lanes)
        pltpu.VMEM((rows, 112), jnp.float32),   # L2 output
        pltpu.VMEM((rows, 160), jnp.float32),   # L3 output
        pltpu.VMEM((rows, 96), jnp.float32),    # L4 output
        pltpu.VMEM((rows, 96), jnp.float32),    # L5 output (FC input)
    ]

    return pl.pallas_call(
        _net_kernel,
        out_shape=jax.ShapeDtypeStruct((n, 10), jnp.float32),
        in_specs=[_VMEM, _VMEM],
        out_specs=_VMEM,
        scratch_shapes=scratch,
    )(x_flat, slab)


# ----------------------------------------------------------------------------
# Parameters (deterministic synthetic init, matching nn.Module shapes)
# ----------------------------------------------------------------------------
def init_params(key):
    keys = iter(jax.random.split(key, 64))

    def conv_p(cout, cin, kh, kw):
        fan_in = cin * kh * kw
        w = jax.random.normal(next(keys), (cout, cin, kh, kw), jnp.float32) / jnp.sqrt(fan_in)
        b = 0.01 * jax.random.normal(next(keys), (cout,), jnp.float32)
        return w, b

    def bn_p(c):
        gamma = 1.0 + 0.1 * jax.random.normal(next(keys), (c,), jnp.float32)
        beta = 0.1 * jax.random.normal(next(keys), (c,), jnp.float32)
        mean = jnp.zeros((c,), jnp.float32)     # eval-mode running stats
        var = jnp.ones((c,), jnp.float32)
        return gamma, beta, mean, var

    p = {
        "l1_conv1": conv_p(8, 1, 3, 3),   "l1_bn1": bn_p(8),
        "l1_conv2": conv_p(8, 8, 1, 1),   "l1_bn2": bn_p(8),
        "l2_conv1": conv_p(16, 8, 3, 3),  "l2_bn1": bn_p(16),
        "l2_conv2": conv_p(16, 16, 1, 1), "l2_bn2": bn_p(16),
        "l3_conv":  conv_p(32, 16, 3, 3), "l3_bn":  bn_p(32),
        "l4_conv":  conv_p(32, 32, 3, 3), "l4_bn":  bn_p(32),
        "l5_conv":  conv_p(32, 32, 1, 1), "l5_bn":  bn_p(32),
    }
    w_fc = jax.random.normal(next(keys), (10, 32 * 3 * 3), jnp.float32) / jnp.sqrt(32 * 3 * 3)
    b_fc = 0.01 * jax.random.normal(next(keys), (10,), jnp.float32)
    p["fc"] = (w_fc, b_fc)
    return p


# ----------------------------------------------------------------------------
# Pure-JAX/XLA reference (same eval-mode semantics) for correctness checking
# ----------------------------------------------------------------------------
def reference_forward(params, x):
    def conv(x, wb, pad):
        w, b = wb
        y = lax.conv_general_dilated(
            x, w, (1, 1), [(pad, pad), (pad, pad)],
            dimension_numbers=("NCHW", "OIHW", "NCHW"),
            precision=lax.Precision.HIGHEST)
        return y + b[None, :, None, None]

    def bn(x, p):
        gamma, beta, mean, var = p
        inv = gamma / jnp.sqrt(var + EPS)
        return (x - mean[None, :, None, None]) * inv[None, :, None, None] \
            + beta[None, :, None, None]

    def pool(x):
        return lax.reduce_window(x, -jnp.inf, lax.max,
                                 (1, 1, 2, 2), (1, 1, 2, 2), "VALID")

    x = x.astype(jnp.float32)
    x = bn(jax.nn.relu(conv(x, params["l1_conv1"], 1)), params["l1_bn1"])
    x = pool(x)
    x = bn(conv(x, params["l1_conv2"], 0), params["l1_bn2"])
    x = bn(jax.nn.relu(conv(x, params["l2_conv1"], 1)), params["l2_bn1"])
    x = pool(x)
    x = bn(conv(x, params["l2_conv2"], 0), params["l2_bn2"])
    x = bn(jax.nn.relu(conv(x, params["l3_conv"], 0)), params["l3_bn"])
    x = bn(jax.nn.relu(conv(x, params["l4_conv"], 0)), params["l4_bn"])
    x = bn(jax.nn.relu(conv(x, params["l5_conv"], 0)), params["l5_bn"])
    w_fc, b_fc = params["fc"]
    logits = x.reshape(x.shape[0], -1) @ w_fc.T + b_fc
    return jax.nn.log_softmax(logits, axis=-1)


if __name__ == "__main__":
    key = jax.random.PRNGKey(0)
    k_param, k_x = jax.random.split(key)
    params = init_params(k_param)
    slab = prepare_kernel_params(params)

    # MNIST-shaped input: 28x28 is required to reach the 3x3 map before the FC.
    x = jax.random.normal(k_x, (2, 1, 28, 28), jnp.float32)

    out = jax.jit(net_forward)(slab, x)
    out = jax.block_until_ready(out)

    assert out.shape == (2, 10), out.shape
    assert bool(jnp.all(jnp.isfinite(out)))
    # rows of exp(log_softmax) must sum to ~1
    assert bool(jnp.allclose(jnp.exp(out).sum(axis=1), 1.0, atol=1e-4))

    # Cross-check against the pure-XLA reference implementation.
    ref = reference_forward(params, x)
    max_err = float(jnp.max(jnp.abs(out - ref)))
    assert bool(jnp.allclose(out, ref, atol=5e-2, rtol=5e-2)), max_err

    print("KERNEL_OK")
</pallas_src>

<mosaic_0001>
module attributes {stable_mosaic.version = 11 : i64} {
  func.func @_net_kernel(%arg0: memref<64x30xf32, #tpu.memory_space<vmem>>, %arg1: memref<2144x224xf32, #tpu.memory_space<vmem>>, %arg2: memref<2x10xf32, #tpu.memory_space<vmem>>, %arg3: memref<80x232xf32, #tpu.memory_space<vmem>>, %arg4: memref<80x112xf32, #tpu.memory_space<vmem>>, %arg5: memref<80x240xf32, #tpu.memory_space<vmem>>, %arg6: memref<80x112xf32, #tpu.memory_space<vmem>>, %arg7: memref<80x160xf32, #tpu.memory_space<vmem>>, %arg8: memref<80x96xf32, #tpu.memory_space<vmem>>, %arg9: memref<80x96xf32, #tpu.memory_space<vmem>>) attributes {dimension_semantics = [], scalar_prefetch = 0 : i64, scratch_operands = 7 : i64, tpu.core_type = #tpu.core_type<tc>} {
    %cst = arith.constant 0.000000e+00 : f32
    %0 = vector.broadcast %cst : f32 to vector<80x232xf32>
    %c0 = arith.constant 0 : index
    %c0_0 = arith.constant 0 : index
    %1 = vector.load %arg3[%c0, %c0_0] : memref<80x232xf32, #tpu.memory_space<vmem>>, vector<80x232xf32>
    tpu.vector_store %arg3[%c0, %c0_0], %0 {strides = array<i32>} : memref<80x232xf32, #tpu.memory_space<vmem>>, vector<80x232xf32>,
    %cst_1 = arith.constant 0.000000e+00 : f32
    %2 = vector.broadcast %cst_1 : f32 to vector<80x112xf32>
    %c0_2 = arith.constant 0 : index
    %c0_3 = arith.constant 0 : index
    %3 = vector.load %arg4[%c0_2, %c0_3] : memref<80x112xf32, #tpu.memory_space<vmem>>, vector<80x112xf32>
    tpu.vector_store %arg4[%c0_2, %c0_3], %2 {strides = array<i32>} : memref<80x112xf32, #tpu.memory_space<vmem>>, vector<80x112xf32>,
    %cst_4 = arith.constant 0.000000e+00 : f32
    %4 = vector.broadcast %cst_4 : f32 to vector<80x240xf32>
    %c0_5 = arith.constant 0 : index
    %c0_6 = arith.constant 0 : index
    %5 = vector.load %arg5[%c0_5, %c0_6] : memref<80x240xf32, #tpu.memory_space<vmem>>, vector<80x240xf32>
    tpu.vector_store %arg5[%c0_5, %c0_6], %4 {strides = array<i32>} : memref<80x240xf32, #tpu.memory_space<vmem>>, vector<80x240xf32>,
    %cst_7 = arith.constant 0.000000e+00 : f32
    %6 = vector.broadcast %cst_7 : f32 to vector<80x112xf32>
    %c0_8 = arith.constant 0 : index
    %c0_9 = arith.constant 0 : index
    %7 = vector.load %arg6[%c0_8, %c0_9] : memref<80x112xf32, #tpu.memory_space<vmem>>, vector<80x112xf32>
    tpu.vector_store %arg6[%c0_8, %c0_9], %6 {strides = array<i32>} : memref<80x112xf32, #tpu.memory_space<vmem>>, vector<80x112xf32>,
    %cst_10 = arith.constant 0.000000e+00 : f32
    %8 = vector.broadcast %cst_10 : f32 to vector<80x160xf32>
    %c0_11 = arith.constant 0 : index
    %c0_12 = arith.constant 0 : index
    %9 = vector.load %arg7[%c0_11, %c0_12] : memref<80x160xf32, #tpu.memory_space<vmem>>, vector<80x160xf32>
    tpu.vector_store %arg7[%c0_11, %c0_12], %8 {strides = array<i32>} : memref<80x160xf32, #tpu.memory_space<vmem>>, vector<80x160xf32>,
    %cst_13 = arith.constant 0.000000e+00 : f32
    %10 = vector.broadcast %cst_13 : f32 to vector<80x96xf32>
    %c0_14 = arith.constant 0 : index
    %c0_15 = arith.constant 0 : index
    %11 = vector.load %arg8[%c0_14, %c0_15] : memref<80x96xf32, #tpu.memory_space<vmem>>, vector<80x96xf32>
    tpu.vector_store %arg8[%c0_14, %c0_15], %10 {strides = array<i32>} : memref<80x96xf32, #tpu.memory_space<vmem>>, vector<80x96xf32>,
    %cst_16 = arith.constant 0.000000e+00 : f32
    %12 = vector.broadcast %cst_16 : f32 to vector<80x96xf32>
    %c0_17 = arith.constant 0 : index
    %c0_18 = arith.constant 0 : index
    %13 = vector.load %arg9[%c0_17, %c0_18] : memref<80x96xf32, #tpu.memory_space<vmem>>, vector<80x96xf32>
    tpu.vector_store %arg9[%c0_17, %c0_18], %12 {strides = array<i32>} : memref<80x96xf32, #tpu.memory_space<vmem>>, vector<80x96xf32>,
    %cst_19 = arith.constant 0.000000e+00 : f32
    %14 = vector.broadcast %cst_19 : f32 to vector<62x224xf32>
    %c0_20 = arith.constant 0 : index
    %c0_21 = arith.constant 0 : index
    %15 = vector.load %arg0[%c0_20, %c0_21] : memref<64x30xf32, #tpu.memory_space<vmem>>, vector<62x30xf32>
    %c0_22 = arith.constant 0 : index
    %c0_23 = arith.constant 0 : index
    %16 = vector.load %arg1[%c0_22, %c0_23] : memref<2144x224xf32, #tpu.memory_space<vmem>>, vector<30x224xf32>
    %cst_24 = arith.constant dense<0.000000e+00> : vector<62x224xf32>
    %17 = tpu.matmul %15, %16, %cst_24 {dimension_numbers = #tpu.dot_dimension_numbers<[1], [0], [0], [1], [0, 0, 1, 1], [], []>} : vector<62x30xf32>, vector<30x224xf32>, vector<62x224xf32> -> vector<62x224xf32>
    %18 = arith.addf %14, %17 : vector<62x224xf32>
    %c1 = arith.constant 1 : index
    %c0_25 = arith.constant 0 : index
    %19 = vector.load %arg0[%c1, %c0_25] : memref<64x30xf32, #tpu.memory_space<vmem>>, vector<62x30xf32>
    %c32 = arith.constant 32 : index
    %c0_26 = arith.constant 0 : index
    %20 = vector.load %arg1[%c32, %c0_26] : memref<2144x224xf32, #tpu.memory_space<vmem>>, vector<30x224xf32>
    %cst_27 = arith.constant dense<0.000000e+00> : vector<62x224xf32>
    %21 = tpu.matmul %19, %20, %cst_27 {dimension_numbers = #tpu.dot_dimension_numbers<[1], [0], [0], [1], [0, 0, 1, 1], [], []>} : vector<62x30xf32>, vector<30x224xf32>, vector<62x224xf32> -> vector<62x224xf32>
    %22 = arith.addf %18, %21 : vector<62x224xf32>
    %c2 = arith.constant 2 : index
    %c0_28 = arith.constant 0 : index
    %23 = vector.load %arg0[%c2, %c0_28] : memref<64x30xf32, #tpu.memory_space<vmem>>, vector<62x30xf32>
    %c64 = arith.constant 64 : index
    %c0_29 = arith.constant 0 : index
    %24 = vector.load %arg1[%c64, %c0_29] : memref<2144x224xf32, #tpu.memory_space<vmem>>, vector<30x224xf32>
    %cst_30 = arith.constant dense<0.000000e+00> : vector<62x224xf32>
    %25 = tpu.matmul %23, %24, %cst_30 {dimension_numbers = #tpu.dot_dimension_numbers<[1], [0], [0], [1], [0, 0, 1, 1], [], []>} : vector<62x30xf32>, vector<30x224xf32>, vector<62x224xf32> -> vector<62x224xf32>
    %26 = arith.addf %22, %25 : vector<62x224xf32>
    %c96 = arith.constant 96 : index
    %c0_31 = arith.constant 0 : index
    %27 = vector.load %arg1[%c96, %c0_31] : memref<2144x224xf32, #tpu.memory_space<vmem>>, vector<3x224xf32>
    %28 = vector.extract_strided_slice %27 {offsets = [0, 0], sizes = [1, 224], strides = [1, 1]} : vector<3x224xf32> to vector<1x224xf32>
    %29 = vector.broadcast %28 : vector<1x224xf32> to vector<62x224xf32>
    %30 = arith.addf %26, %29 : vector<62x224xf32>
    %cst_32 = arith.constant 0.000000e+00 : f32
    %31 = vector.broadcast %cst_32 : f32 to vector<62x224xf32>
    %32 = arith.maximumf %30, %31 : vector<62x224xf32>
    %33 = vector.extract_strided_slice %27 {offsets = [1, 0], sizes = [1, 224], strides = [1, 1]} : vector<3x224xf32> to vector<1x224xf32>
    %34 = vector.broadcast %33 : vector<1x224xf32> to vector<62x224xf32>
    %35 = arith.mulf %32, %34 : vector<62x224xf32>
    %36 = vector.extract_strided_slice %27 {offsets = [2, 0], sizes = [1, 224], strides = [1, 1]} : vector<3x224xf32> to vector<1x224xf32>
    %37 = vector.broadcast %36 : vector<1x224xf32> to vector<62x224xf32>
    %38 = arith.addf %35, %37 : vector<62x224xf32>
    %c9 = arith.constant 9 : index
    %c0_33 = arith.constant 0 : index
    %39 = vector.load %arg3[%c9, %c0_33] : memref<80x232xf32, #tpu.memory_space<vmem>>, vector<62x224xf32>
    tpu.vector_store %arg3[%c9, %c0_33], %38 {strides = array<i32>} : memref<80x232xf32, #tpu.memory_space<vmem>>, vector<62x224xf32>,
    %c8 = arith.constant 8 : index
    %c0_34 = arith.constant 0 : index
    %40 = vector.load %arg3[%c8, %c0_34] : memref<80x232xf32, #tpu.memory_space<vmem>>, vector<64x224xf32>
    %c8_35 = arith.constant 8 : index
    %c8_36 = arith.constant 8 : index
    %41 = vector.load %arg3[%c8_35, %c8_36] : memref<80x232xf32, #tpu.memory_space<vmem>>, vector<64x224xf32>
    %42 = arith.maximumf %40, %41 : vector<64x224xf32>
    %c9_37 = arith.constant 9 : index
    %c0_38 = arith.constant 0 : index
    %43 = vector.load %arg3[%c9_37, %c0_38] : memref<80x232xf32, #tpu.memory_space<vmem>>, vector<64x224xf32>
    %c9_39 = arith.constant 9 : index
    %c8_40 = arith.constant 8 : index
    %44 = vector.load %arg3[%c9_39, %c8_40] : memref<80x232xf32, #tpu.memory_space<vmem>>, vector<64x224xf32>
    %45 = arith.maximumf %43, %44 : vector<64x224xf32>
    %46 = arith.maximumf %42, %45 : vector<64x224xf32>
    %c104 = arith.constant 104 : index
    %c0_41 = arith.constant 0 : index
    %47 = vector.load %arg1[%c104, %c0_41] : memref<2144x224xf32, #tpu.memory_space<vmem>>, vector<224x112xf32>
    %cst_42 = arith.constant dense<0.000000e+00> : vector<64x112xf32>
    %48 = tpu.matmul %46, %47, %cst_42 {dimension_numbers = #tpu.dot_dimension_numbers<[1], [0], [0], [1], [0, 0, 1, 1], [], []>} : vector<64x224xf32>, vector<224x112xf32>, vector<64x112xf32> -> vector<64x112xf32>
    %c328 = arith.constant 328 : index
    %c0_43 = arith.constant 0 : index
    %49 = vector.load %arg1[%c328, %c0_43] : memref<2144x224xf32, #tpu.memory_space<vmem>>, vector<3x112xf32>
    %50 = vector.extract_strided_slice %49 {offsets = [0, 0], sizes = [1, 112], strides = [1, 1]} : vector<3x112xf32> to vector<1x112xf32>
    %51 = vector.broadcast %50 : vector<1x112xf32> to vector<64x112xf32>
    %52 = arith.addf %48, %51 : vector<64x112xf32>
    %53 = vector.extract_strided_slice %49 {offsets = [1, 0], sizes = [1, 112], strides = [1, 1]} : vector<3x112xf32> to vector<1x112xf32>
    %54 = vector.broadcast %53 : vector<1x112xf32> to vector<64x112xf32>
    %55 = arith.mulf %52, %54 : vector<64x112xf32>
    %56 = vector.extract_strided_slice %49 {offsets = [2, 0], sizes = [1, 112], strides = [1, 1]} : vector<3x112xf32> to vector<1x112xf32>
    %57 = vector.broadcast %56 : vector<1x112xf32> to vector<64x112xf32>
    %58 = arith.addf %55, %57 : vector<64x112xf32>
    %59 = tpu.iota {dimensions = array<i32: 0>} : vector<64x1xi32>
    %c32_i32 = arith.constant 32 : i32
    %c0_i32 = arith.constant 0 : i32
    %60 = arith.cmpi eq, %c32_i32, %c0_i32 : i32
    %c1_i32 = arith.constant 1 : i32
    %61 = arith.select %60, %c1_i32, %c32_i32 : i32
    %62 = vector.broadcast %61 : i32 to vector<64x1xi32>
    %63 = arith.remsi %59, %62 : vector<64x1xi32>
    %c0_i32_44 = arith.constant 0 : i32
    %64 = vector.broadcast %c0_i32_44 : i32 to vector<64x1xi32>
    %65 = arith.cmpi ne, %63, %64 : vector<64x1xi32>
    %c0_i32_45 = arith.constant 0 : i32
    %66 = vector.broadcast %c0_i32_45 : i32 to vector<64x1xi32>
    %67 = arith.cmpi slt, %63, %66 : vector<64x1xi32>
    %c0_i32_46 = arith.constant 0 : i32
    %68 = arith.cmpi slt, %61, %c0_i32_46 : i32
    %69 = vector.broadcast %68 : i1 to vector<64x1xi1>
    %70 = vector.broadcast %69 : vector<64x1xi1> to vector<64x1xi1>
    %71 = arith.xori %67, %70 : vector<64x1xi1>
    %72 = arith.andi %71, %65 : vector<64x1xi1>
    %73 = vector.broadcast %61 : i32 to vector<64x1xi32>
    %74 = arith.addi %63, %73 : vector<64x1xi32>
    %75 = arith.select %72, %74, %63 : vector<64x1xi1>, vector<64x1xi32>
    %c2_i32 = arith.constant 2 : i32
    %c0_i32_47 = arith.constant 0 : i32
    %76 = arith.cmpi eq, %c2_i32, %c0_i32_47 : i32
    %c1_i32_48 = arith.constant 1 : i32
    %77 = arith.select %76, %c1_i32_48, %c2_i32 : i32
    %78 = vector.broadcast %77 : i32 to vector<64x1xi32>
    %79 = arith.remsi %75, %78 : vector<64x1xi32>
    %c0_i32_49 = arith.constant 0 : i32
    %80 = vector.broadcast %c0_i32_49 : i32 to vector<64x1xi32>
    %81 = arith.cmpi ne, %79, %80 : vector<64x1xi32>
    %c0_i32_50 = arith.constant 0 : i32
    %82 = vector.broadcast %c0_i32_50 : i32 to vector<64x1xi32>
    %83 = arith.cmpi slt, %79, %82 : vector<64x1xi32>
    %c0_i32_51 = arith.constant 0 : i32
    %84 = arith.cmpi slt, %77, %c0_i32_51 : i32
    %85 = vector.broadcast %84 : i1 to vector<64x1xi1>
    %86 = vector.broadcast %85 : vector<64x1xi1> to vector<64x1xi1>
    %87 = arith.xori %83, %86 : vector<64x1xi1>
    %88 = arith.andi %87, %81 : vector<64x1xi1>
    %89 = vector.broadcast %77 : i32 to vector<64x1xi32>
    %90 = arith.addi %79, %89 : vector<64x1xi32>
    %91 = arith.select %88, %90, %79 : vector<64x1xi1>, vector<64x1xi32>
    %c1_i32_52 = arith.constant 1 : i32
    %92 = vector.broadcast %c1_i32_52 : i32 to vector<64x1xi32>
    %93 = arith.cmpi eq, %91, %92 : vector<64x1xi32>
    %c28_i32 = arith.constant 28 : i32
    %94 = vector.broadcast %c28_i32 : i32 to vector<64x1xi32>
    %95 = arith.cmpi slt, %75, %94 : vector<64x1xi32>
    %96 = arith.andi %93, %95 : vector<64x1xi1>
    %97 = arith.extui %96 : vector<64x1xi1> to vector<64x1xi32>
    %98 = arith.sitofp %97 : vector<64x1xi32> to vector<64x1xf32>
    %99 = vector.broadcast %98 : vector<64x1xf32> to vector<64x112xf32>
    %100 = arith.mulf %58, %99 : vector<64x112xf32>
    %c8_53 = arith.constant 8 : index
    %c0_54 = arith.constant 0 : index
    %101 = vector.load %arg4[%c8_53, %c0_54] : memref<80x112xf32, #tpu.memory_space<vmem>>, vector<64x112xf32>
    tpu.vector_store %arg4[%c8_53, %c0_54], %100 {strides = array<i32>} : memref<80x112xf32, #tpu.memory_space<vmem>>, vector<64x112xf32>,
    %cst_55 = arith.constant 0.000000e+00 : f32
    %102 = vector.broadcast %cst_55 : f32 to vector<64x224xf32>
    %c6 = arith.constant 6 : index
    %c0_56 = arith.constant 0 : index
    %103 = vector.load %arg4[%c6, %c0_56] : memref<80x112xf32, #tpu.memory_space<vmem>>, vector<64x112xf32>
    %c336 = arith.constant 336 : index
    %c0_57 = arith.constant 0 : index
    %104 = vector.load %arg1[%c336, %c0_57] : memref<2144x224xf32, #tpu.memory_space<vmem>>, vector<112x224xf32>
    %cst_58 = arith.constant dense<0.000000e+00> : vector<64x224xf32>
    %105 = tpu.matmul %103, %104, %cst_58 {dimension_numbers = #tpu.dot_dimension_numbers<[1], [0], [0], [1], [0, 0, 1, 1], [], []>} : vector<64x112xf32>, vector<112x224xf32>, vector<64x224xf32> -> vector<64x224xf32>
    %106 = arith.addf %102, %105 : vector<64x224xf32>
    %c8_59 = arith.constant 8 : index
    %c0_60 = arith.constant 0 : index
    %107 = vector.load %arg4[%c8_59, %c0_60] : memref<80x112xf32, #tpu.memory_space<vmem>>, vector<64x112xf32>
    %c448 = arith.constant 448 : index
    %c0_61 = arith.constant 0 : index
    %108 = vector.load %arg1[%c448, %c0_61] : memref<2144x224xf32, #tpu.memory_space<vmem>>, vector<112x224xf32>
    %cst_62 = arith.constant dense<0.000000e+00> : vector<64x224xf32>
    %109 = tpu.matmul %107, %108, %cst_62 {dimension_numbers = #tpu.dot_dimension_numbers<[1], [0], [0], [1], [0, 0, 1, 1], [], []>} : vector<64x112xf32>, vector<112x224xf32>, vector<64x224xf32> -> vector<64x224xf32>
    %110 = arith.addf %106, %109 : vector<64x224xf32>
    %c10 = arith.constant 10 : index
    %c0_63 = arith.constant 0 : index
    %111 = vector.load %arg4[%c10, %c0_63] : memref<80x112xf32, #tpu.memory_space<vmem>>, vector<64x112xf32>
    %c560 = arith.constant 560 : index
    %c0_64 = arith.constant 0 : index
    %112 = vector.load %arg1[%c560, %c0_64] : memref<2144x224xf32, #tpu.memory_space<vmem>>, vector<112x224xf32>
    %cst_65 = arith.constant dense<0.000000e+00> : vector<64x224xf32>
    %113 = tpu.matmul %111, %112, %cst_65 {dimension_numbers = #tpu.dot_dimension_numbers<[1], [0], [0], [1], [0, 0, 1, 1], [], []>} : vector<64x112xf32>, vector<112x224xf32>, vector<64x224xf32> -> vector<64x224xf32>
    %114 = arith.addf %110, %113 : vector<64x224xf32>
    %c672 = arith.constant 672 : index
    %c0_66 = arith.constant 0 : index
    %115 = vector.load %arg1[%c672, %c0_66] : memref<2144x224xf32, #tpu.memory_space<vmem>>, vector<3x224xf32>
    %116 = vector.extract_strided_slice %115 {offsets = [0, 0], sizes = [1, 224], strides = [1, 1]} : vector<3x224xf32> to vector<1x224xf32>
    %117 = vector.broadcast %116 : vector<1x224xf32> to vector<64x224xf32>
    %118 = arith.addf %114, %117 : vector<64x224xf32>
    %cst_67 = arith.constant 0.000000e+00 : f32
    %119 = vector.broadcast %cst_67 : f32 to vector<64x224xf32>
    %120 = arith.maximumf %118, %119 : vector<64x224xf32>
    %121 = vector.extract_strided_slice %115 {offsets = [1, 0], sizes = [1, 224], strides = [1, 1]} : vector<3x224xf32> to vector<1x224xf32>
    %122 = vector.broadcast %121 : vector<1x224xf32> to vector<64x224xf32>
    %123 = arith.mulf %120, %122 : vector<64x224xf32>
    %124 = vector.extract_strided_slice %115 {offsets = [2, 0], sizes = [1, 224], strides = [1, 1]} : vector<3x224xf32> to vector<1x224xf32>
    %125 = vector.broadcast %124 : vector<1x224xf32> to vector<64x224xf32>
    %126 = arith.addf %123, %125 : vector<64x224xf32>
    %c8_68 = arith.constant 8 : index
    %c0_69 = arith.constant 0 : index
    %127 = vector.load %arg5[%c8_68, %c0_69] : memref<80x240xf32, #tpu.memory_space<vmem>>, vector<64x224xf32>
    tpu.vector_store %arg5[%c8_68, %c0_69], %126 {strides = array<i32>} : memref<80x240xf32, #tpu.memory_space<vmem>>, vector<64x224xf32>,
    %c8_70 = arith.constant 8 : index
    %c0_71 = arith.constant 0 : index
    %128 = vector.load %arg5[%c8_70, %c0_71] : memref<80x240xf32, #tpu.memory_space<vmem>>, vector<64x224xf32>
    %c8_72 = arith.constant 8 : index
    %c16 = arith.constant 16 : index
    %129 = vector.load %arg5[%c8_72, %c16] : memref<80x240xf32, #tpu.memory_space<vmem>>, vector<64x224xf32>
    %130 = arith.maximumf %128, %129 : vector<64x224xf32>
    %c10_73 = arith.constant 10 : index
    %c0_74 = arith.constant 0 : index
    %131 = vector.load %arg5[%c10_73, %c0_74] : memref<80x240xf32, #tpu.memory_space<vmem>>, vector<64x224xf32>
    %c10_75 = arith.constant 10 : index
    %c16_76 = arith.constant 16 : index
    %132 = vector.load %arg5[%c10_75, %c16_76] : memref<80x240xf32, #tpu.memory_space<vmem>>, vector<64x224xf32>
    %133 = arith.maximumf %131, %132 : vector<64x224xf32>
    %134 = arith.maximumf %130, %133 : vector<64x224xf32>
    %c680 = arith.constant 680 : index
    %c0_77 = arith.constant 0 : index
    %135 = vector.load %arg1[%c680, %c0_77] : memref<2144x224xf32, #tpu.memory_space<vmem>>, vector<224x112xf32>
    %cst_78 = arith.constant dense<0.000000e+00> : vector<64x112xf32>
    %136 = tpu.matmul %134, %135, %cst_78 {dimension_numbers = #tpu.dot_dimension_numbers<[1], [0], [0], [1], [0, 0, 1, 1], [], []>} : vector<64x224xf32>, vector<224x112xf32>, vector<64x112xf32> -> vector<64x112xf32>
    %c904 = arith.constant 904 : index
    %c0_79 = arith.constant 0 : index
    %137 = vector.load %arg1[%c904, %c0_79] : memref<2144x224xf32, #tpu.memory_space<vmem>>, vector<3x112xf32>
    %138 = vector.extract_strided_slice %137 {offsets = [0, 0], sizes = [1, 112], strides = [1, 1]} : vector<3x112xf32> to vector<1x112xf32>
    %139 = vector.broadcast %138 : vector<1x112xf32> to vector<64x112xf32>
    %140 = arith.addf %136, %139 : vector<64x112xf32>
    %141 = vector.extract_strided_slice %137 {offsets = [1, 0], sizes = [1, 112], strides = [1, 1]} : vector<3x112xf32> to vector<1x112xf32>
    %142 = vector.broadcast %141 : vector<1x112xf32> to vector<64x112xf32>
    %143 = arith.mulf %140, %142 : vector<64x112xf32>
    %144 = vector.extract_strided_slice %137 {offsets = [2, 0], sizes = [1, 112], strides = [1, 1]} : vector<3x112xf32> to vector<1x112xf32>
    %145 = vector.broadcast %144 : vector<1x112xf32> to vector<64x112xf32>
    %146 = arith.addf %143, %145 : vector<64x112xf32>
    %c8_80 = arith.constant 8 : index
    %c0_81 = arith.constant 0 : index
    %147 = vector.load %arg6[%c8_80, %c0_81] : memref<80x112xf32, #tpu.memory_space<vmem>>, vector<64x112xf32>
    tpu.vector_store %arg6[%c8_80, %c0_81], %146 {strides = array<i32>} : memref<80x112xf32, #tpu.memory_space<vmem>>, vector<64x112xf32>,
    %cst_82 = arith.constant 0.000000e+00 : f32
    %148 = vector.broadcast %cst_82 : f32 to vector<64x160xf32>
    %c8_83 = arith.constant 8 : index
    %c0_84 = arith.constant 0 : index
    %149 = vector.load %arg6[%c8_83, %c0_84] : memref<80x112xf32, #tpu.memory_space<vmem>>, vector<64x112xf32>
    %c912 = arith.constant 912 : index
    %c0_85 = arith.constant 0 : index
    %150 = vector.load %arg1[%c912, %c0_85] : memref<2144x224xf32, #tpu.memory_space<vmem>>, vector<112x160xf32>
    %cst_86 = arith.constant dense<0.000000e+00> : vector<64x160xf32>
    %151 = tpu.matmul %149, %150, %cst_86 {dimension_numbers = #tpu.dot_dimension_numbers<[1], [0], [0], [1], [0, 0, 1, 1], [], []>} : vector<64x112xf32>, vector<112x160xf32>, vector<64x160xf32> -> vector<64x160xf32>
    %152 = arith.addf %148, %151 : vector<64x160xf32>
    %c12 = arith.constant 12 : index
    %c0_87 = arith.constant 0 : index
    %153 = vector.load %arg6[%c12, %c0_87] : memref<80x112xf32, #tpu.memory_space<vmem>>, vector<64x112xf32>
    %c1024 = arith.constant 1024 : index
    %c0_88 = arith.constant 0 : index
    %154 = vector.load %arg1[%c1024, %c0_88] : memref<2144x224xf32, #tpu.memory_space<vmem>>, vector<112x160xf32>
    %cst_89 = arith.constant dense<0.000000e+00> : vector<64x160xf32>
    %155 = tpu.matmul %153, %154, %cst_89 {dimension_numbers = #tpu.dot_dimension_numbers<[1], [0], [0], [1], [0, 0, 1, 1], [], []>} : vector<64x112xf32>, vector<112x160xf32>, vector<64x160xf32> -> vector<64x160xf32>
    %156 = arith.addf %152, %155 : vector<64x160xf32>
    %c16_90 = arith.constant 16 : index
    %c0_91 = arith.constant 0 : index
    %157 = vector.load %arg6[%c16_90, %c0_91] : memref<80x112xf32, #tpu.memory_space<vmem>>, vector<64x112xf32>
    %c1136 = arith.constant 1136 : index
    %c0_92 = arith.constant 0 : index
    %158 = vector.load %arg1[%c1136, %c0_92] : memref<2144x224xf32, #tpu.memory_space<vmem>>, vector<112x160xf32>
    %cst_93 = arith.constant dense<0.000000e+00> : vector<64x160xf32>
    %159 = tpu.matmul %157, %158, %cst_93 {dimension_numbers = #tpu.dot_dimension_numbers<[1], [0], [0], [1], [0, 0, 1, 1], [], []>} : vector<64x112xf32>, vector<112x160xf32>, vector<64x160xf32> -> vector<64x160xf32>
    %160 = arith.addf %156, %159 : vector<64x160xf32>
    %c1248 = arith.constant 1248 : index
    %c0_94 = arith.constant 0 : index
    %161 = vector.load %arg1[%c1248, %c0_94] : memref<2144x224xf32, #tpu.memory_space<vmem>>, vector<3x160xf32>
    %162 = vector.extract_strided_slice %161 {offsets = [0, 0], sizes = [1, 160], strides = [1, 1]} : vector<3x160xf32> to vector<1x160xf32>
    %163 = vector.broadcast %162 : vector<1x160xf32> to vector<64x160xf32>
    %164 = arith.addf %160, %163 : vector<64x160xf32>
    %cst_95 = arith.constant 0.000000e+00 : f32
    %165 = vector.broadcast %cst_95 : f32 to vector<64x160xf32>
    %166 = arith.maximumf %164, %165 : vector<64x160xf32>
    %167 = vector.extract_strided_slice %161 {offsets = [1, 0], sizes = [1, 160], strides = [1, 1]} : vector<3x160xf32> to vector<1x160xf32>
    %168 = vector.broadcast %167 : vector<1x160xf32> to vector<64x160xf32>
    %169 = arith.mulf %166, %168 : vector<64x160xf32>
    %170 = vector.extract_strided_slice %161 {offsets = [2, 0], sizes = [1, 160], strides = [1, 1]} : vector<3x160xf32> to vector<1x160xf32>
    %171 = vector.broadcast %170 : vector<1x160xf32> to vector<64x160xf32>
    %172 = arith.addf %169, %171 : vector<64x160xf32>
    %c8_96 = arith.constant 8 : index
    %c0_97 = arith.constant 0 : index
    %173 = vector.load %arg7[%c8_96, %c0_97] : memref<80x160xf32, #tpu.memory_space<vmem>>, vector<64x160xf32>
    tpu.vector_store %arg7[%c8_96, %c0_97], %172 {strides = array<i32>} : memref<80x160xf32, #tpu.memory_space<vmem>>, vector<64x160xf32>,
    %cst_98 = arith.constant 0.000000e+00 : f32
    %174 = vector.broadcast %cst_98 : f32 to vector<64x96xf32>
    %c8_99 = arith.constant 8 : index
    %c0_100 = arith.constant 0 : index
    %175 = vector.load %arg7[%c8_99, %c0_100] : memref<80x160xf32, #tpu.memory_space<vmem>>, vector<64x160xf32>
    %c1256 = arith.constant 1256 : index
    %c0_101 = arith.constant 0 : index
    %176 = vector.load %arg1[%c1256, %c0_101] : memref<2144x224xf32, #tpu.memory_space<vmem>>, vector<160x96xf32>
    %cst_102 = arith.constant dense<0.000000e+00> : vector<64x96xf32>
    %177 = tpu.matmul %175, %176, %cst_102 {dimension_numbers = #tpu.dot_dimension_numbers<[1], [0], [0], [1], [0, 0, 1, 1], [], []>} : vector<64x160xf32>, vector<160x96xf32>, vector<64x96xf32> -> vector<64x96xf32>
    %178 = arith.addf %174, %177 : vector<64x96xf32>
    %c12_103 = arith.constant 12 : index
    %c0_104 = arith.constant 0 : index
    %179 = vector.load %arg7[%c12_103, %c0_104] : memref<80x160xf32, #tpu.memory_space<vmem>>, vector<64x160xf32>
    %c1416 = arith.constant 1416 : index
    %c0_105 = arith.constant 0 : index
    %180 = vector.load %arg1[%c1416, %c0_105] : memref<2144x224xf32, #tpu.memory_space<vmem>>, vector<160x96xf32>
    %cst_106 = arith.constant dense<0.000000e+00> : vector<64x96xf32>
    %181 = tpu.matmul %179, %180, %cst_106 {dimension_numbers = #tpu.dot_dimension_numbers<[1], [0], [0], [1], [0, 0, 1, 1], [], []>} : vector<64x160xf32>, vector<160x96xf32>, vector<64x96xf32> -> vector<64x96xf32>
    %182 = arith.addf %178, %181 : vector<64x96xf32>
    %c16_107 = arith.constant 16 : index
    %c0_108 = arith.constant 0 : index
    %183 = vector.load %arg7[%c16_107, %c0_108] : memref<80x160xf32, #tpu.memory_space<vmem>>, vector<64x160xf32>
    %c1576 = arith.constant 1576 : index
    %c0_109 = arith.constant 0 : index
    %184 = vector.load %arg1[%c1576, %c0_109] : memref<2144x224xf32, #tpu.memory_space<vmem>>, vector<160x96xf32>
    %cst_110 = arith.constant dense<0.000000e+00> : vector<64x96xf32>
    %185 = tpu.matmul %183, %184, %cst_110 {dimension_numbers = #tpu.dot_dimension_numbers<[1], [0], [0], [1], [0, 0, 1, 1], [], []>} : vector<64x160xf32>, vector<160x96xf32>, vector<64x96xf32> -> vector<64x96xf32>
    %186 = arith.addf %182, %185 : vector<64x96xf32>
    %c1736 = arith.constant 1736 : index
    %c0_111 = arith.constant 0 : index
    %187 = vector.load %arg1[%c1736, %c0_111] : memref<2144x224xf32, #tpu.memory_space<vmem>>, vector<3x96xf32>
    %188 = vector.extract_strided_slice %187 {offsets = [0, 0], sizes = [1, 96], strides = [1, 1]} : vector<3x96xf32> to vector<1x96xf32>
    %189 = vector.broadcast %188 : vector<1x96xf32> to vector<64x96xf32>
    %190 = arith.addf %186, %189 : vector<64x96xf32>
    %cst_112 = arith.constant 0.000000e+00 : f32
    %191 = vector.broadcast %cst_112 : f32 to vector<64x96xf32>
    %192 = arith.maximumf %190, %191 : vector<64x96xf32>
    %193 = vector.extract_strided_slice %187 {offsets = [1, 0], sizes = [1, 96], strides = [1, 1]} : vector<3x96xf32> to vector<1x96xf32>
    %194 = vector.broadcast %193 : vector<1x96xf32> to vector<64x96xf32>
    %195 = arith.mulf %192, %194 : vector<64x96xf32>
    %196 = vector.extract_strided_slice %187 {offsets = [2, 0], sizes = [1, 96], strides = [1, 1]} : vector<3x96xf32> to vector<1x96xf32>
    %197 = vector.broadcast %196 : vector<1x96xf32> to vector<64x96xf32>
    %198 = arith.addf %195, %197 : vector<64x96xf32>
    %c8_113 = arith.constant 8 : index
    %c0_114 = arith.constant 0 : index
    %199 = vector.load %arg8[%c8_113, %c0_114] : memref<80x96xf32, #tpu.memory_space<vmem>>, vector<64x96xf32>
    tpu.vector_store %arg8[%c8_113, %c0_114], %198 {strides = array<i32>} : memref<80x96xf32, #tpu.memory_space<vmem>>, vector<64x96xf32>,
    %c8_115 = arith.constant 8 : index
    %c0_116 = arith.constant 0 : index
    %200 = vector.load %arg8[%c8_115, %c0_116] : memref<80x96xf32, #tpu.memory_space<vmem>>, vector<64x96xf32>
    %c1744 = arith.constant 1744 : index
    %c0_117 = arith.constant 0 : index
    %201 = vector.load %arg1[%c1744, %c0_117] : memref<2144x224xf32, #tpu.memory_space<vmem>>, vector<96x96xf32>
    %cst_118 = arith.constant dense<0.000000e+00> : vector<64x96xf32>
    %202 = tpu.matmul %200, %201, %cst_118 {dimension_numbers = #tpu.dot_dimension_numbers<[1], [0], [0], [1], [0, 0, 1, 1], [], []>} : vector<64x96xf32>, vector<96x96xf32>, vector<64x96xf32> -> vector<64x96xf32>
    %c1840 = arith.constant 1840 : index
    %c0_119 = arith.constant 0 : index
    %203 = vector.load %arg1[%c1840, %c0_119] : memref<2144x224xf32, #tpu.memory_space<vmem>>, vector<3x96xf32>
    %204 = vector.extract_strided_slice %203 {offsets = [0, 0], sizes = [1, 96], strides = [1, 1]} : vector<3x96xf32> to vector<1x96xf32>
    %205 = vector.broadcast %204 : vector<1x96xf32> to vector<64x96xf32>
    %206 = arith.addf %202, %205 : vector<64x96xf32>
    %cst_120 = arith.constant 0.000000e+00 : f32
    %207 = vector.broadcast %cst_120 : f32 to vector<64x96xf32>
    %208 = arith.maximumf %206, %207 : vector<64x96xf32>
    %209 = vector.extract_strided_slice %203 {offsets = [1, 0], sizes = [1, 96], strides = [1, 1]} : vector<3x96xf32> to vector<1x96xf32>
    %210 = vector.broadcast %209 : vector<1x96xf32> to vector<64x96xf32>
    %211 = arith.mulf %208, %210 : vector<64x96xf32>
    %212 = vector.extract_strided_slice %203 {offsets = [2, 0], sizes = [1, 96], strides = [1, 1]} : vector<3x96xf32> to vector<1x96xf32>
    %213 = vector.broadcast %212 : vector<1x96xf32> to vector<64x96xf32>
    %214 = arith.addf %211, %213 : vector<64x96xf32>
    %c8_121 = arith.constant 8 : index
    %c0_122 = arith.constant 0 : index
    %215 = vector.load %arg9[%c8_121, %c0_122] : memref<80x96xf32, #tpu.memory_space<vmem>>, vector<64x96xf32>
    tpu.vector_store %arg9[%c8_121, %c0_122], %214 {strides = array<i32>} : memref<80x96xf32, #tpu.memory_space<vmem>>, vector<64x96xf32>,
    %cst_123 = arith.constant 0.000000e+00 : f32
    %216 = vector.broadcast %cst_123 : f32 to vector<2x10xf32>
    %c2136 = arith.constant 2136 : index
    %c0_124 = arith.constant 0 : index
    %217 = vector.load %arg1[%c2136, %c0_124] : memref<2144x224xf32, #tpu.memory_space<vmem>>, vector<1x10xf32>
    %218 = vector.broadcast %217 : vector<1x10xf32> to vector<2x10xf32>
    %219 = arith.addf %216, %218 : vector<2x10xf32>
    %c9_125 = arith.constant 9 : index
    %c0_126 = arith.constant 0 : index
    %220 = tpu.strided_load %arg9[%c9_125, %c0_126] {strides = array<i32: 32, 1>} : memref<80x96xf32, #tpu.memory_space<vmem>>, vector<2x96xf32>
    %c1848 = arith.constant 1848 : index
    %c0_127 = arith.constant 0 : index
    %221 = vector.load %arg1[%c1848, %c0_127] : memref<2144x224xf32, #tpu.memory_space<vmem>>, vector<96x10xf32>
    %cst_128 = arith.constant dense<0.000000e+00> : vector<2x10xf32>
    %222 = tpu.matmul %220, %221, %cst_128 {dimension_numbers = #tpu.dot_dimension_numbers<[1], [0], [0], [1], [0, 0, 1, 1], [], []>} : vector<2x96xf32>, vector<96x10xf32>, vector<2x10xf32> -> vector<2x10xf32>
    %223 = arith.addf %219, %222 : vector<2x10xf32>
    %c13 = arith.constant 13 : index
    %c0_129 = arith.constant 0 : index
    %224 = tpu.strided_load %arg9[%c13, %c0_129] {strides = array<i32: 32, 1>} : memref<80x96xf32, #tpu.memory_space<vmem>>, vector<2x96xf32>
    %c1944 = arith.constant 1944 : index
    %c0_130 = arith.constant 0 : index
    %225 = vector.load %arg1[%c1944, %c0_130] : memref<2144x224xf32, #tpu.memory_space<vmem>>, vector<96x10xf32>
    %cst_131 = arith.constant dense<0.000000e+00> : vector<2x10xf32>
    %226 = tpu.matmul %224, %225, %cst_131 {dimension_numbers = #tpu.dot_dimension_numbers<[1], [0], [0], [1], [0, 0, 1, 1], [], []>} : vector<2x96xf32>, vector<96x10xf32>, vector<2x10xf32> -> vector<2x10xf32>
    %227 = arith.addf %223, %226 : vector<2x10xf32>
    %c17 = arith.constant 17 : index
    %c0_132 = arith.constant 0 : index
    %228 = tpu.strided_load %arg9[%c17, %c0_132] {strides = array<i32: 32, 1>} : memref<80x96xf32, #tpu.memory_space<vmem>>, vector<2x96xf32>
    %c2040 = arith.constant 2040 : index
    %c0_133 = arith.constant 0 : index
    %229 = vector.load %arg1[%c2040, %c0_133] : memref<2144x224xf32, #tpu.memory_space<vmem>>, vector<96x10xf32>
    %cst_134 = arith.constant dense<0.000000e+00> : vector<2x10xf32>
    %230 = tpu.matmul %228, %229, %cst_134 {dimension_numbers = #tpu.dot_dimension_numbers<[1], [0], [0], [1], [0, 0, 1, 1], [], []>} : vector<2x96xf32>, vector<96x10xf32>, vector<2x10xf32> -> vector<2x10xf32>
    %231 = arith.addf %227, %230 : vector<2x10xf32>
    %cst_135 = arith.constant dense<0xFF800000> : vector<2xf32>
    %232 = vector.multi_reduction <maximumf>, %231, %cst_135 [1] : vector<2x10xf32> to vector<2xf32>
    %233 = vector.shape_cast %232 : vector<2xf32> to vector<2x1xf32>
    %234 = vector.broadcast %233 : vector<2x1xf32> to vector<2x10xf32>
    %235 = arith.subf %231, %234 : vector<2x10xf32>
    %236 = math.exp %235 : vector<2x10xf32>
    %cst_136 = arith.constant dense<0.000000e+00> : vector<2xf32>
    %237 = vector.multi_reduction <add>, %236, %cst_136 [1] : vector<2x10xf32> to vector<2xf32>
    %238 = vector.shape_cast %237 : vector<2xf32> to vector<2x1xf32>
    %239 = math.log %238 : vector<2x1xf32>
    %240 = vector.broadcast %239 : vector<2x1xf32> to vector<2x10xf32>
    %241 = arith.subf %235, %240 : vector<2x10xf32>
    %c0_137 = arith.constant 0 : index
    %c0_138 = arith.constant 0 : index
    %242 = vector.load %arg2[%c0_137, %c0_138] : memref<2x10xf32, #tpu.memory_space<vmem>>, vector<2x10xf32>
    tpu.vector_store %arg2[%c0_137, %c0_138], %241 {strides = array<i32>} : memref<2x10xf32, #tpu.memory_space<vmem>>, vector<2x10xf32>,
    return
  }
}

</mosaic_0001>

<llo_original>
// kernel: net_forward.1
$region0: #{net_forward.1}
  #allocation0 [shape = 'u32[]', space=smem, size = 0x4, offset = 0x4, fixed_abs, tag = 'smem constant byte address 0x4 - core index']
  #allocation1 [shape = 'u32[72,128]{1,0:T(1,128)}', space=vmem, size = 0x9000, scoped, tag = 'internal scratch']
  #allocation2 [shape = 'f32[80,232]{1,0:T(8,128)}', space=vmem, size = 0x14000, scoped, tag = 'scratch operand']
  #allocation3 [shape = 'f32[80,112]{1,0:T(8,128)}', space=vmem, size = 0xa000, scoped, tag = 'scratch operand']
  #allocation4 [shape = 'f32[80,240]{1,0:T(8,128)}', space=vmem, size = 0x14000, scoped, tag = 'scratch operand']
  #allocation5 [shape = 'f32[80,112]{1,0:T(8,128)}', space=vmem, size = 0xa000, scoped, tag = 'scratch operand']
  #allocation6 [shape = 'f32[80,160]{1,0:T(8,128)}', space=vmem, size = 0x14000, scoped, tag = 'scratch operand']
  #allocation7 [shape = 'f32[80,96]{1,0:T(8,128)}', space=vmem, size = 0xa000, scoped, tag = 'scratch operand']
  #allocation8 [shape = 'f32[80,96]{1,0:T(8,128)}', space=vmem, size = 0xa000, scoped, tag = 'scratch operand']
  %s0 = inlined_call_operand.vmem [shape: f32[64,30], index: 0, kind: input, shape index: {}]
  %s1 = inlined_call_operand.vmem [shape: f32[2144,224], index: 1, kind: input, shape index: {}]
  %s2 = inlined_call_operand.hbm [shape: f32[2,10], index: 2, kind: output, shape index: {}]
  %s3 = sld [smem:[#allocation0]]
  $region18: #{net_forward.1} parent=0
    _
  %s5 = ssub.s32 1, %s3
  %s6 = scalar_select 0, %s5, %s3
  $region1: #{net_forward.1} parent=0
    #allocation9 [shape = 'u8[1024]{0}', space=vmem, size = 0x400, scoped, tag = 'output window, operand 0, single buffered']
    #allocation10 [shape = 's32[1]{0}', space=sflag, size = 0x4, scoped, tag = 'scoped memory for net_forward.1']
    %7 = vsyncpa [#allocation10], 0
    // Predicated region
    $region2: #{net_forward.1} parent=1 // pred_check
      _
    $region3: #{net_forward.1} parent=1 // pred_check_branch
      %9 = sbr.rel (0) target = $region5
    $region4: #{net_forward.1} parent=1 // pred_region
      _
    $region5: #{net_forward.1} parent=1 // pred_fallthru
      _
    // Predicated region
    $region6: #{net_forward.1} parent=1 // pred_check
      _
    $region7: #{net_forward.1} parent=1 // pred_check_branch
      %11 = sbr.rel (0) target = $region9
    $region8: #{net_forward.1} parent=1 // pred_region
      _
    $region9: #{net_forward.1} parent=1 // pred_fallthru
      _
    %12 = vst [vmem:[#allocation2] sm:$0xff] 0.0
    %vm13 = vcmask 850944
    %14 = vst.msk [vmem:[#allocation2 + $0x8] sm:$0xff] %vm13, 0.0
    %15 = vst [vmem:[#allocation2 + $0x10] sm:$0xff] 0.0
    %16 = vst.msk [vmem:[#allocation2 + $0x18] sm:$0xff] %vm13, 0.0
    %17 = vst [vmem:[#allocation2 + $0x20] sm:$0xff] 0.0
    %18 = vst.msk [vmem:[#allocation2 + $0x28] sm:$0xff] %vm13, 0.0
    %19 = vst [vmem:[#allocation2 + $0x30] sm:$0xff] 0.0
    %20 = vst.msk [vmem:[#allocation2 + $0x38] sm:$0xff] %vm13, 0.0
    %21 = vst [vmem:[#allocation2 + $0x40] sm:$0xff] 0.0
    %22 = vst.msk [vmem:[#allocation2 + $0x48] sm:$0xff] %vm13, 0.0
    %23 = vst [vmem:[#allocation2 + $0x50] sm:$0xff] 0.0
    %24 = vst.msk [vmem:[#allocation2 + $0x58] sm:$0xff] %vm13, 0.0
    %25 = vst [vmem:[#allocation2 + $0x60] sm:$0xff] 0.0
    %26 = vst.msk [vmem:[#allocation2 + $0x68] sm:$0xff] %vm13, 0.0
    %27 = vst [vmem:[#allocation2 + $0x70] sm:$0xff] 0.0
    %28 = vst.msk [vmem:[#allocation2 + $0x78] sm:$0xff] %vm13, 0.0
    %29 = vst [vmem:[#allocation2 + $0x80] sm:$0xff] 0.0
    %30 = vst.msk [vmem:[#allocation2 + $0x88] sm:$0xff] %vm13, 0.0
    %31 = vst [vmem:[#allocation2 + $0x90] sm:$0xff] 0.0
    %32 = vst.msk [vmem:[#allocation2 + $0x98] sm:$0xff] %vm13, 0.0
    %vm33 = vcmask 916480
    %34 = vst.msk [vmem:[#allocation3] sm:$0xff] %vm33, 0.0
    %35 = vst.msk [vmem:[#allocation3 + $0x8] sm:$0xff] %vm33, 0.0
    %36 = vst.msk [vmem:[#allocation3 + $0x10] sm:$0xff] %vm33, 0.0
    %37 = vst.msk [vmem:[#allocation3 + $0x18] sm:$0xff] %vm33, 0.0
    %38 = vst.msk [vmem:[#allocation3 + $0x20] sm:$0xff] %vm33, 0.0
    %39 = vst.msk [vmem:[#allocation3 + $0x28] sm:$0xff] %vm33, 0.0
    %40 = vst.msk [vmem:[#allocation3 + $0x30] sm:$0xff] %vm33, 0.0
    %41 = vst.msk [vmem:[#allocation3 + $0x38] sm:$0xff] %vm33, 0.0
    %42 = vst.msk [vmem:[#allocation3 + $0x40] sm:$0xff] %vm33, 0.0
    %43 = vst.msk [vmem:[#allocation3 + $0x48] sm:$0xff] %vm33, 0.0
    %44 = vst [vmem:[#allocation4] sm:$0xff] 0.0
    %45 = vst.msk [vmem:[#allocation4 + $0x8] sm:$0xff] %vm33, 0.0
    %46 = vst [vmem:[#allocation4 + $0x10] sm:$0xff] 0.0
    %47 = vst.msk [vmem:[#allocation4 + $0x18] sm:$0xff] %vm33, 0.0
    %48 = vst [vmem:[#allocation4 + $0x20] sm:$0xff] 0.0
    %49 = vst.msk [vmem:[#allocation4 + $0x28] sm:$0xff] %vm33, 0.0
    %50 = vst [vmem:[#allocation4 + $0x30] sm:$0xff] 0.0
    %51 = vst.msk [vmem:[#allocation4 + $0x38] sm:$0xff] %vm33, 0.0
    %52 = vst [vmem:[#allocation4 + $0x40] sm:$0xff] 0.0
    %53 = vst.msk [vmem:[#allocation4 + $0x48] sm:$0xff] %vm33, 0.0
    %54 = vst [vmem:[#allocation4 + $0x50] sm:$0xff] 0.0
    %55 = vst.msk [vmem:[#allocation4 + $0x58] sm:$0xff] %vm33, 0.0
    %56 = vst [vmem:[#allocation4 + $0x60] sm:$0xff] 0.0
    %57 = vst.msk [vmem:[#allocation4 + $0x68] sm:$0xff] %vm33, 0.0
    %58 = vst [vmem:[#allocation4 + $0x70] sm:$0xff] 0.0
    %59 = vst.msk [vmem:[#allocation4 + $0x78] sm:$0xff] %vm33, 0.0
    %60 = vst [vmem:[#allocation4 + $0x80] sm:$0xff] 0.0
    %61 = vst.msk [vmem:[#allocation4 + $0x88] sm:$0xff] %vm33, 0.0
    %62 = vst [vmem:[#allocation4 + $0x90] sm:$0xff] 0.0
    %63 = vst.msk [vmem:[#allocation4 + $0x98] sm:$0xff] %vm33, 0.0
    %64 = vst.msk [vmem:[#allocation5] sm:$0xff] %vm33, 0.0
    %65 = vst.msk [vmem:[#allocation5 + $0x8] sm:$0xff] %vm33, 0.0
    %66 = vst.msk [vmem:[#allocation5 + $0x10] sm:$0xff] %vm33, 0.0
    %67 = vst.msk [vmem:[#allocation5 + $0x18] sm:$0xff] %vm33, 0.0
    %68 = vst.msk [vmem:[#allocation5 + $0x20] sm:$0xff] %vm33, 0.0
    %69 = vst.msk [vmem:[#allocation5 + $0x28] sm:$0xff] %vm33, 0.0
    %70 = vst.msk [vmem:[#allocation5 + $0x30] sm:$0xff] %vm33, 0.0
    %71 = vst.msk [vmem:[#allocation5 + $0x38] sm:$0xff] %vm33, 0.0
    %72 = vst.msk [vmem:[#allocation5 + $0x40] sm:$0xff] %vm33, 0.0
    %73 = vst.msk [vmem:[#allocation5 + $0x48] sm:$0xff] %vm33, 0.0
    %74 = vst [vmem:[#allocation6] sm:$0xff] 0.0
    %vm75 = vcmask 261120
    %76 = vst.msk [vmem:[#allocation6 + $0x8] sm:$0xff] %vm75, 0.0
    %77 = vst [vmem:[#allocation6 + $0x10] sm:$0xff] 0.0
    %78 = vst.msk [vmem:[#allocation6 + $0x18] sm:$0xff] %vm75, 0.0
    %79 = vst [vmem:[#allocation6 + $0x20] sm:$0xff] 0.0
    %80 = vst.msk [vmem:[#allocation6 + $0x28] sm:$0xff] %vm75, 0.0
    %81 = vst [vmem:[#allocation6 + $0x30] sm:$0xff] 0.0
    %82 = vst.msk [vmem:[#allocation6 + $0x38] sm:$0xff] %vm75, 0.0
    %83 = vst [vmem:[#allocation6 + $0x40] sm:$0xff] 0.0
    %84 = vst.msk [vmem:[#allocation6 + $0x48] sm:$0xff] %vm75, 0.0
    %85 = vst [vmem:[#allocation6 + $0x50] sm:$0xff] 0.0
    %86 = vst.msk [vmem:[#allocation6 + $0x58] sm:$0xff] %vm75, 0.0
    %87 = vst [vmem:[#allocation6 + $0x60] sm:$0xff] 0.0
    %88 = vst.msk [vmem:[#allocation6 + $0x68] sm:$0xff] %vm75, 0.0
    %89 = vst [vmem:[#allocation6 + $0x70] sm:$0xff] 0.0
    %90 = vst.msk [vmem:[#allocation6 + $0x78] sm:$0xff] %vm75, 0.0
    %91 = vst [vmem:[#allocation6 + $0x80] sm:$0xff] 0.0
    %92 = vst.msk [vmem:[#allocation6 + $0x88] sm:$0xff] %vm75, 0.0
    %93 = vst [vmem:[#allocation6 + $0x90] sm:$0xff] 0.0
    %94 = vst.msk [vmem:[#allocation6 + $0x98] sm:$0xff] %vm75, 0.0
    %vm95 = vcmask 785408
    %96 = vst.msk [vmem:[#allocation7] sm:$0xff] %vm95, 0.0
    %97 = vst.msk [vmem:[#allocation7 + $0x8] sm:$0xff] %vm95, 0.0
    %98 = vst.msk [vmem:[#allocation7 + $0x10] sm:$0xff] %vm95, 0.0
    %99 = vst.msk [vmem:[#allocation7 + $0x18] sm:$0xff] %vm95, 0.0
    %100 = vst.msk [vmem:[#allocation7 + $0x20] sm:$0xff] %vm95, 0.0
    %101 = vst.msk [vmem:[#allocation7 + $0x28] sm:$0xff] %vm95, 0.0
    %102 = vst.msk [vmem:[#allocation7 + $0x30] sm:$0xff] %vm95, 0.0
    %103 = vst.msk [vmem:[#allocation7 + $0x38] sm:$0xff] %vm95, 0.0
    %104 = vst.msk [vmem:[#allocation7 + $0x40] sm:$0xff] %vm95, 0.0
    %105 = vst.msk [vmem:[#allocation7 + $0x48] sm:$0xff] %vm95, 0.0
    %106 = vst.msk [vmem:[#allocation8] sm:$0xff] %vm95, 0.0
    %107 = vst.msk [vmem:[#allocation8 + $0x8] sm:$0xff] %vm95, 0.0
    %108 = vst.msk [vmem:[#allocation8 + $0x10] sm:$0xff] %vm95, 0.0
    %109 = vst.msk [vmem:[#allocation8 + $0x18] sm:$0xff] %vm95, 0.0
    %110 = vst.msk [vmem:[#allocation8 + $0x20] sm:$0xff] %vm95, 0.0
    %111 = vst.msk [vmem:[#allocation8 + $0x28] sm:$0xff] %vm95, 0.0
    %112 = vst.msk [vmem:[#allocation8 + $0x30] sm:$0xff] %vm95, 0.0
    %113 = vst.msk [vmem:[#allocation8 + $0x38] sm:$0xff] %vm95, 0.0
    %114 = vst.msk [vmem:[#allocation8 + $0x40] sm:$0xff] %vm95, 0.0
    %115 = vst.msk [vmem:[#allocation8 + $0x48] sm:$0xff] %vm95, 0.0
    %v116 = vld [vmem:[%s0] sm:$0xff]
    %v117 = vld [vmem:[%s0 + $0x8] sm:$0xff]
    %v118 = vld [vmem:[%s0 + $0x10] sm:$0xff]
    %v119 = vld [vmem:[%s0 + $0x18] sm:$0xff]
    %v120 = vld [vmem:[%s0 + $0x20] sm:$0xff]
    %v121 = vld [vmem:[%s0 + $0x28] sm:$0xff]
    %v122 = vld [vmem:[%s0 + $0x30] sm:$0xff]
    %v123 = vld [vmem:[%s0 + $0x38] sm:$0x3f]
    %v124 = vld [vmem:[%s1] sm:$0xff]
    %v125 = vld [vmem:[%s1 + $0x8] sm:$0xff]
    %v126 = vld [vmem:[%s1 + $0x10] sm:$0xff]
    %v127 = vld [vmem:[%s1 + $0x18] sm:$0xff]
    %v128 = vld [vmem:[%s1 + $0x20] sm:$0xff]
    %v129 = vld [vmem:[%s1 + $0x28] sm:$0xff]
    %v130 = vld [vmem:[%s1 + $0x30] sm:$0x3f]
    %v131 = vld [vmem:[%s1 + $0x38] sm:$0x3f]
    %v132 = vld [vmem:[%s0 + $0x1] sm:$0xff]
    %v133 = vld [vmem:[%s0 + $0x9] sm:$0xff]
    %v134 = vld [vmem:[%s0 + $0x11] sm:$0xff]
    %v135 = vld [vmem:[%s0 + $0x19] sm:$0xff]
    %v136 = vld [vmem:[%s0 + $0x21] sm:$0xff]
    %v137 = vld [vmem:[%s0 + $0x29] sm:$0xff]
    %v138 = vld [vmem:[%s0 + $0x31] sm:$0xff]
    %v139 = vld [vmem:[%s0 + $0x39] sm:$0x3f]
    %v140 = vld [vmem:[%s1 + $0x40] sm:$0xff]
    %v141 = vld [vmem:[%s1 + $0x48] sm:$0xff]
    %v142 = vld [vmem:[%s1 + $0x50] sm:$0xff]
    %v143 = vld [vmem:[%s1 + $0x58] sm:$0xff]
    %v144 = vld [vmem:[%s1 + $0x60] sm:$0xff]
    %v145 = vld [vmem:[%s1 + $0x68] sm:$0xff]
    %v146 = vld [vmem:[%s1 + $0x70] sm:$0x3f]
    %v147 = vld [vmem:[%s1 + $0x78] sm:$0x3f]
    %vm148 = vcmask 244736
    %v150 = vsel %vm148, %v132, 0
    %v153 = vsel %vm148, %v133, 0
    %v156 = vsel %vm148, %v134, 0
    %v159 = vsel %vm148, %v135, 0
    %v162 = vsel %vm148, %v136, 0
    %v165 = vsel %vm148, %v137, 0
    %v168 = vsel %vm148, %v138, 0
    %v171 = vsel %vm148, %v139, 0
    %vm173 = vcmask 1045504
    %v175 = vsel %vm173, %v146, 0
    %v178 = vsel %vm173, %v147, 0
    %180 = vmatpush.msra.mxu0 0.0
    %181 = vmatpush.msra.mxu0 0.0
    %182 = vmatpush.msra.mxu0 0.0
    %183 = vmatpush.msra.mxu0 0.0
    %184 = vmatpush.msra.mxu0 0.0
    %185 = vmatpush.msra.mxu0 0.0
    %186 = vmatpush.msra.mxu0 0.0
    %187 = vmatpush.msra.mxu0 0.0
    %188 = vmatpush.msra.mxu0 0.0
    %189 = vmatpush.msra.mxu0 0.0
    %190 = vmatpush.msra.mxu0 0.0
    %191 = vmatpush.msra.mxu0 0.0
    %192 = vmatpush.msra.mxu0 %v175
    %193 = vmatpush.msra.mxu0 %v144
    %194 = vmatpush.msra.mxu0 %v142
    %195 = vmatpush.msra.mxu0 %v140
    %196 = vmatmul.f32.gmra.mxu0 %v150
    %v197 = vpop.f32.mrf.mxu0
    %v198 = vadd.f32 0.0, %v197
    %199 = vmatmul.f32.gmra.mxu0 %v153
    %v200 = vpop.f32.mrf.mxu0
    %v201 = vadd.f32 0.0, %v200
    %202 = vmatmul.f32.gmra.mxu0 %v156
    %v203 = vpop.f32.mrf.mxu0
    %v204 = vadd.f32 0.0, %v203
    %205 = vmatmul.f32.gmra.mxu0 %v159
    %v206 = vpop.f32.mrf.mxu0
    %v207 = vadd.f32 0.0, %v206
    %208 = vmatmul.f32.gmra.mxu0 %v162
    %v209 = vpop.f32.mrf.mxu0
    %v210 = vadd.f32 0.0, %v209
    %211 = vmatmul.f32.gmra.mxu0 %v165
    %v212 = vpop.f32.mrf.mxu0
    %v213 = vadd.f32 0.0, %v212
    %214 = vmatmul.f32.gmra.mxu0 %v168
    %v215 = vpop.f32.mrf.mxu0
    %v216 = vadd.f32 0.0, %v215
    %217 = vmatmul.f32.gmra.mxu0 %v171
    %v218 = vpop.f32.mrf.mxu0
    %v219 = vadd.f32 0.0, %v218
    %220 = vdwg.mxu0
    %221 = vmatpush.msra.mxu0 0.0
    %222 = vmatpush.msra.mxu0 0.0
    %223 = vmatpush.msra.mxu0 0.0
    %224 = vmatpush.msra.mxu0 0.0
    %225 = vmatpush.msra.mxu0 0.0
    %226 = vmatpush.msra.mxu0 0.0
    %227 = vmatpush.msra.mxu0 0.0
    %228 = vmatpush.msra.mxu0 0.0
    %229 = vmatpush.msra.mxu0 0.0
    %230 = vmatpush.msra.mxu0 0.0
    %231 = vmatpush.msra.mxu0 0.0
    %232 = vmatpush.msra.mxu0 0.0
    %233 = vmatpush.msra.mxu0 %v178
    %234 = vmatpush.msra.mxu0 %v145
    %235 = vmatpush.msra.mxu0 %v143
    %236 = vmatpush.msra.mxu0 %v141
    %237 = vmatmul.f32.gmra.mxu0 %v150
    %v238 = vpop.f32.mrf.mxu0
    %v239 = vadd.f32 0.0, %v238
    %240 = vmatmul.f32.gmra.mxu0 %v153
    %v241 = vpop.f32.mrf.mxu0
    %v242 = vadd.f32 0.0, %v241
    %243 = vmatmul.f32.gmra.mxu0 %v156
    %v244 = vpop.f32.mrf.mxu0
    %v245 = vadd.f32 0.0, %v244
    %246 = vmatmul.f32.gmra.mxu0 %v159
    %v247 = vpop.f32.mrf.mxu0
    %v248 = vadd.f32 0.0, %v247
    %249 = vmatmul.f32.gmra.mxu0 %v162
    %v250 = vpop.f32.mrf.mxu0
    %v251 = vadd.f32 0.0, %v250
    %252 = vmatmul.f32.gmra.mxu0 %v165
    %v253 = vpop.f32.mrf.mxu0
    %v254 = vadd.f32 0.0, %v253
    %255 = vmatmul.f32.gmra.mxu0 %v168
    %v256 = vpop.f32.mrf.mxu0
    %v257 = vadd.f32 0.0, %v256
    %258 = vmatmul.f32.gmra.mxu0 %v171
    %v259 = vpop.f32.mrf.mxu0
    %v260 = vadd.f32 0.0, %v259
    %261 = vdwg.mxu0
    %v263 = vsel %vm148, %v116, 0
    %v266 = vsel %vm148, %v117, 0
    %v269 = vsel %vm148, %v118, 0
    %v272 = vsel %vm148, %v119, 0
    %v275 = vsel %vm148, %v120, 0
    %v278 = vsel %vm148, %v121, 0
    %v281 = vsel %vm148, %v122, 0
    %v284 = vsel %vm148, %v123, 0
    %v287 = vsel %vm173, %v130, 0
    %v290 = vsel %vm173, %v131, 0
    %292 = vmatpush.msra.mxu0 0.0
    %293 = vmatpush.msra.mxu0 0.0
    %294 = vmatpush.msra.mxu0 0.0
    %295 = vmatpush.msra.mxu0 0.0
    %296 = vmatpush.msra.mxu0 0.0
    %297 = vmatpush.msra.mxu0 0.0
    %298 = vmatpush.msra.mxu0 0.0
    %299 = vmatpush.msra.mxu0 0.0
    %300 = vmatpush.msra.mxu0 0.0
    %301 = vmatpush.msra.mxu0 0.0
    %302 = vmatpush.msra.mxu0 0.0
    %303 = vmatpush.msra.mxu0 0.0
    %304 = vmatpush.msra.mxu0 %v287
    %305 = vmatpush.msra.mxu0 %v128
    %306 = vmatpush.msra.mxu0 %v126
    %307 = vmatpush.msra.mxu0 %v124
    %308 = vmatmul.f32.gmra.mxu0 %v263
    %v309 = vpop.f32.mrf.mxu0
    %v310 = vadd.f32 %v198, %v309
    %311 = vmatmul.f32.gmra.mxu0 %v266
    %v312 = vpop.f32.mrf.mxu0
    %v313 = vadd.f32 %v201, %v312
    %314 = vmatmul.f32.gmra.mxu0 %v269
    %v315 = vpop.f32.mrf.mxu0
    %v316 = vadd.f32 %v204, %v315
    %317 = vmatmul.f32.gmra.mxu0 %v272
    %v318 = vpop.f32.mrf.mxu0
    %v319 = vadd.f32 %v207, %v318
    %320 = vmatmul.f32.gmra.mxu0 %v275
    %v321 = vpop.f32.mrf.mxu0
    %v322 = vadd.f32 %v210, %v321
    %323 = vmatmul.f32.gmra.mxu0 %v278
    %v324 = vpop.f32.mrf.mxu0
    %v325 = vadd.f32 %v213, %v324
    %326 = vmatmul.f32.gmra.mxu0 %v281
    %v327 = vpop.f32.mrf.mxu0
    %v328 = vadd.f32 %v216, %v327
    %329 = vmatmul.f32.gmra.mxu0 %v284
    %v330 = vpop.f32.mrf.mxu0
    %v331 = vadd.f32 %v219, %v330
    %332 = vdwg.mxu0
    %333 = vmatpush.msra.mxu0 0.0
    %334 = vmatpush.msra.mxu0 0.0
    %335 = vmatpush.msra.mxu0 0.0
    %336 = vmatpush.msra.mxu0 0.0
    %337 = vmatpush.msra.mxu0 0.0
    %338 = vmatpush.msra.mxu0 0.0
    %339 = vmatpush.msra.mxu0 0.0
    %340 = vmatpush.msra.mxu0 0.0
    %341 = vmatpush.msra.mxu0 0.0
    %342 = vmatpush.msra.mxu0 0.0
    %343 = vmatpush.msra.mxu0 0.0
    %344 = vmatpush.msra.mxu0 0.0
    %345 = vmatpush.msra.mxu0 %v290
    %346 = vmatpush.msra.mxu0 %v129
    %347 = vmatpush.msra.mxu0 %v127
    %348 = vmatpush.msra.mxu0 %v125
    %349 = vmatmul.f32.gmra.mxu0 %v263
    %v350 = vpop.f32.mrf.mxu0
    %v351 = vadd.f32 %v239, %v350
    %352 = vmatmul.f32.gmra.mxu0 %v266
    %v353 = vpop.f32.mrf.mxu0
    %v354 = vadd.f32 %v242, %v353
    %355 = vmatmul.f32.gmra.mxu0 %v269
    %v356 = vpop.f32.mrf.mxu0
    %v357 = vadd.f32 %v245, %v356
    %358 = vmatmul.f32.gmra.mxu0 %v272
    %v359 = vpop.f32.mrf.mxu0
    %v360 = vadd.f32 %v248, %v359
    %361 = vmatmul.f32.gmra.mxu0 %v275
    %v362 = vpop.f32.mrf.mxu0
    %v363 = vadd.f32 %v251, %v362
    %364 = vmatmul.f32.gmra.mxu0 %v278
    %v365 = vpop.f32.mrf.mxu0
    %v366 = vadd.f32 %v254, %v365
    %367 = vmatmul.f32.gmra.mxu0 %v281
    %v368 = vpop.f32.mrf.mxu0
    %v369 = vadd.f32 %v257, %v368
    %370 = vmatmul.f32.gmra.mxu0 %v284
    %v371 = vpop.f32.mrf.mxu0
    %v372 = vadd.f32 %v260, %v371
    %373 = vdwg.mxu0
    %v374 = vld [vmem:[%s0 + $0x2] sm:$0xff]
    %v375 = vld [vmem:[%s0 + $0xa] sm:$0xff]
    %v376 = vld [vmem:[%s0 + $0x12] sm:$0xff]
    %v377 = vld [vmem:[%s0 + $0x1a] sm:$0xff]
    %v378 = vld [vmem:[%s0 + $0x22] sm:$0xff]
    %v379 = vld [vmem:[%s0 + $0x2a] sm:$0xff]
    %v380 = vld [vmem:[%s0 + $0x32] sm:$0xff]
    %v381 = vld [vmem:[%s0 + $0x3a] sm:$0x3f]
    %v382 = vld [vmem:[%s1 + $0x80] sm:$0xff]
    %v383 = vld [vmem:[%s1 + $0x88] sm:$0xff]
    %v384 = vld [vmem:[%s1 + $0x90] sm:$0xff]
    %v385 = vld [vmem:[%s1 + $0x98] sm:$0xff]
    %v386 = vld [vmem:[%s1 + $0xa0] sm:$0xff]
    %v387 = vld [vmem:[%s1 + $0xa8] sm:$0xff]
    %v388 = vld [vmem:[%s1 + $0xb0] sm:$0x3f]
    %v389 = vld [vmem:[%s1 + $0xb8] sm:$0x3f]
    %v391 = vsel %vm148, %v374, 0
    %v394 = vsel %vm148, %v375, 0
    %v397 = vsel %vm148, %v376, 0
    %v400 = vsel %vm148, %v377, 0
    %v403 = vsel %vm148, %v378, 0
    %v406 = vsel %vm148, %v379, 0
    %v409 = vsel %vm148, %v380, 0
    %v412 = vsel %vm148, %v381, 0
    %v415 = vsel %vm173, %v388, 0
    %v418 = vsel %vm173, %v389, 0
    %420 = vmatpush.msra.mxu0 0.0
    %421 = vmatpush.msra.mxu0 0.0
    %422 = vmatpush.msra.mxu0 0.0
    %423 = vmatpush.msra.mxu0 0.0
    %424 = vmatpush.msra.mxu0 0.0
    %425 = vmatpush.msra.mxu0 0.0
    %426 = vmatpush.msra.mxu0 0.0
    %427 = vmatpush.msra.mxu0 0.0
    %428 = vmatpush.msra.mxu0 0.0
    %429 = vmatpush.msra.mxu0 0.0
    %430 = vmatpush.msra.mxu0 0.0
    %431 = vmatpush.msra.mxu0 0.0
    %432 = vmatpush.msra.mxu0 %v415
    %433 = vmatpush.msra.mxu0 %v386
    %434 = vmatpush.msra.mxu0 %v384
    %435 = vmatpush.msra.mxu0 %v382
    %436 = vmatmul.f32.gmra.mxu0 %v391
    %v437 = vpop.f32.mrf.mxu0
    %v438 = vadd.f32 0.0, %v437
    %439 = vmatmul.f32.gmra.mxu0 %v394
    %v440 = vpop.f32.mrf.mxu0
    %v441 = vadd.f32 0.0, %v440
    %442 = vmatmul.f32.gmra.mxu0 %v397
    %v443 = vpop.f32.mrf.mxu0
    %v444 = vadd.f32 0.0, %v443
    %445 = vmatmul.f32.gmra.mxu0 %v400
    %v446 = vpop.f32.mrf.mxu0
    %v447 = vadd.f32 0.0, %v446
    %448 = vmatmul.f32.gmra.mxu0 %v403
    %v449 = vpop.f32.mrf.mxu0
    %v450 = vadd.f32 0.0, %v449
    %451 = vmatmul.f32.gmra.mxu0 %v406
    %v452 = vpop.f32.mrf.mxu0
    %v453 = vadd.f32 0.0, %v452
    %454 = vmatmul.f32.gmra.mxu0 %v409
    %v455 = vpop.f32.mrf.mxu0
    %v456 = vadd.f32 0.0, %v455
    %457 = vmatmul.f32.gmra.mxu0 %v412
    %v458 = vpop.f32.mrf.mxu0
    %v459 = vadd.f32 0.0, %v458
    %460 = vdwg.mxu0
    %461 = vmatpush.msra.mxu0 0.0
    %462 = vmatpush.msra.mxu0 0.0
    %463 = vmatpush.msra.mxu0 0.0
    %464 = vmatpush.msra.mxu0 0.0
    %465 = vmatpush.msra.mxu0 0.0
    %466 = vmatpush.msra.mxu0 0.0
    %467 = vmatpush.msra.mxu0 0.0
    %468 = vmatpush.msra.mxu0 0.0
    %469 = vmatpush.msra.mxu0 0.0
    %470 = vmatpush.msra.mxu0 0.0
    %471 = vmatpush.msra.mxu0 0.0
    %472 = vmatpush.msra.mxu0 0.0
    %473 = vmatpush.msra.mxu0 %v418
    %474 = vmatpush.msra.mxu0 %v387
    %475 = vmatpush.msra.mxu0 %v385
    %476 = vmatpush.msra.mxu0 %v383
    %477 = vmatmul.f32.gmra.mxu0 %v391
    %v478 = vpop.f32.mrf.mxu0
    %v479 = vadd.f32 0.0, %v478
    %480 = vmatmul.f32.gmra.mxu0 %v394
    %v481 = vpop.f32.mrf.mxu0
    %v482 = vadd.f32 0.0, %v481
    %483 = vmatmul.f32.gmra.mxu0 %v397
    %v484 = vpop.f32.mrf.mxu0
    %v485 = vadd.f32 0.0, %v484
    %486 = vmatmul.f32.gmra.mxu0 %v400
    %v487 = vpop.f32.mrf.mxu0
    %v488 = vadd.f32 0.0, %v487
    %489 = vmatmul.f32.gmra.mxu0 %v403
    %v490 = vpop.f32.mrf.mxu0
    %v491 = vadd.f32 0.0, %v490
    %492 = vmatmul.f32.gmra.mxu0 %v406
    %v493 = vpop.f32.mrf.mxu0
    %v494 = vadd.f32 0.0, %v493
    %495 = vmatmul.f32.gmra.mxu0 %v409
    %v496 = vpop.f32.mrf.mxu0
    %v497 = vadd.f32 0.0, %v496
    %498 = vmatmul.f32.gmra.mxu0 %v412
    %v499 = vpop.f32.mrf.mxu0
    %v500 = vadd.f32 0.0, %v499
    %501 = vdwg.mxu0
    %v502 = vadd.f32 %v310, %v438
    %v503 = vadd.f32 %v351, %v479
    %v504 = vadd.f32 %v313, %v441
    %v505 = vadd.f32 %v354, %v482
    %v506 = vadd.f32 %v316, %v444
    %v507 = vadd.f32 %v357, %v485
    %v508 = vadd.f32 %v319, %v447
    %v509 = vadd.f32 %v360, %v488
    %v510 = vadd.f32 %v322, %v450
    %v511 = vadd.f32 %v363, %v491
    %v512 = vadd.f32 %v325, %v453
    %v513 = vadd.f32 %v366, %v494
    %v514 = vadd.f32 %v328, %v456
    %v515 = vadd.f32 %v369, %v497
    %v516 = vadd.f32 %v331, %v459
    %v517 = vadd.f32 %v372, %v500
    %v518 = vld [vmem:[%s1 + $0xc0] sm:$0x7]
    %v519 = vld [vmem:[%s1 + $0xc8] sm:$0x7]
    %v520 = vperm.slane %v518, 0
    %v521 = vperm.slane %v519, 0
    %v522 = vadd.f32 %v502, %v520
    %v523 = vadd.f32 %v503, %v521
    %v524 = vadd.f32 %v504, %v520
    %v525 = vadd.f32 %v505, %v521
    %v526 = vadd.f32 %v506, %v520
    %v527 = vadd.f32 %v507, %v521
    %v528 = vadd.f32 %v508, %v520
    %v529 = vadd.f32 %v509, %v521
    %v530 = vadd.f32 %v510, %v520
    %v531 = vadd.f32 %v511, %v521
    %v532 = vadd.f32 %v512, %v520
    %v533 = vadd.f32 %v513, %v521
    %v534 = vadd.f32 %v514, %v520
    %v535 = vadd.f32 %v515, %v521
    %v536 = vadd.f32 %v516, %v520
    %v537 = vadd.f32 %v517, %v521
    %v538 = vmax.f32 %v522, 0.0
    %v539 = vmax.f32 %v523, 0.0
    %v540 = vmax.f32 %v524, 0.0
    %v541 = vmax.f32 %v525, 0.0
    %v542 = vmax.f32 %v526, 0.0
    %v543 = vmax.f32 %v527, 0.0
    %v544 = vmax.f32 %v528, 0.0
    %v545 = vmax.f32 %v529, 0.0
    %v546 = vmax.f32 %v530, 0.0
    %v547 = vmax.f32 %v531, 0.0
    %v548 = vmax.f32 %v532, 0.0
    %v549 = vmax.f32 %v533, 0.0
    %v550 = vmax.f32 %v534, 0.0
    %v551 = vmax.f32 %v535, 0.0
    %v552 = vmax.f32 %v536, 0.0
    %v553 = vmax.f32 %v537, 0.0
    %v554 = vperm.slane %v518, 1
    %v555 = vperm.slane %v519, 1
    %v556 = vmul.f32 %v538, %v554
    %v557 = vmul.f32 %v539, %v555
    %v558 = vmul.f32 %v540, %v554
    %v559 = vmul.f32 %v541, %v555
    %v560 = vmul.f32 %v542, %v554
    %v561 = vmul.f32 %v543, %v555
    %v562 = vmul.f32 %v544, %v554
    %v563 = vmul.f32 %v545, %v555
    %v564 = vmul.f32 %v546, %v554
    %v565 = vmul.f32 %v547, %v555
    %v566 = vmul.f32 %v548, %v554
    %v567 = vmul.f32 %v549, %v555
    %v568 = vmul.f32 %v550, %v554
    %v569 = vmul.f32 %v551, %v555
    %v570 = vmul.f32 %v552, %v554
    %v571 = vmul.f32 %v553, %v555
    %v572 = vperm.slane %v518, 2
    %v573 = vperm.slane %v519, 2
    %v574 = vadd.f32 %v556, %v572
    %v575 = vadd.f32 %v557, %v573
    %v576 = vadd.f32 %v558, %v572
    %v577 = vadd.f32 %v559, %v573
    %v578 = vadd.f32 %v560, %v572
    %v579 = vadd.f32 %v561, %v573
    %v580 = vadd.f32 %v562, %v572
    %v581 = vadd.f32 %v563, %v573
    %v582 = vadd.f32 %v564, %v572
    %v583 = vadd.f32 %v565, %v573
    %v584 = vadd.f32 %v566, %v572
    %v585 = vadd.f32 %v567, %v573
    %v586 = vadd.f32 %v568, %v572
    %v587 = vadd.f32 %v569, %v573
    %v588 = vadd.f32 %v570, %v572
    %v589 = vadd.f32 %v571, %v573
    %vm606 = vcmask 1040384
    %v607 = vrot.slane %v574, 7
    %v608 = vrot.slane %v575, 7
    %v609 = vrot.slane %v576, 7
    %v610 = vsel %vm606, %v607, %v609
    %v611 = vrot.slane %v577, 7
    %v612 = vsel %vm606, %v608, %v611
    %v613 = vrot.slane %v578, 7
    %v614 = vsel %vm606, %v609, %v613
    %v615 = vrot.slane %v579, 7
    %v616 = vsel %vm606, %v611, %v615
    %v617 = vrot.slane %v580, 7
    %v618 = vsel %vm606, %v613, %v617
    %v619 = vrot.slane %v581, 7
    %v620 = vsel %vm606, %v615, %v619
    %v621 = vrot.slane %v582, 7
    %v622 = vsel %vm606, %v617, %v621
    %v623 = vrot.slane %v583, 7
    %v624 = vsel %vm606, %v619, %v623
    %v625 = vrot.slane %v584, 7
    %v626 = vsel %vm606, %v621, %v625
    %v627 = vrot.slane %v585, 7
    %v628 = vsel %vm606, %v623, %v627
    %v629 = vrot.slane %v586, 7
    %v630 = vsel %vm606, %v625, %v629
    %v631 = vrot.slane %v587, 7
    %v632 = vsel %vm606, %v627, %v631
    %v633 = vrot.slane %v588, 7
    %v634 = vsel %vm606, %v629, %v633
    %v635 = vrot.slane %v589, 7
    %v636 = vsel %vm606, %v631, %v635
    %653 = vst [vmem:[#allocation2 + $0x10] sm:$0xfe] %v607
    %vm654 = vcmask 785409
    %655 = vst.msk [vmem:[#allocation2 + $0x18] sm:$0xfe] %vm654, %v608
    %656 = vst [vmem:[#allocation2 + $0x20] sm:$0xff] %v610
    %657 = vst.msk [vmem:[#allocation2 + $0x28] sm:$0xff] %vm95, %v612
    %658 = vst [vmem:[#allocation2 + $0x30] sm:$0xff] %v614
    %659 = vst.msk [vmem:[#allocation2 + $0x38] sm:$0xff] %vm95, %v616
    %660 = vst [vmem:[#allocation2 + $0x40] sm:$0xff] %v618
    %661 = vst.msk [vmem:[#allocation2 + $0x48] sm:$0xff] %vm95, %v620
    %662 = vst [vmem:[#allocation2 + $0x50] sm:$0xff] %v622
    %663 = vst.msk [vmem:[#allocation2 + $0x58] sm:$0xff] %vm95, %v624
    %664 = vst [vmem:[#allocation2 + $0x60] sm:$0xff] %v626
    %665 = vst.msk [vmem:[#allocation2 + $0x68] sm:$0xff] %vm95, %v628
    %666 = vst [vmem:[#allocation2 + $0x70] sm:$0xff] %v630
    %667 = vst.msk [vmem:[#allocation2 + $0x78] sm:$0xff] %vm95, %v632
    %668 = vst [vmem:[#allocation2 + $0x80] sm:$0x7f] %v634
    %vm669 = vcmask 784384
    %670 = vst.msk [vmem:[#allocation2 + $0x88] sm:$0x7f] %vm669, %v636
    %v671 = vld [vmem:[#allocation2 + $0x10] sm:$0xff]
    %v672 = vld [vmem:[#allocation2 + $0x18] sm:$0xff]
    %v673 = vld [vmem:[#allocation2 + $0x20] sm:$0xff]
    %v674 = vld [vmem:[#allocation2 + $0x28] sm:$0xff]
    %v675 = vld [vmem:[#allocation2 + $0x30] sm:$0xff]
    %v676 = vld [vmem:[#allocation2 + $0x38] sm:$0xff]
    %v677 = vld [vmem:[#allocation2 + $0x40] sm:$0xff]
    %v678 = vld [vmem:[#allocation2 + $0x48] sm:$0xff]
    %v679 = vld [vmem:[#allocation2 + $0x50] sm:$0xff]
    %v680 = vld [vmem:[#allocation2 + $0x58] sm:$0xff]
    %v681 = vld [vmem:[#allocation2 + $0x60] sm:$0xff]
    %v682 = vld [vmem:[#allocation2 + $0x68] sm:$0xff]
    %v683 = vld [vmem:[#allocation2 + $0x70] sm:$0xff]
    %v684 = vld [vmem:[#allocation2 + $0x78] sm:$0xff]
    %v685 = vld [vmem:[#allocation2 + $0x80] sm:$0xff]
    %v686 = vld [vmem:[#allocation2 + $0x88] sm:$0xff]
    %703 = vrot.lane.b32.xlu0 %v671, 120
    %v704 = vpop.permute.xlu0 %703
    %705 = vrot.lane.b32.xlu0 %v672, 120
    %v706 = vpop.permute.xlu0 %705
    %707 = vrot.lane.b32.xlu0 %v673, 120
    %v708 = vpop.permute.xlu0 %707
    %709 = vrot.lane.b32.xlu0 %v674, 120
    %v710 = vpop.permute.xlu0 %709
    %711 = vrot.lane.b32.xlu0 %v675, 120
    %v712 = vpop.permute.xlu0 %711
    %713 = vrot.lane.b32.xlu0 %v676, 120
    %v714 = vpop.permute.xlu0 %713
    %715 = vrot.lane.b32.xlu0 %v677, 120
    %v716 = vpop.permute.xlu0 %715
    %717 = vrot.lane.b32.xlu0 %v678, 120
    %v718 = vpop.permute.xlu0 %717
    %719 = vrot.lane.b32.xlu0 %v679, 120
    %v720 = vpop.permute.xlu0 %719
    %721 = vrot.lane.b32.xlu0 %v680, 120
    %v722 = vpop.permute.xlu0 %721
    %723 = vrot.lane.b32.xlu0 %v681, 120
    %v724 = vpop.permute.xlu0 %723
    %725 = vrot.lane.b32.xlu0 %v682, 120
    %v726 = vpop.permute.xlu0 %725
    %727 = vrot.lane.b32.xlu0 %v683, 120
    %v728 = vpop.permute.xlu0 %727
    %729 = vrot.lane.b32.xlu0 %v684, 120
    %v730 = vpop.permute.xlu0 %729
    %731 = vrot.lane.b32.xlu0 %v685, 120
    %v732 = vpop.permute.xlu0 %731
    %733 = vrot.lane.b32.xlu0 %v686, 120
    %v734 = vpop.permute.xlu0 %733
    %vm735 = vcmask 982016
    %v736 = vsel %vm735, %v704, %v706
    %v737 = vsel %vm735, %v708, %v710
    %v738 = vsel %vm735, %v712, %v714
    %v739 = vsel %vm735, %v716, %v718
    %v740 = vsel %vm735, %v720, %v722
    %v741 = vsel %vm735, %v724, %v726
    %v742 = vsel %vm735, %v728, %v730
    %v743 = vsel %vm735, %v732, %v734
    %v760 = vmax.f32 %v671, %v736
    %v761 = vmax.f32 %v672, %v706
    %v762 = vmax.f32 %v673, %v737
    %v763 = vmax.f32 %v674, %v710
    %v764 = vmax.f32 %v675, %v738
    %v765 = vmax.f32 %v676, %v714
    %v766 = vmax.f32 %v677, %v739
    %v767 = vmax.f32 %v678, %v718
    %v768 = vmax.f32 %v679, %v740
    %v769 = vmax.f32 %v680, %v722
    %v770 = vmax.f32 %v681, %v741
    %v771 = vmax.f32 %v682, %v726
    %v772 = vmax.f32 %v683, %v742
    %v773 = vmax.f32 %v684, %v730
    %v774 = vmax.f32 %v685, %v743
    %v775 = vmax.f32 %v686, %v734
    %v776 = vld [vmem:[#allocation2 + $0x10] sm:$0xfe]
    %v777 = vld [vmem:[#allocation2 + $0x18] sm:$0xfe]
    %v778 = vld [vmem:[#allocation2 + $0x90] sm:$0x1]
    %v779 = vld [vmem:[#allocation2 + $0x98] sm:$0x1]
    %784 = vrot.lane.b32.xlu0 %v776, 120
    %v785 = vpop.permute.xlu0 %784
    %786 = vrot.lane.b32.xlu0 %v777, 120
    %v787 = vpop.permute.xlu0 %786
    %788 = vrot.lane.b32.xlu0 %v778, 120
    %v789 = vpop.permute.xlu0 %788
    %790 = vrot.lane.b32.xlu0 %v779, 120
    %v791 = vpop.permute.xlu0 %790
    %v792 = vsel %vm735, %v785, %v787
    %v793 = vsel %vm735, %v789, %v791
    %v798 = vmax.f32 %v776, %v792
    %v799 = vmax.f32 %v777, %v787
    %v800 = vmax.f32 %v778, %v793
    %v801 = vmax.f32 %v779, %v791
    %vm820 = vcmask 1046528
    %v821 = vrot.slane %v798, 1
    %v822 = vrot.slane %v762, 1
    %v823 = vsel %vm820, %v821, %v822
    %v824 = vrot.slane %v799, 1
    %v825 = vrot.slane %v763, 1
    %v826 = vsel %vm820, %v824, %v825
    %v827 = vrot.slane %v764, 1
    %v828 = vsel %vm820, %v822, %v827
    %v829 = vrot.slane %v765, 1
    %v830 = vsel %vm820, %v825, %v829
    %v831 = vrot.slane %v766, 1
    %v832 = vsel %vm820, %v827, %v831
    %v833 = vrot.slane %v767, 1
    %v834 = vsel %vm820, %v829, %v833
    %v835 = vrot.slane %v768, 1
    %v836 = vsel %vm820, %v831, %v835
    %v837 = vrot.slane %v769, 1
    %v838 = vsel %vm820, %v833, %v837
    %v839 = vrot.slane %v770, 1
    %v840 = vsel %vm820, %v835, %v839
    %v841 = vrot.slane %v771, 1
    %v842 = vsel %vm820, %v837, %v841
    %v843 = vrot.slane %v772, 1
    %v844 = vsel %vm820, %v839, %v843
    %v845 = vrot.slane %v773, 1
    %v846 = vsel %vm820, %v841, %v845
    %v847 = vrot.slane %v774, 1
    %v848 = vsel %vm820, %v843, %v847
    %v849 = vrot.slane %v775, 1
    %v850 = vsel %vm820, %v845, %v849
    %v851 = vrot.slane %v800, 1
    %v852 = vsel %vm820, %v847, %v851
    %v853 = vrot.slane %v801, 1
    %v854 = vsel %vm820, %v849, %v853
    %v871 = vmax.f32 %v760, %v823
    %v872 = vmax.f32 %v761, %v826
    %v873 = vmax.f32 %v762, %v828
    %v874 = vmax.f32 %v763, %v830
    %v875 = vmax.f32 %v764, %v832
    %v876 = vmax.f32 %v765, %v834
    %v877 = vmax.f32 %v766, %v836
    %v878 = vmax.f32 %v767, %v838
    %v879 = vmax.f32 %v768, %v840
    %v880 = vmax.f32 %v769, %v842
    %v881 = vmax.f32 %v770, %v844
    %v882 = vmax.f32 %v771, %v846
    %v883 = vmax.f32 %v772, %v848
    %v884 = vmax.f32 %v773, %v850
    %v885 = vmax.f32 %v774, %v852
    %v886 = vmax.f32 %v775, %v854
    %v887 = vld [vmem:[%s1 + $0xd0] sm:$0xff]
    %v888 = vld [vmem:[%s1 + $0xe0] sm:$0xff]
    %v889 = vld [vmem:[%s1 + $0xf0] sm:$0xff]
    %v890 = vld [vmem:[%s1 + $0x100] sm:$0xff]
    %v891 = vld [vmem:[%s1 + $0x110] sm:$0xff]
    %v892 = vld [vmem:[%s1 + $0x120] sm:$0xff]
    %v893 = vld [vmem:[%s1 + $0x130] sm:$0xff]
    %v894 = vld [vmem:[%s1 + $0x140] sm:$0xff]
    %v895 = vld [vmem:[%s1 + $0x150] sm:$0xff]
    %v896 = vld [vmem:[%s1 + $0x160] sm:$0xff]
    %v897 = vld [vmem:[%s1 + $0x170] sm:$0xff]
    %v898 = vld [vmem:[%s1 + $0x180] sm:$0xff]
    %v899 = vld [vmem:[%s1 + $0x190] sm:$0xff]
    %v900 = vld [vmem:[%s1 + $0x1a0] sm:$0xff]
    %v901 = vld [vmem:[%s1 + $0x1b0] sm:$0xff]
    %v902 = vld [vmem:[%s1 + $0x1c0] sm:$0xff]
    %v903 = vld [vmem:[%s1 + $0x1d0] sm:$0xff]
    %v904 = vld [vmem:[%s1 + $0x1e0] sm:$0xff]
    %v905 = vld [vmem:[%s1 + $0x1f0] sm:$0xff]
    %v906 = vld [vmem:[%s1 + $0x200] sm:$0xff]
    %v907 = vld [vmem:[%s1 + $0x210] sm:$0xff]
    %v908 = vld [vmem:[%s1 + $0x220] sm:$0xff]
    %v909 = vld [vmem:[%s1 + $0x230] sm:$0xff]
    %v910 = vld [vmem:[%s1 + $0x240] sm:$0xff]
    %v911 = vld [vmem:[%s1 + $0x250] sm:$0xff]
    %v912 = vld [vmem:[%s1 + $0x260] sm:$0xff]
    %v913 = vld [vmem:[%s1 + $0x270] sm:$0xff]
    %v914 = vld [vmem:[%s1 + $0x280] sm:$0xff]
    %v915 = vld [vmem:[%s1 + $0x290] sm:$0x7]
    %v916 = vperm.slane %v915, 0
    %v918 = vsel %vm95, %v872, 0
    %v921 = vsel %vm95, %v874, 0
    %v924 = vsel %vm95, %v876, 0
    %v927 = vsel %vm95, %v878, 0
    %v930 = vsel %vm95, %v880, 0
    %v933 = vsel %vm95, %v882, 0
    %v936 = vsel %vm95, %v884, 0
    %v939 = vsel %vm95, %v886, 0
    %941 = vmatpush.msra.mxu0 %v902
    %942 = vmatpush.msra.mxu0 %v901
    %943 = vmatpush.msra.mxu0 %v900
    %944 = vmatpush.msra.mxu0 %v899
    %945 = vmatpush.msra.mxu0 %v898
    %946 = vmatpush.msra.mxu0 %v897
    %947 = vmatpush.msra.mxu0 %v896
    %948 = vmatpush.msra.mxu0 %v895
    %949 = vmatpush.msra.mxu0 %v894
    %950 = vmatpush.msra.mxu0 %v893
    %951 = vmatpush.msra.mxu0 %v892
    %952 = vmatpush.msra.mxu0 %v891
    %953 = vmatpush.msra.mxu0 %v890
    %954 = vmatpush.msra.mxu0 %v889
    %955 = vmatpush.msra.mxu0 %v888
    %956 = vmatpush.msra.mxu0 %v887
    %957 = vmatmul.f32.gmra.mxu0 %v871
    %v958 = vpop.f32.mrf.mxu0
    %v959 = vadd.f32 %v916, %v958
    %960 = vmatmul.f32.gmra.mxu0 %v873
    %v961 = vpop.f32.mrf.mxu0
    %v962 = vadd.f32 %v916, %v961
    %963 = vmatmul.f32.gmra.mxu0 %v875
    %v964 = vpop.f32.mrf.mxu0
    %v965 = vadd.f32 %v916, %v964
    %966 = vmatmul.f32.gmra.mxu0 %v877
    %v967 = vpop.f32.mrf.mxu0
    %v968 = vadd.f32 %v916, %v967
    %969 = vmatmul.f32.gmra.mxu0 %v879
    %v970 = vpop.f32.mrf.mxu0
    %v971 = vadd.f32 %v916, %v970
    %972 = vmatmul.f32.gmra.mxu0 %v881
    %v973 = vpop.f32.mrf.mxu0
    %v974 = vadd.f32 %v916, %v973
    %975 = vmatmul.f32.gmra.mxu0 %v883
    %v976 = vpop.f32.mrf.mxu0
    %v977 = vadd.f32 %v916, %v976
    %978 = vmatmul.f32.gmra.mxu0 %v885
    %v979 = vpop.f32.mrf.mxu0
    %v980 = vadd.f32 %v916, %v979
    %981 = vdwg.mxu0
    %982 = vmatpush.msra.mxu0 0.0
    %983 = vmatpush.msra.mxu0 0.0
    %984 = vmatpush.msra.mxu0 0.0
    %985 = vmatpush.msra.mxu0 0.0
    %986 = vmatpush.msra.mxu0 %v914
    %987 = vmatpush.msra.mxu0 %v913
    %988 = vmatpush.msra.mxu0 %v912
    %989 = vmatpush.msra.mxu0 %v911
    %990 = vmatpush.msra.mxu0 %v910
    %991 = vmatpush.msra.mxu0 %v909
    %992 = vmatpush.msra.mxu0 %v908
    %993 = vmatpush.msra.mxu0 %v907
    %994 = vmatpush.msra.mxu0 %v906
    %995 = vmatpush.msra.mxu0 %v905
    %996 = vmatpush.msra.mxu0 %v904
    %997 = vmatpush.msra.mxu0 %v903
    %998 = vmatmul.f32.gmra.mxu0 %v918
    %v999 = vpop.f32.mrf.mxu0
    %v1000 = vadd.f32 %v959, %v999
    %1001 = vmatmul.f32.gmra.mxu0 %v921
    %v1002 = vpop.f32.mrf.mxu0
    %v1003 = vadd.f32 %v962, %v1002
    %1004 = vmatmul.f32.gmra.mxu0 %v924
    %v1005 = vpop.f32.mrf.mxu0
    %v1006 = vadd.f32 %v965, %v1005
    %1007 = vmatmul.f32.gmra.mxu0 %v927
    %v1008 = vpop.f32.mrf.mxu0
    %v1009 = vadd.f32 %v968, %v1008
    %1010 = vmatmul.f32.gmra.mxu0 %v930
    %v1011 = vpop.f32.mrf.mxu0
    %v1012 = vadd.f32 %v971, %v1011
    %1013 = vmatmul.f32.gmra.mxu0 %v933
    %v1014 = vpop.f32.mrf.mxu0
    %v1015 = vadd.f32 %v974, %v1014
    %1016 = vmatmul.f32.gmra.mxu0 %v936
    %v1017 = vpop.f32.mrf.mxu0
    %v1018 = vadd.f32 %v977, %v1017
    %1019 = vmatmul.f32.gmra.mxu0 %v939
    %v1020 = vpop.f32.mrf.mxu0
    %v1021 = vadd.f32 %v980, %v1020
    %1022 = vdwg.mxu0
    %v1023 = vperm.slane %v915, 1
    %v1024 = vmul.f32 %v1000, %v1023
    %v1025 = vmul.f32 %v1003, %v1023
    %v1026 = vmul.f32 %v1006, %v1023
    %v1027 = vmul.f32 %v1009, %v1023
    %v1028 = vmul.f32 %v1012, %v1023
    %v1029 = vmul.f32 %v1015, %v1023
    %v1030 = vmul.f32 %v1018, %v1023
    %v1031 = vmul.f32 %v1021, %v1023
    %v1032 = vperm.slane %v915, 2
    %v1033 = vadd.f32 %v1024, %v1032
    %v1034 = vadd.f32 %v1025, %v1032
    %v1035 = vadd.f32 %v1026, %v1032
    %v1036 = vadd.f32 %v1027, %v1032
    %v1037 = vadd.f32 %v1028, %v1032
    %v1038 = vadd.f32 %v1029, %v1032
    %v1039 = vadd.f32 %v1030, %v1032
    %v1040 = vadd.f32 %v1031, %v1032
    %v1041 = vlaneseq
    %v1042 = vshrl.u32 %v1041, 7
    %v1043 = vadd.s32 %v1042, 8
    %v1044 = vadd.s32 %v1042, 16
    %v1045 = vadd.s32 %v1042, 24
    %v1046 = vadd.s32 %v1042, 32
    %v1047 = vadd.s32 %v1042, 40
    %v1048 = vadd.s32 %v1042, 48
    %v1049 = vadd.s32 %v1042, 56
    %vm1050 = vcmp.lt.s32.totalorder %v1042, 0
    %v1051 = vsub.s32 0, %v1042
    %v1052 = vsel %vm1050, %v1051, %v1042
    %v1053 = vshrl.u32 %v1052, 5
    %v1054 = vand.u32 %v1052, 31
    %v1055 = vsub.s32 0, %v1054
    %v1056 = vsel %vm1050, %v1055, %v1054
    %vm1057 = vcmp.lt.s32.totalorder %v1043, 0
    %v1058 = vsub.s32 0, %v1043
    %v1059 = vsel %vm1057, %v1058, %v1043
    %v1060 = vshrl.u32 %v1059, 5
    %v1061 = vand.u32 %v1059, 31
    %v1062 = vsub.s32 0, %v1061
    %v1063 = vsel %vm1057, %v1062, %v1061
    %vm1064 = vcmp.lt.s32.totalorder %v1044, 0
    %v1065 = vsub.s32 0, %v1044
    %v1066 = vsel %vm1064, %v1065, %v1044
    %v1067 = vshrl.u32 %v1066, 5
    %v1068 = vand.u32 %v1066, 31
    %v1069 = vsub.s32 0, %v1068
    %v1070 = vsel %vm1064, %v1069, %v1068
    %vm1071 = vcmp.lt.s32.totalorder %v1045, 0
    %v1072 = vsub.s32 0, %v1045
    %v1073 = vsel %vm1071, %v1072, %v1045
    %v1074 = vshrl.u32 %v1073, 5
    %v1075 = vand.u32 %v1073, 31
    %v1076 = vsub.s32 0, %v1075
    %v1077 = vsel %vm1071, %v1076, %v1075
    %vm1078 = vcmp.lt.s32.totalorder %v1046, 0
    %v1079 = vsub.s32 0, %v1046
    %v1080 = vsel %vm1078, %v1079, %v1046
    %v1081 = vshrl.u32 %v1080, 5
    %v1082 = vand.u32 %v1080, 31
    %v1083 = vsub.s32 0, %v1082
    %v1084 = vsel %vm1078, %v1083, %v1082
    %vm1085 = vcmp.lt.s32.totalorder %v1047, 0
    %v1086 = vsub.s32 0, %v1047
    %v1087 = vsel %vm1085, %v1086, %v1047
    %v1088 = vshrl.u32 %v1087, 5
    %v1089 = vand.u32 %v1087, 31
    %v1090 = vsub.s32 0, %v1089
    %v1091 = vsel %vm1085, %v1090, %v1089
    %vm1092 = vcmp.lt.s32.totalorder %v1048, 0
    %v1093 = vsub.s32 0, %v1048
    %v1094 = vsel %vm1092, %v1093, %v1048
    %v1095 = vshrl.u32 %v1094, 5
    %v1096 = vand.u32 %v1094, 31
    %v1097 = vsub.s32 0, %v1096
    %v1098 = vsel %vm1092, %v1097, %v1096
    %vm1099 = vcmp.lt.s32.totalorder %v1049, 0
    %v1100 = vsub.s32 0, %v1049
    %v1101 = vsel %vm1099, %v1100, %v1049
    %v1102 = vshrl.u32 %v1101, 5
    %v1103 = vand.u32 %v1101, 31
    %v1104 = vsub.s32 0, %v1103
    %v1105 = vsel %vm1099, %v1104, %v1103
    %vm1106 = vcmp.ne.s32.totalorder %v1056, 0
    %vm1107 = vcmp.ne.s32.totalorder %v1063, 0
    %vm1108 = vcmp.ne.s32.totalorder %v1070, 0
    %vm1109 = vcmp.ne.s32.totalorder %v1077, 0
    %vm1110 = vcmp.ne.s32.totalorder %v1084, 0
    %vm1111 = vcmp.ne.s32.totalorder %v1091, 0
    %vm1112 = vcmp.ne.s32.totalorder %v1098, 0
    %vm1113 = vcmp.ne.s32.totalorder %v1105, 0
    %vm1114 = vcmp.lt.s32.totalorder %v1056, 0
    %vm1115 = vcmp.lt.s32.totalorder %v1063, 0
    %vm1116 = vcmp.lt.s32.totalorder %v1070, 0
    %vm1117 = vcmp.lt.s32.totalorder %v1077, 0
    %vm1118 = vcmp.lt.s32.totalorder %v1084, 0
    %vm1119 = vcmp.lt.s32.totalorder %v1091, 0
    %vm1120 = vcmp.lt.s32.totalorder %v1098, 0
    %vm1121 = vcmp.lt.s32.totalorder %v1105, 0
    %vm1122 = vmand %vm1114, %vm1106
    %vm1123 = vmand %vm1115, %vm1107
    %vm1124 = vmand %vm1116, %vm1108
    %vm1125 = vmand %vm1117, %vm1109
    %vm1126 = vmand %vm1118, %vm1110
    %vm1127 = vmand %vm1119, %vm1111
    %vm1128 = vmand %vm1120, %vm1112
    %vm1129 = vmand %vm1121, %vm1113
    %v1130 = vadd.s32 %v1056, 32
    %v1131 = vadd.s32 %v1063, 32
    %v1132 = vadd.s32 %v1070, 32
    %v1133 = vadd.s32 %v1077, 32
    %v1134 = vadd.s32 %v1084, 32
    %v1135 = vadd.s32 %v1091, 32
    %v1136 = vadd.s32 %v1098, 32
    %v1137 = vadd.s32 %v1105, 32
    %v1138 = vsel %vm1122, %v1130, %v1056
    %v1139 = vsel %vm1123, %v1131, %v1063
    %v1140 = vsel %vm1124, %v1132, %v1070
    %v1141 = vsel %vm1125, %v1133, %v1077
    %v1142 = vsel %vm1126, %v1134, %v1084
    %v1143 = vsel %vm1127, %v1135, %v1091
    %v1144 = vsel %vm1128, %v1136, %v1098
    %v1145 = vsel %vm1129, %v1137, %v1105
    %vm1146 = vcmp.lt.s32.totalorder %v1138, 0
    %v1147 = vsub.s32 0, %v1138
    %v1148 = vsel %vm1146, %v1147, %v1138
    %v1149 = vshrl.u32 %v1148, 1
    %v1150 = vand.u32 %v1148, 1
    %v1151 = vsub.s32 0, %v1150
    %v1152 = vsel %vm1146, %v1151, %v1150
    %vm1153 = vcmp.lt.s32.totalorder %v1139, 0
    %v1154 = vsub.s32 0, %v1139
    %v1155 = vsel %vm1153, %v1154, %v1139
    %v1156 = vshrl.u32 %v1155, 1
    %v1157 = vand.u32 %v1155, 1
    %v1158 = vsub.s32 0, %v1157
    %v1159 = vsel %vm1153, %v1158, %v1157
    %vm1160 = vcmp.lt.s32.totalorder %v1140, 0
    %v1161 = vsub.s32 0, %v1140
    %v1162 = vsel %vm1160, %v1161, %v1140
    %v1163 = vshrl.u32 %v1162, 1
    %v1164 = vand.u32 %v1162, 1
    %v1165 = vsub.s32 0, %v1164
    %v1166 = vsel %vm1160, %v1165, %v1164
    %vm1167 = vcmp.lt.s32.totalorder %v1141, 0
    %v1168 = vsub.s32 0, %v1141
    %v1169 = vsel %vm1167, %v1168, %v1141
    %v1170 = vshrl.u32 %v1169, 1
    %v1171 = vand.u32 %v1169, 1
    %v1172 = vsub.s32 0, %v1171
    %v1173 = vsel %vm1167, %v1172, %v1171
    %vm1174 = vcmp.lt.s32.totalorder %v1142, 0
    %v1175 = vsub.s32 0, %v1142
    %v1176 = vsel %vm1174, %v1175, %v1142
    %v1177 = vshrl.u32 %v1176, 1
    %v1178 = vand.u32 %v1176, 1
    %v1179 = vsub.s32 0, %v1178
    %v1180 = vsel %vm1174, %v1179, %v1178
    %vm1181 = vcmp.lt.s32.totalorder %v1143, 0
    %v1182 = vsub.s32 0, %v1143
    %v1183 = vsel %vm1181, %v1182, %v1143
    %v1184 = vshrl.u32 %v1183, 1
    %v1185 = vand.u32 %v1183, 1
    %v1186 = vsub.s32 0, %v1185
    %v1187 = vsel %vm1181, %v1186, %v1185
    %vm1188 = vcmp.lt.s32.totalorder %v1144, 0
    %v1189 = vsub.s32 0, %v1144
    %v1190 = vsel %vm1188, %v1189, %v1144
    %v1191 = vshrl.u32 %v1190, 1
    %v1192 = vand.u32 %v1190, 1
    %v1193 = vsub.s32 0, %v1192
    %v1194 = vsel %vm1188, %v1193, %v1192
    %vm1195 = vcmp.lt.s32.totalorder %v1145, 0
    %v1196 = vsub.s32 0, %v1145
    %v1197 = vsel %vm1195, %v1196, %v1145
    %v1198 = vshrl.u32 %v1197, 1
    %v1199 = vand.u32 %v1197, 1
    %v1200 = vsub.s32 0, %v1199
    %v1201 = vsel %vm1195, %v1200, %v1199
    %vm1202 = vcmp.ne.s32.totalorder %v1152, 0
    %vm1203 = vcmp.ne.s32.totalorder %v1159, 0
    %vm1204 = vcmp.ne.s32.totalorder %v1166, 0
    %vm1205 = vcmp.ne.s32.totalorder %v1173, 0
    %vm1206 = vcmp.ne.s32.totalorder %v1180, 0
    %vm1207 = vcmp.ne.s32.totalorder %v1187, 0
    %vm1208 = vcmp.ne.s32.totalorder %v1194, 0
    %vm1209 = vcmp.ne.s32.totalorder %v1201, 0
    %vm1210 = vcmp.lt.s32.totalorder %v1152, 0
    %vm1211 = vcmp.lt.s32.totalorder %v1159, 0
    %vm1212 = vcmp.lt.s32.totalorder %v1166, 0
    %vm1213 = vcmp.lt.s32.totalorder %v1173, 0
    %vm1214 = vcmp.lt.s32.totalorder %v1180, 0
    %vm1215 = vcmp.lt.s32.totalorder %v1187, 0
    %vm1216 = vcmp.lt.s32.totalorder %v1194, 0
    %vm1217 = vcmp.lt.s32.totalorder %v1201, 0
    %vm1218 = vmand %vm1210, %vm1202
    %vm1219 = vmand %vm1211, %vm1203
    %vm1220 = vmand %vm1212, %vm1204
    %vm1221 = vmand %vm1213, %vm1205
    %vm1222 = vmand %vm1214, %vm1206
    %vm1223 = vmand %vm1215, %vm1207
    %vm1224 = vmand %vm1216, %vm1208
    %vm1225 = vmand %vm1217, %vm1209
    %v1226 = vadd.s32 %v1152, 2
    %v1227 = vadd.s32 %v1159, 2
    %v1228 = vadd.s32 %v1166, 2
    %v1229 = vadd.s32 %v1173, 2
    %v1230 = vadd.s32 %v1180, 2
    %v1231 = vadd.s32 %v1187, 2
    %v1232 = vadd.s32 %v1194, 2
    %v1233 = vadd.s32 %v1201, 2
    %v1234 = vsel %vm1218, %v1226, %v1152
    %v1235 = vsel %vm1219, %v1227, %v1159
    %v1236 = vsel %vm1220, %v1228, %v1166
    %v1237 = vsel %vm1221, %v1229, %v1173
    %v1238 = vsel %vm1222, %v1230, %v1180
    %v1239 = vsel %vm1223, %v1231, %v1187
    %v1240 = vsel %vm1224, %v1232, %v1194
    %v1241 = vsel %vm1225, %v1233, %v1201
    %vm1242 = vcmp.eq.s32.totalorder %v1234, 1
    %vm1243 = vcmp.eq.s32.totalorder %v1235, 1
    %vm1244 = vcmp.eq.s32.totalorder %v1236, 1
    %vm1245 = vcmp.eq.s32.totalorder %v1237, 1
    %vm1246 = vcmp.eq.s32.totalorder %v1238, 1
    %vm1247 = vcmp.eq.s32.totalorder %v1239, 1
    %vm1248 = vcmp.eq.s32.totalorder %v1240, 1
    %vm1249 = vcmp.eq.s32.totalorder %v1241, 1
    %vm1250 = vcmp.lt.s32.totalorder %v1138, 28
    %vm1251 = vcmp.lt.s32.totalorder %v1139, 28
    %vm1252 = vcmp.lt.s32.totalorder %v1140, 28
    %vm1253 = vcmp.lt.s32.totalorder %v1141, 28
    %vm1254 = vcmp.lt.s32.totalorder %v1142, 28
    %vm1255 = vcmp.lt.s32.totalorder %v1143, 28
    %vm1256 = vcmp.lt.s32.totalorder %v1144, 28
    %vm1257 = vcmp.lt.s32.totalorder %v1145, 28
    %vm1258 = vmand %vm1242, %vm1250
    %vm1259 = vmand %vm1243, %vm1251
    %vm1260 = vmand %vm1244, %vm1252
    %vm1261 = vmand %vm1245, %vm1253
    %vm1262 = vmand %vm1246, %vm1254
    %vm1263 = vmand %vm1247, %vm1255
    %vm1264 = vmand %vm1248, %vm1256
    %vm1265 = vmand %vm1249, %vm1257
    %v1266 = vsel %vm1258, 1, 0
    %v1267 = vsel %vm1259, 1, 0
    %v1268 = vsel %vm1260, 1, 0
    %v1269 = vsel %vm1261, 1, 0
    %v1270 = vsel %vm1262, 1, 0
    %v1271 = vsel %vm1263, 1, 0
    %v1272 = vsel %vm1264, 1, 0
    %v1273 = vsel %vm1265, 1, 0
    %v1274 = vcvt.s32.f32 %v1266
    %v1275 = vcvt.s32.f32 %v1267
    %v1276 = vcvt.s32.f32 %v1268
    %v1277 = vcvt.s32.f32 %v1269
    %v1278 = vcvt.s32.f32 %v1270
    %v1279 = vcvt.s32.f32 %v1271
    %v1280 = vcvt.s32.f32 %v1272
    %v1281 = vcvt.s32.f32 %v1273
    %v1282 = vmul.f32 %v1033, %v1274
    %v1283 = vmul.f32 %v1034, %v1275
    %v1284 = vmul.f32 %v1035, %v1276
    %v1285 = vmul.f32 %v1036, %v1277
    %v1286 = vmul.f32 %v1037, %v1278
    %v1287 = vmul.f32 %v1038, %v1279
    %v1288 = vmul.f32 %v1039, %v1280
    %v1289 = vmul.f32 %v1040, %v1281
    %1290 = vst.msk [vmem:[#allocation3 + $0x8] sm:$0xff] %vm33, %v1282
    %1291 = vst.msk [vmem:[#allocation3 + $0x10] sm:$0xff] %vm33, %v1283
    %1292 = vst.msk [vmem:[#allocation3 + $0x18] sm:$0xff] %vm33, %v1284
    %1293 = vst.msk [vmem:[#allocation3 + $0x20] sm:$0xff] %vm33, %v1285
    %1294 = vst.msk [vmem:[#allocation3 + $0x28] sm:$0xff] %vm33, %v1286
    %1295 = vst.msk [vmem:[#allocation3 + $0x30] sm:$0xff] %vm33, %v1287
    %1296 = vst.msk [vmem:[#allocation3 + $0x38] sm:$0xff] %vm33, %v1288
    %1297 = vst.msk [vmem:[#allocation3 + $0x40] sm:$0xff] %vm33, %v1289
    %v1298 = vld [vmem:[#allocation3 + $0x6] sm:$0xff]
    %v1299 = vld [vmem:[#allocation3 + $0xe] sm:$0xff]
    %v1300 = vld [vmem:[#allocation3 + $0x16] sm:$0xff]
    %v1301 = vld [vmem:[#allocation3 + $0x1e] sm:$0xff]
    %v1302 = vld [vmem:[#allocation3 + $0x26] sm:$0xff]
    %v1303 = vld [vmem:[#allocation3 + $0x2e] sm:$0xff]
    %v1304 = vld [vmem:[#allocation3 + $0x36] sm:$0xff]
    %v1305 = vld [vmem:[#allocation3 + $0x3e] sm:$0xff]
    %v1306 = vld [vmem:[%s1 + $0x2a0] sm:$0xff]
    %v1307 = vld [vmem:[%s1 + $0x2a8] sm:$0xff]
    %v1308 = vld [vmem:[%s1 + $0x2b0] sm:$0xff]
    %v1309 = vld [vmem:[%s1 + $0x2b8] sm:$0xff]
    %v1310 = vld [vmem:[%s1 + $0x2c0] sm:$0xff]
    %v1311 = vld [vmem:[%s1 + $0x2c8] sm:$0xff]
    %v1312 = vld [vmem:[%s1 + $0x2d0] sm:$0xff]
    %v1313 = vld [vmem:[%s1 + $0x2d8] sm:$0xff]
    %v1314 = vld [vmem:[%s1 + $0x2e0] sm:$0xff]
    %v1315 = vld [vmem:[%s1 + $0x2e8] sm:$0xff]
    %v1316 = vld [vmem:[%s1 + $0x2f0] sm:$0xff]
    %v1317 = vld [vmem:[%s1 + $0x2f8] sm:$0xff]
    %v1318 = vld [vmem:[%s1 + $0x300] sm:$0xff]
    %v1319 = vld [vmem:[%s1 + $0x308] sm:$0xff]
    %v1320 = vld [vmem:[%s1 + $0x310] sm:$0xff]
    %v1321 = vld [vmem:[%s1 + $0x318] sm:$0xff]
    %v1322 = vld [vmem:[%s1 + $0x320] sm:$0xff]
    %v1323 = vld [vmem:[%s1 + $0x328] sm:$0xff]
    %v1324 = vld [vmem:[%s1 + $0x330] sm:$0xff]
    %v1325 = vld [vmem:[%s1 + $0x338] sm:$0xff]
    %v1326 = vld [vmem:[%s1 + $0x340] sm:$0xff]
    %v1327 = vld [vmem:[%s1 + $0x348] sm:$0xff]
    %v1328 = vld [vmem:[%s1 + $0x350] sm:$0xff]
    %v1329 = vld [vmem:[%s1 + $0x358] sm:$0xff]
    %v1330 = vld [vmem:[%s1 + $0x360] sm:$0xff]
    %v1331 = vld [vmem:[%s1 + $0x368] sm:$0xff]
    %v1332 = vld [vmem:[%s1 + $0x370] sm:$0xff]
    %v1333 = vld [vmem:[%s1 + $0x378] sm:$0xff]
    %v1334 = vld [vmem:[#allocation3 + $0x8] sm:$0xff]
    %v1335 = vld [vmem:[#allocation3 + $0x10] sm:$0xff]
    %v1336 = vld [vmem:[#allocation3 + $0x18] sm:$0xff]
    %v1337 = vld [vmem:[#allocation3 + $0x20] sm:$0xff]
    %v1338 = vld [vmem:[#allocation3 + $0x28] sm:$0xff]
    %v1339 = vld [vmem:[#allocation3 + $0x30] sm:$0xff]
    %v1340 = vld [vmem:[#allocation3 + $0x38] sm:$0xff]
    %v1341 = vld [vmem:[#allocation3 + $0x40] sm:$0xff]
    %v1342 = vld [vmem:[%s1 + $0x380] sm:$0xff]
    %v1343 = vld [vmem:[%s1 + $0x388] sm:$0xff]
    %v1344 = vld [vmem:[%s1 + $0x390] sm:$0xff]
    %v1345 = vld [vmem:[%s1 + $0x398] sm:$0xff]
    %v1346 = vld [vmem:[%s1 + $0x3a0] sm:$0xff]
    %v1347 = vld [vmem:[%s1 + $0x3a8] sm:$0xff]
    %v1348 = vld [vmem:[%s1 + $0x3b0] sm:$0xff]
    %v1349 = vld [vmem:[%s1 + $0x3b8] sm:$0xff]
    %v1350 = vld [vmem:[%s1 + $0x3c0] sm:$0xff]
    %v1351 = vld [vmem:[%s1 + $0x3c8] sm:$0xff]
    %v1352 = vld [vmem:[%s1 + $0x3d0] sm:$0xff]
    %v1353 = vld [vmem:[%s1 + $0x3d8] sm:$0xff]
    %v1354 = vld [vmem:[%s1 + $0x3e0] sm:$0xff]
    %v1355 = vld [vmem:[%s1 + $0x3e8] sm:$0xff]
    %v1356 = vld [vmem:[%s1 + $0x3f0] sm:$0xff]
    %v1357 = vld [vmem:[%s1 + $0x3f8] sm:$0xff]
    %v1358 = vld [vmem:[%s1 + $0x400] sm:$0xff]
    %v1359 = vld [vmem:[%s1 + $0x408] sm:$0xff]
    %v1360 = vld [vmem:[%s1 + $0x410] sm:$0xff]
    %v1361 = vld [vmem:[%s1 + $0x418] sm:$0xff]
    %v1362 = vld [vmem:[%s1 + $0x420] sm:$0xff]
    %v1363 = vld [vmem:[%s1 + $0x428] sm:$0xff]
    %v1364 = vld [vmem:[%s1 + $0x430] sm:$0xff]
    %v1365 = vld [vmem:[%s1 + $0x438] sm:$0xff]
    %v1366 = vld [vmem:[%s1 + $0x440] sm:$0xff]
    %v1367 = vld [vmem:[%s1 + $0x448] sm:$0xff]
    %v1368 = vld [vmem:[%s1 + $0x450] sm:$0xff]
    %v1369 = vld [vmem:[%s1 + $0x458] sm:$0xff]
    %v1371 = vsel %vm33, %v1334, 0
    %v1374 = vsel %vm33, %v1335, 0
    %v1377 = vsel %vm33, %v1336, 0
    %v1380 = vsel %vm33, %v1337, 0
    %v1383 = vsel %vm33, %v1338, 0
    %v1386 = vsel %vm33, %v1339, 0
    %v1389 = vsel %vm33, %v1340, 0
    %v1392 = vsel %vm33, %v1341, 0
    %1394 = vmatpush.msra.mxu0 0.0
    %1395 = vmatpush.msra.mxu0 0.0
    %1396 = vmatpush.msra.mxu0 %v1368
    %1397 = vmatpush.msra.mxu0 %v1366
    %1398 = vmatpush.msra.mxu0 %v1364
    %1399 = vmatpush.msra.mxu0 %v1362
    %1400 = vmatpush.msra.mxu0 %v1360
    %1401 = vmatpush.msra.mxu0 %v1358
    %1402 = vmatpush.msra.mxu0 %v1356
    %1403 = vmatpush.msra.mxu0 %v1354
    %1404 = vmatpush.msra.mxu0 %v1352
    %1405 = vmatpush.msra.mxu0 %v1350
    %1406 = vmatpush.msra.mxu0 %v1348
    %1407 = vmatpush.msra.mxu0 %v1346
    %1408 = vmatpush.msra.mxu0 %v1344
    %1409 = vmatpush.msra.mxu0 %v1342
    %1410 = vmatmul.f32.gmra.mxu0 %v1371
    %v1411 = vpop.f32.mrf.mxu0
    %v1412 = vadd.f32 0.0, %v1411
    %1413 = vmatmul.f32.gmra.mxu0 %v1374
    %v1414 = vpop.f32.mrf.mxu0
    %v1415 = vadd.f32 0.0, %v1414
    %1416 = vmatmul.f32.gmra.mxu0 %v1377
    %v1417 = vpop.f32.mrf.mxu0
    %v1418 = vadd.f32 0.0, %v1417
    %1419 = vmatmul.f32.gmra.mxu0 %v1380
    %v1420 = vpop.f32.mrf.mxu0
    %v1421 = vadd.f32 0.0, %v1420
    %1422 = vmatmul.f32.gmra.mxu0 %v1383
    %v1423 = vpop.f32.mrf.mxu0
    %v1424 = vadd.f32 0.0, %v1423
    %1425 = vmatmul.f32.gmra.mxu0 %v1386
    %v1426 = vpop.f32.mrf.mxu0
    %v1427 = vadd.f32 0.0, %v1426
    %1428 = vmatmul.f32.gmra.mxu0 %v1389
    %v1429 = vpop.f32.mrf.mxu0
    %v1430 = vadd.f32 0.0, %v1429
    %1431 = vmatmul.f32.gmra.mxu0 %v1392
    %v1432 = vpop.f32.mrf.mxu0
    %v1433 = vadd.f32 0.0, %v1432
    %1434 = vdwg.mxu0
    %1435 = vmatpush.msra.mxu0 0.0
    %1436 = vmatpush.msra.mxu0 0.0
    %1437 = vmatpush.msra.mxu0 %v1369
    %1438 = vmatpush.msra.mxu0 %v1367
    %1439 = vmatpush.msra.mxu0 %v1365
    %1440 = vmatpush.msra.mxu0 %v1363
    %1441 = vmatpush.msra.mxu0 %v1361
    %1442 = vmatpush.msra.mxu0 %v1359
    %1443 = vmatpush.msra.mxu0 %v1357
    %1444 = vmatpush.msra.mxu0 %v1355
    %1445 = vmatpush.msra.mxu0 %v1353
    %1446 = vmatpush.msra.mxu0 %v1351
    %1447 = vmatpush.msra.mxu0 %v1349
    %1448 = vmatpush.msra.mxu0 %v1347
    %1449 = vmatpush.msra.mxu0 %v1345
    %1450 = vmatpush.msra.mxu0 %v1343
    %1451 = vmatmul.f32.gmra.mxu0 %v1371
    %v1452 = vpop.f32.mrf.mxu0
    %v1453 = vadd.f32 0.0, %v1452
    %1454 = vmatmul.f32.gmra.mxu0 %v1374
    %v1455 = vpop.f32.mrf.mxu0
    %v1456 = vadd.f32 0.0, %v1455
    %1457 = vmatmul.f32.gmra.mxu0 %v1377
    %v1458 = vpop.f32.mrf.mxu0
    %v1459 = vadd.f32 0.0, %v1458
    %1460 = vmatmul.f32.gmra.mxu0 %v1380
    %v1461 = vpop.f32.mrf.mxu0
    %v1462 = vadd.f32 0.0, %v1461
    %1463 = vmatmul.f32.gmra.mxu0 %v1383
    %v1464 = vpop.f32.mrf.mxu0
    %v1465 = vadd.f32 0.0, %v1464
    %1466 = vmatmul.f32.gmra.mxu0 %v1386
    %v1467 = vpop.f32.mrf.mxu0
    %v1468 = vadd.f32 0.0, %v1467
    %1469 = vmatmul.f32.gmra.mxu0 %v1389
    %v1470 = vpop.f32.mrf.mxu0
    %v1471 = vadd.f32 0.0, %v1470
    %1472 = vmatmul.f32.gmra.mxu0 %v1392
    %v1473 = vpop.f32.mrf.mxu0
    %v1474 = vadd.f32 0.0, %v1473
    %1475 = vdwg.mxu0
    %v1477 = vsel %vm33, %v1298, 0
    %v1480 = vsel %vm33, %v1299, 0
    %v1483 = vsel %vm33, %v1300, 0
    %v1486 = vsel %vm33, %v1301, 0
    %v1489 = vsel %vm33, %v1302, 0
    %v1492 = vsel %vm33, %v1303, 0
    %v1495 = vsel %vm33, %v1304, 0
    %v1498 = vsel %vm33, %v1305, 0
    %1500 = vmatpush.msra.mxu0 0.0
    %1501 = vmatpush.msra.mxu0 0.0
    %1502 = vmatpush.msra.mxu0 %v1332
    %1503 = vmatpush.msra.mxu0 %v1330
    %1504 = vmatpush.msra.mxu0 %v1328
    %1505 = vmatpush.msra.mxu0 %v1326
    %1506 = vmatpush.msra.mxu0 %v1324
    %1507 = vmatpush.msra.mxu0 %v1322
    %1508 = vmatpush.msra.mxu0 %v1320
    %1509 = vmatpush.msra.mxu0 %v1318
    %1510 = vmatpush.msra.mxu0 %v1316
    %1511 = vmatpush.msra.mxu0 %v1314
    %1512 = vmatpush.msra.mxu0 %v1312
    %1513 = vmatpush.msra.mxu0 %v1310
    %1514 = vmatpush.msra.mxu0 %v1308
    %1515 = vmatpush.msra.mxu0 %v1306
    %1516 = vmatmul.f32.gmra.mxu0 %v1477
    %v1517 = vpop.f32.mrf.mxu0
    %v1518 = vadd.f32 %v1412, %v1517
    %1519 = vmatmul.f32.gmra.mxu0 %v1480
    %v1520 = vpop.f32.mrf.mxu0
    %v1521 = vadd.f32 %v1415, %v1520
    %1522 = vmatmul.f32.gmra.mxu0 %v1483
    %v1523 = vpop.f32.mrf.mxu0
    %v1524 = vadd.f32 %v1418, %v1523
    %1525 = vmatmul.f32.gmra.mxu0 %v1486
    %v1526 = vpop.f32.mrf.mxu0
    %v1527 = vadd.f32 %v1421, %v1526
    %1528 = vmatmul.f32.gmra.mxu0 %v1489
    %v1529 = vpop.f32.mrf.mxu0
    %v1530 = vadd.f32 %v1424, %v1529
    %1531 = vmatmul.f32.gmra.mxu0 %v1492
    %v1532 = vpop.f32.mrf.mxu0
    %v1533 = vadd.f32 %v1427, %v1532
    %1534 = vmatmul.f32.gmra.mxu0 %v1495
    %v1535 = vpop.f32.mrf.mxu0
    %v1536 = vadd.f32 %v1430, %v1535
    %1537 = vmatmul.f32.gmra.mxu0 %v1498
    %v1538 = vpop.f32.mrf.mxu0
    %v1539 = vadd.f32 %v1433, %v1538
    %1540 = vdwg.mxu0
    %1541 = vmatpush.msra.mxu0 0.0
    %1542 = vmatpush.msra.mxu0 0.0
    %1543 = vmatpush.msra.mxu0 %v1333
    %1544 = vmatpush.msra.mxu0 %v1331
    %1545 = vmatpush.msra.mxu0 %v1329
    %1546 = vmatpush.msra.mxu0 %v1327
    %1547 = vmatpush.msra.mxu0 %v1325
    %1548 = vmatpush.msra.mxu0 %v1323
    %1549 = vmatpush.msra.mxu0 %v1321
    %1550 = vmatpush.msra.mxu0 %v1319
    %1551 = vmatpush.msra.mxu0 %v1317
    %1552 = vmatpush.msra.mxu0 %v1315
    %1553 = vmatpush.msra.mxu0 %v1313
    %1554 = vmatpush.msra.mxu0 %v1311
    %1555 = vmatpush.msra.mxu0 %v1309
    %1556 = vmatpush.msra.mxu0 %v1307
    %1557 = vmatmul.f32.gmra.mxu0 %v1477
    %v1558 = vpop.f32.mrf.mxu0
    %v1559 = vadd.f32 %v1453, %v1558
    %1560 = vmatmul.f32.gmra.mxu0 %v1480
    %v1561 = vpop.f32.mrf.mxu0
    %v1562 = vadd.f32 %v1456, %v1561
    %1563 = vmatmul.f32.gmra.mxu0 %v1483
    %v1564 = vpop.f32.mrf.mxu0
    %v1565 = vadd.f32 %v1459, %v1564
    %1566 = vmatmul.f32.gmra.mxu0 %v1486
    %v1567 = vpop.f32.mrf.mxu0
    %v1568 = vadd.f32 %v1462, %v1567
    %1569 = vmatmul.f32.gmra.mxu0 %v1489
    %v1570 = vpop.f32.mrf.mxu0
    %v1571 = vadd.f32 %v1465, %v1570
    %1572 = vmatmul.f32.gmra.mxu0 %v1492
    %v1573 = vpop.f32.mrf.mxu0
    %v1574 = vadd.f32 %v1468, %v1573
    %1575 = vmatmul.f32.gmra.mxu0 %v1495
    %v1576 = vpop.f32.mrf.mxu0
    %v1577 = vadd.f32 %v1471, %v1576
    %1578 = vmatmul.f32.gmra.mxu0 %v1498
    %v1579 = vpop.f32.mrf.mxu0
    %v1580 = vadd.f32 %v1474, %v1579
    %1581 = vdwg.mxu0
    %v1582 = vld [vmem:[#allocation3 + $0xa] sm:$0xff]
    %v1583 = vld [vmem:[#allocation3 + $0x12] sm:$0xff]
    %v1584 = vld [vmem:[#allocation3 + $0x1a] sm:$0xff]
    %v1585 = vld [vmem:[#allocation3 + $0x22] sm:$0xff]
    %v1586 = vld [vmem:[#allocation3 + $0x2a] sm:$0xff]
    %v1587 = vld [vmem:[#allocation3 + $0x32] sm:$0xff]
    %v1588 = vld [vmem:[#allocation3 + $0x3a] sm:$0xff]
    %v1589 = vld [vmem:[#allocation3 + $0x42] sm:$0xff]
    %v1590 = vld [vmem:[%s1 + $0x460] sm:$0xff]
    %v1591 = vld [vmem:[%s1 + $0x468] sm:$0xff]
    %v1592 = vld [vmem:[%s1 + $0x470] sm:$0xff]
    %v1593 = vld [vmem:[%s1 + $0x478] sm:$0xff]
    %v1594 = vld [vmem:[%s1 + $0x480] sm:$0xff]
    %v1595 = vld [vmem:[%s1 + $0x488] sm:$0xff]
    %v1596 = vld [vmem:[%s1 + $0x490] sm:$0xff]
    %v1597 = vld [vmem:[%s1 + $0x498] sm:$0xff]
    %v1598 = vld [vmem:[%s1 + $0x4a0] sm:$0xff]
    %v1599 = vld [vmem:[%s1 + $0x4a8] sm:$0xff]
    %v1600 = vld [vmem:[%s1 + $0x4b0] sm:$0xff]
    %v1601 = vld [vmem:[%s1 + $0x4b8] sm:$0xff]
    %v1602 = vld [vmem:[%s1 + $0x4c0] sm:$0xff]
    %v1603 = vld [vmem:[%s1 + $0x4c8] sm:$0xff]
    %v1604 = vld [vmem:[%s1 + $0x4d0] sm:$0xff]
    %v1605 = vld [vmem:[%s1 + $0x4d8] sm:$0xff]
    %v1606 = vld [vmem:[%s1 + $0x4e0] sm:$0xff]
    %v1607 = vld [vmem:[%s1 + $0x4e8] sm:$0xff]
    %v1608 = vld [vmem:[%s1 + $0x4f0] sm:$0xff]
    %v1609 = vld [vmem:[%s1 + $0x4f8] sm:$0xff]
    %v1610 = vld [vmem:[%s1 + $0x500] sm:$0xff]
    %v1611 = vld [vmem:[%s1 + $0x508] sm:$0xff]
    %v1612 = vld [vmem:[%s1 + $0x510] sm:$0xff]
    %v1613 = vld [vmem:[%s1 + $0x518] sm:$0xff]
    %v1614 = vld [vmem:[%s1 + $0x520] sm:$0xff]
    %v1615 = vld [vmem:[%s1 + $0x528] sm:$0xff]
    %v1616 = vld [vmem:[%s1 + $0x530] sm:$0xff]
    %v1617 = vld [vmem:[%s1 + $0x538] sm:$0xff]
    %v1619 = vsel %vm33, %v1582, 0
    %v1622 = vsel %vm33, %v1583, 0
    %v1625 = vsel %vm33, %v1584, 0
    %v1628 = vsel %vm33, %v1585, 0
    %v1631 = vsel %vm33, %v1586, 0
    %v1634 = vsel %vm33, %v1587, 0
    %v1637 = vsel %vm33, %v1588, 0
    %v1640 = vsel %vm33, %v1589, 0
    %1642 = vmatpush.msra.mxu0 0.0
    %1643 = vmatpush.msra.mxu0 0.0
    %1644 = vmatpush.msra.mxu0 %v1616
    %1645 = vmatpush.msra.mxu0 %v1614
    %1646 = vmatpush.msra.mxu0 %v1612
    %1647 = vmatpush.msra.mxu0 %v1610
    %1648 = vmatpush.msra.mxu0 %v1608
    %1649 = vmatpush.msra.mxu0 %v1606
    %1650 = vmatpush.msra.mxu0 %v1604
    %1651 = vmatpush.msra.mxu0 %v1602
    %1652 = vmatpush.msra.mxu0 %v1600
    %1653 = vmatpush.msra.mxu0 %v1598
    %1654 = vmatpush.msra.mxu0 %v1596
    %1655 = vmatpush.msra.mxu0 %v1594
    %1656 = vmatpush.msra.mxu0 %v1592
    %1657 = vmatpush.msra.mxu0 %v1590
    %1658 = vmatmul.f32.gmra.mxu0 %v1619
    %v1659 = vpop.f32.mrf.mxu0
    %v1660 = vadd.f32 0.0, %v1659
    %1661 = vmatmul.f32.gmra.mxu0 %v1622
    %v1662 = vpop.f32.mrf.mxu0
    %v1663 = vadd.f32 0.0, %v1662
    %1664 = vmatmul.f32.gmra.mxu0 %v1625
    %v1665 = vpop.f32.mrf.mxu0
    %v1666 = vadd.f32 0.0, %v1665
    %1667 = vmatmul.f32.gmra.mxu0 %v1628
    %v1668 = vpop.f32.mrf.mxu0
    %v1669 = vadd.f32 0.0, %v1668
    %1670 = vmatmul.f32.gmra.mxu0 %v1631
    %v1671 = vpop.f32.mrf.mxu0
    %v1672 = vadd.f32 0.0, %v1671
    %1673 = vmatmul.f32.gmra.mxu0 %v1634
    %v1674 = vpop.f32.mrf.mxu0
    %v1675 = vadd.f32 0.0, %v1674
    %1676 = vmatmul.f32.gmra.mxu0 %v1637
    %v1677 = vpop.f32.mrf.mxu0
    %v1678 = vadd.f32 0.0, %v1677
    %1679 = vmatmul.f32.gmra.mxu0 %v1640
    %v1680 = vpop.f32.mrf.mxu0
    %v1681 = vadd.f32 0.0, %v1680
    %1682 = vdwg.mxu0
    %1683 = vmatpush.msra.mxu0 0.0
    %1684 = vmatpush.msra.mxu0 0.0
    %1685 = vmatpush.msra.mxu0 %v1617
    %1686 = vmatpush.msra.mxu0 %v1615
    %1687 = vmatpush.msra.mxu0 %v1613
    %1688 = vmatpush.msra.mxu0 %v1611
    %1689 = vmatpush.msra.mxu0 %v1609
    %1690 = vmatpush.msra.mxu0 %v1607
    %1691 = vmatpush.msra.mxu0 %v1605
    %1692 = vmatpush.msra.mxu0 %v1603
    %1693 = vmatpush.msra.mxu0 %v1601
    %1694 = vmatpush.msra.mxu0 %v1599
    %1695 = vmatpush.msra.mxu0 %v1597
    %1696 = vmatpush.msra.mxu0 %v1595
    %1697 = vmatpush.msra.mxu0 %v1593
    %1698 = vmatpush.msra.mxu0 %v1591
    %1699 = vmatmul.f32.gmra.mxu0 %v1619
    %v1700 = vpop.f32.mrf.mxu0
    %v1701 = vadd.f32 0.0, %v1700
    %1702 = vmatmul.f32.gmra.mxu0 %v1622
    %v1703 = vpop.f32.mrf.mxu0
    %v1704 = vadd.f32 0.0, %v1703
    %1705 = vmatmul.f32.gmra.mxu0 %v1625
    %v1706 = vpop.f32.mrf.mxu0
    %v1707 = vadd.f32 0.0, %v1706
    %1708 = vmatmul.f32.gmra.mxu0 %v1628
    %v1709 = vpop.f32.mrf.mxu0
    %v1710 = vadd.f32 0.0, %v1709
    %1711 = vmatmul.f32.gmra.mxu0 %v1631
    %v1712 = vpop.f32.mrf.mxu0
    %v1713 = vadd.f32 0.0, %v1712
    %1714 = vmatmul.f32.gmra.mxu0 %v1634
    %v1715 = vpop.f32.mrf.mxu0
    %v1716 = vadd.f32 0.0, %v1715
    %1717 = vmatmul.f32.gmra.mxu0 %v1637
    %v1718 = vpop.f32.mrf.mxu0
    %v1719 = vadd.f32 0.0, %v1718
    %1720 = vmatmul.f32.gmra.mxu0 %v1640
    %v1721 = vpop.f32.mrf.mxu0
    %v1722 = vadd.f32 0.0, %v1721
    %1723 = vdwg.mxu0
    %v1724 = vadd.f32 %v1518, %v1660
    %v1725 = vadd.f32 %v1559, %v1701
    %v1726 = vadd.f32 %v1521, %v1663
    %v1727 = vadd.f32 %v1562, %v1704
    %v1728 = vadd.f32 %v1524, %v1666
    %v1729 = vadd.f32 %v1565, %v1707
    %v1730 = vadd.f32 %v1527, %v1669
    %v1731 = vadd.f32 %v1568, %v1710
    %v1732 = vadd.f32 %v1530, %v1672
    %v1733 = vadd.f32 %v1571, %v1713
    %v1734 = vadd.f32 %v1533, %v1675
    %v1735 = vadd.f32 %v1574, %v1716
    %v1736 = vadd.f32 %v1536, %v1678
    %v1737 = vadd.f32 %v1577, %v1719
    %v1738 = vadd.f32 %v1539, %v1681
    %v1739 = vadd.f32 %v1580, %v1722
    %v1740 = vld [vmem:[%s1 + $0x540] sm:$0x7]
    %v1741 = vld [vmem:[%s1 + $0x548] sm:$0x7]
    %v1742 = vperm.slane %v1740, 0
    %v1743 = vperm.slane %v1741, 0
    %v1744 = vadd.f32 %v1724, %v1742
    %v1745 = vadd.f32 %v1725, %v1743
    %v1746 = vadd.f32 %v1726, %v1742
    %v1747 = vadd.f32 %v1727, %v1743
    %v1748 = vadd.f32 %v1728, %v1742
    %v1749 = vadd.f32 %v1729, %v1743
    %v1750 = vadd.f32 %v1730, %v1742
    %v1751 = vadd.f32 %v1731, %v1743
    %v1752 = vadd.f32 %v1732, %v1742
    %v1753 = vadd.f32 %v1733, %v1743
    %v1754 = vadd.f32 %v1734, %v1742
    %v1755 = vadd.f32 %v1735, %v1743
    %v1756 = vadd.f32 %v1736, %v1742
    %v1757 = vadd.f32 %v1737, %v1743
    %v1758 = vadd.f32 %v1738, %v1742
    %v1759 = vadd.f32 %v1739, %v1743
    %v1760 = vmax.f32 %v1744, 0.0
    %v1761 = vmax.f32 %v1745, 0.0
    %v1762 = vmax.f32 %v1746, 0.0
    %v1763 = vmax.f32 %v1747, 0.0
    %v1764 = vmax.f32 %v1748, 0.0
    %v1765 = vmax.f32 %v1749, 0.0
    %v1766 = vmax.f32 %v1750, 0.0
    %v1767 = vmax.f32 %v1751, 0.0
    %v1768 = vmax.f32 %v1752, 0.0
    %v1769 = vmax.f32 %v1753, 0.0
    %v1770 = vmax.f32 %v1754, 0.0
    %v1771 = vmax.f32 %v1755, 0.0
    %v1772 = vmax.f32 %v1756, 0.0
    %v1773 = vmax.f32 %v1757, 0.0
    %v1774 = vmax.f32 %v1758, 0.0
    %v1775 = vmax.f32 %v1759, 0.0
    %v1776 = vperm.slane %v1740, 1
    %v1777 = vperm.slane %v1741, 1
    %v1778 = vmul.f32 %v1760, %v1776
    %v1779 = vmul.f32 %v1761, %v1777
    %v1780 = vmul.f32 %v1762, %v1776
    %v1781 = vmul.f32 %v1763, %v1777
    %v1782 = vmul.f32 %v1764, %v1776
    %v1783 = vmul.f32 %v1765, %v1777
    %v1784 = vmul.f32 %v1766, %v1776
    %v1785 = vmul.f32 %v1767, %v1777
    %v1786 = vmul.f32 %v1768, %v1776
    %v1787 = vmul.f32 %v1769, %v1777
    %v1788 = vmul.f32 %v1770, %v1776
    %v1789 = vmul.f32 %v1771, %v1777
    %v1790 = vmul.f32 %v1772, %v1776
    %v1791 = vmul.f32 %v1773, %v1777
    %v1792 = vmul.f32 %v1774, %v1776
    %v1793 = vmul.f32 %v1775, %v1777
    %v1794 = vperm.slane %v1740, 2
    %v1795 = vperm.slane %v1741, 2
    %v1796 = vadd.f32 %v1778, %v1794
    %v1797 = vadd.f32 %v1779, %v1795
    %v1798 = vadd.f32 %v1780, %v1794
    %v1799 = vadd.f32 %v1781, %v1795
    %v1800 = vadd.f32 %v1782, %v1794
    %v1801 = vadd.f32 %v1783, %v1795
    %v1802 = vadd.f32 %v1784, %v1794
    %v1803 = vadd.f32 %v1785, %v1795
    %v1804 = vadd.f32 %v1786, %v1794
    %v1805 = vadd.f32 %v1787, %v1795
    %v1806 = vadd.f32 %v1788, %v1794
    %v1807 = vadd.f32 %v1789, %v1795
    %v1808 = vadd.f32 %v1790, %v1794
    %v1809 = vadd.f32 %v1791, %v1795
    %v1810 = vadd.f32 %v1792, %v1794
    %v1811 = vadd.f32 %v1793, %v1795
    %1812 = vst [vmem:[#allocation4 + $0x10] sm:$0xff] %v1796
    %1813 = vst.msk [vmem:[#allocation4 + $0x18] sm:$0xff] %vm95, %v1797
    %1814 = vst [vmem:[#allocation4 + $0x20] sm:$0xff] %v1798
    %1815 = vst.msk [vmem:[#allocation4 + $0x28] sm:$0xff] %vm95, %v1799
    %1816 = vst [vmem:[#allocation4 + $0x30] sm:$0xff] %v1800
    %1817 = vst.msk [vmem:[#allocation4 + $0x38] sm:$0xff] %vm95, %v1801
    %1818 = vst [vmem:[#allocation4 + $0x40] sm:$0xff] %v1802
    %1819 = vst.msk [vmem:[#allocation4 + $0x48] sm:$0xff] %vm95, %v1803
    %1820 = vst [vmem:[#allocation4 + $0x50] sm:$0xff] %v1804
    %1821 = vst.msk [vmem:[#allocation4 + $0x58] sm:$0xff] %vm95, %v1805
    %1822 = vst [vmem:[#allocation4 + $0x60] sm:$0xff] %v1806
    %1823 = vst.msk [vmem:[#allocation4 + $0x68] sm:$0xff] %vm95, %v1807
    %1824 = vst [vmem:[#allocation4 + $0x70] sm:$0xff] %v1808
    %1825 = vst.msk [vmem:[#allocation4 + $0x78] sm:$0xff] %vm95, %v1809
    %1826 = vst [vmem:[#allocation4 + $0x80] sm:$0xff] %v1810
    %1827 = vst.msk [vmem:[#allocation4 + $0x88] sm:$0xff] %vm95, %v1811
    %v1828 = vld [vmem:[#allocation4 + $0x10] sm:$0xff]
    %v1829 = vld [vmem:[#allocation4 + $0x18] sm:$0xff]
    %v1830 = vld [vmem:[#allocation4 + $0x20] sm:$0xff]
    %v1831 = vld [vmem:[#allocation4 + $0x28] sm:$0xff]
    %v1832 = vld [vmem:[#allocation4 + $0x30] sm:$0xff]
    %v1833 = vld [vmem:[#allocation4 + $0x38] sm:$0xff]
    %v1834 = vld [vmem:[#allocation4 + $0x40] sm:$0xff]
    %v1835 = vld [vmem:[#allocation4 + $0x48] sm:$0xff]
    %v1836 = vld [vmem:[#allocation4 + $0x50] sm:$0xff]
    %v1837 = vld [vmem:[#allocation4 + $0x58] sm:$0xff]
    %v1838 = vld [vmem:[#allocation4 + $0x60] sm:$0xff]
    %v1839 = vld [vmem:[#allocation4 + $0x68] sm:$0xff]
    %v1840 = vld [vmem:[#allocation4 + $0x70] sm:$0xff]
    %v1841 = vld [vmem:[#allocation4 + $0x78] sm:$0xff]
    %v1842 = vld [vmem:[#allocation4 + $0x80] sm:$0xff]
    %v1843 = vld [vmem:[#allocation4 + $0x88] sm:$0xff]
    %1860 = vrot.lane.b32.xlu0 %v1828, 112
    %v1861 = vpop.permute.xlu0 %1860
    %1862 = vrot.lane.b32.xlu0 %v1829, 112
    %v1863 = vpop.permute.xlu0 %1862
    %1864 = vrot.lane.b32.xlu0 %v1830, 112
    %v1865 = vpop.permute.xlu0 %1864
    %1866 = vrot.lane.b32.xlu0 %v1831, 112
    %v1867 = vpop.permute.xlu0 %1866
    %1868 = vrot.lane.b32.xlu0 %v1832, 112
    %v1869 = vpop.permute.xlu0 %1868
    %1870 = vrot.lane.b32.xlu0 %v1833, 112
    %v1871 = vpop.permute.xlu0 %1870
    %1872 = vrot.lane.b32.xlu0 %v1834, 112
    %v1873 = vpop.permute.xlu0 %1872
    %1874 = vrot.lane.b32.xlu0 %v1835, 112
    %v1875 = vpop.permute.xlu0 %1874
    %1876 = vrot.lane.b32.xlu0 %v1836, 112
    %v1877 = vpop.permute.xlu0 %1876
    %1878 = vrot.lane.b32.xlu0 %v1837, 112
    %v1879 = vpop.permute.xlu0 %1878
    %1880 = vrot.lane.b32.xlu0 %v1838, 112
    %v1881 = vpop.permute.xlu0 %1880
    %1882 = vrot.lane.b32.xlu0 %v1839, 112
    %v1883 = vpop.permute.xlu0 %1882
    %1884 = vrot.lane.b32.xlu0 %v1840, 112
    %v1885 = vpop.permute.xlu0 %1884
    %1886 = vrot.lane.b32.xlu0 %v1841, 112
    %v1887 = vpop.permute.xlu0 %1886
    %1888 = vrot.lane.b32.xlu0 %v1842, 112
    %v1889 = vpop.permute.xlu0 %1888
    %1890 = vrot.lane.b32.xlu0 %v1843, 112
    %v1891 = vpop.permute.xlu0 %1890
    %v1892 = vsel %vm33, %v1861, %v1863
    %v1893 = vsel %vm33, %v1865, %v1867
    %v1894 = vsel %vm33, %v1869, %v1871
    %v1895 = vsel %vm33, %v1873, %v1875
    %v1896 = vsel %vm33, %v1877, %v1879
    %v1897 = vsel %vm33, %v1881, %v1883
    %v1898 = vsel %vm33, %v1885, %v1887
    %v1899 = vsel %vm33, %v1889, %v1891
    %v1916 = vmax.f32 %v1828, %v1892
    %v1917 = vmax.f32 %v1829, %v1863
    %v1918 = vmax.f32 %v1830, %v1893
    %v1919 = vmax.f32 %v1831, %v1867
    %v1920 = vmax.f32 %v1832, %v1894
    %v1921 = vmax.f32 %v1833, %v1871
    %v1922 = vmax.f32 %v1834, %v1895
    %v1923 = vmax.f32 %v1835, %v1875
    %v1924 = vmax.f32 %v1836, %v1896
    %v1925 = vmax.f32 %v1837, %v1879
    %v1926 = vmax.f32 %v1838, %v1897
    %v1927 = vmax.f32 %v1839, %v1883
    %v1928 = vmax.f32 %v1840, %v1898
    %v1929 = vmax.f32 %v1841, %v1887
    %v1930 = vmax.f32 %v1842, %v1899
    %v1931 = vmax.f32 %v1843, %v1891
    %v1932 = vld [vmem:[#allocation4 + $0x10] sm:$0xfc]
    %v1933 = vld [vmem:[#allocation4 + $0x18] sm:$0xfc]
    %v1934 = vld [vmem:[#allocation4 + $0x90] sm:$0x3]
    %v1935 = vld [vmem:[#allocation4 + $0x98] sm:$0x3]
    %1940 = vrot.lane.b32.xlu0 %v1932, 112
    %v1941 = vpop.permute.xlu0 %1940
    %1942 = vrot.lane.b32.xlu0 %v1933, 112
    %v1943 = vpop.permute.xlu0 %1942
    %1944 = vrot.lane.b32.xlu0 %v1934, 112
    %v1945 = vpop.permute.xlu0 %1944
    %1946 = vrot.lane.b32.xlu0 %v1935, 112
    %v1947 = vpop.permute.xlu0 %1946
    %v1948 = vsel %vm33, %v1941, %v1943
    %v1949 = vsel %vm33, %v1945, %v1947
    %v1954 = vmax.f32 %v1932, %v1948
    %v1955 = vmax.f32 %v1933, %v1943
    %v1956 = vmax.f32 %v1934, %v1949
    %v1957 = vmax.f32 %v1935, %v1947
    %v1976 = vrot.slane %v1954, 2
    %v1977 = vrot.slane %v1918, 2
    %v1978 = vsel %vm173, %v1976, %v1977
    %v1979 = vrot.slane %v1955, 2
    %v1980 = vrot.slane %v1919, 2
    %v1981 = vsel %vm173, %v1979, %v1980
    %v1982 = vrot.slane %v1920, 2
    %v1983 = vsel %vm173, %v1977, %v1982
    %v1984 = vrot.slane %v1921, 2
    %v1985 = vsel %vm173, %v1980, %v1984
    %v1986 = vrot.slane %v1922, 2
    %v1987 = vsel %vm173, %v1982, %v1986
    %v1988 = vrot.slane %v1923, 2
    %v1989 = vsel %vm173, %v1984, %v1988
    %v1990 = vrot.slane %v1924, 2
    %v1991 = vsel %vm173, %v1986, %v1990
    %v1992 = vrot.slane %v1925, 2
    %v1993 = vsel %vm173, %v1988, %v1992
    %v1994 = vrot.slane %v1926, 2
    %v1995 = vsel %vm173, %v1990, %v1994
    %v1996 = vrot.slane %v1927, 2
    %v1997 = vsel %vm173, %v1992, %v1996
    %v1998 = vrot.slane %v1928, 2
    %v1999 = vsel %vm173, %v1994, %v1998
    %v2000 = vrot.slane %v1929, 2
    %v2001 = vsel %vm173, %v1996, %v2000
    %v2002 = vrot.slane %v1930, 2
    %v2003 = vsel %vm173, %v1998, %v2002
    %v2004 = vrot.slane %v1931, 2
    %v2005 = vsel %vm173, %v2000, %v2004
    %v2006 = vrot.slane %v1956, 2
    %v2007 = vsel %vm173, %v2002, %v2006
    %v2008 = vrot.slane %v1957, 2
    %v2009 = vsel %vm173, %v2004, %v2008
    %v2026 = vmax.f32 %v1916, %v1978
    %v2027 = vmax.f32 %v1917, %v1981
    %v2028 = vmax.f32 %v1918, %v1983
    %v2029 = vmax.f32 %v1919, %v1985
    %v2030 = vmax.f32 %v1920, %v1987
    %v2031 = vmax.f32 %v1921, %v1989
    %v2032 = vmax.f32 %v1922, %v1991
    %v2033 = vmax.f32 %v1923, %v1993
    %v2034 = vmax.f32 %v1924, %v1995
    %v2035 = vmax.f32 %v1925, %v1997
    %v2036 = vmax.f32 %v1926, %v1999
    %v2037 = vmax.f32 %v1927, %v2001
    %v2038 = vmax.f32 %v1928, %v2003
    %v2039 = vmax.f32 %v1929, %v2005
    %v2040 = vmax.f32 %v1930, %v2007
    %v2041 = vmax.f32 %v1931, %v2009
    %v2042 = vld [vmem:[%s1 + $0x550] sm:$0xff]
    %v2043 = vld [vmem:[%s1 + $0x560] sm:$0xff]
    %v2044 = vld [vmem:[%s1 + $0x570] sm:$0xff]
    %v2045 = vld [vmem:[%s1 + $0x580] sm:$0xff]
    %v2046 = vld [vmem:[%s1 + $0x590] sm:$0xff]
    %v2047 = vld [vmem:[%s1 + $0x5a0] sm:$0xff]
    %v2048 = vld [vmem:[%s1 + $0x5b0] sm:$0xff]
    %v2049 = vld [vmem:[%s1 + $0x5c0] sm:$0xff]
    %v2050 = vld [vmem:[%s1 + $0x5d0] sm:$0xff]
    %v2051 = vld [vmem:[%s1 + $0x5e0] sm:$0xff]
    %v2052 = vld [vmem:[%s1 + $0x5f0] sm:$0xff]
    %v2053 = vld [vmem:[%s1 + $0x600] sm:$0xff]
    %v2054 = vld [vmem:[%s1 + $0x610] sm:$0xff]
    %v2055 = vld [vmem:[%s1 + $0x620] sm:$0xff]
    %v2056 = vld [vmem:[%s1 + $0x630] sm:$0xff]
    %v2057 = vld [vmem:[%s1 + $0x640] sm:$0xff]
    %v2058 = vld [vmem:[%s1 + $0x650] sm:$0xff]
    %v2059 = vld [vmem:[%s1 + $0x660] sm:$0xff]
    %v2060 = vld [vmem:[%s1 + $0x670] sm:$0xff]
    %v2061 = vld [vmem:[%s1 + $0x680] sm:$0xff]
    %v2062 = vld [vmem:[%s1 + $0x690] sm:$0xff]
    %v2063 = vld [vmem:[%s1 + $0x6a0] sm:$0xff]
    %v2064 = vld [vmem:[%s1 + $0x6b0] sm:$0xff]
    %v2065 = vld [vmem:[%s1 + $0x6c0] sm:$0xff]
    %v2066 = vld [vmem:[%s1 + $0x6d0] sm:$0xff]
    %v2067 = vld [vmem:[%s1 + $0x6e0] sm:$0xff]
    %v2068 = vld [vmem:[%s1 + $0x6f0] sm:$0xff]
    %v2069 = vld [vmem:[%s1 + $0x700] sm:$0xff]
    %v2070 = vld [vmem:[%s1 + $0x710] sm:$0x7]
    %v2071 = vperm.slane %v2070, 0
    %v2073 = vsel %vm95, %v2027, 0
    %v2076 = vsel %vm95, %v2029, 0
    %v2079 = vsel %vm95, %v2031, 0
    %v2082 = vsel %vm95, %v2033, 0
    %v2085 = vsel %vm95, %v2035, 0
    %v2088 = vsel %vm95, %v2037, 0
    %v2091 = vsel %vm95, %v2039, 0
    %v2094 = vsel %vm95, %v2041, 0
    %2096 = vmatpush.msra.mxu0 %v2057
    %2097 = vmatpush.msra.mxu0 %v2056
    %2098 = vmatpush.msra.mxu0 %v2055
    %2099 = vmatpush.msra.mxu0 %v2054
    %2100 = vmatpush.msra.mxu0 %v2053
    %2101 = vmatpush.msra.mxu0 %v2052
    %2102 = vmatpush.msra.mxu0 %v2051
    %2103 = vmatpush.msra.mxu0 %v2050
    %2104 = vmatpush.msra.mxu0 %v2049
    %2105 = vmatpush.msra.mxu0 %v2048
    %2106 = vmatpush.msra.mxu0 %v2047
    %2107 = vmatpush.msra.mxu0 %v2046
    %2108 = vmatpush.msra.mxu0 %v2045
    %2109 = vmatpush.msra.mxu0 %v2044
    %2110 = vmatpush.msra.mxu0 %v2043
    %2111 = vmatpush.msra.mxu0 %v2042
    %2112 = vmatmul.f32.gmra.mxu0 %v2026
    %v2113 = vpop.f32.mrf.mxu0
    %v2114 = vadd.f32 %v2071, %v2113
    %2115 = vmatmul.f32.gmra.mxu0 %v2028
    %v2116 = vpop.f32.mrf.mxu0
    %v2117 = vadd.f32 %v2071, %v2116
    %2118 = vmatmul.f32.gmra.mxu0 %v2030
    %v2119 = vpop.f32.mrf.mxu0
    %v2120 = vadd.f32 %v2071, %v2119
    %2121 = vmatmul.f32.gmra.mxu0 %v2032
    %v2122 = vpop.f32.mrf.mxu0
    %v2123 = vadd.f32 %v2071, %v2122
    %2124 = vmatmul.f32.gmra.mxu0 %v2034
    %v2125 = vpop.f32.mrf.mxu0
    %v2126 = vadd.f32 %v2071, %v2125
    %2127 = vmatmul.f32.gmra.mxu0 %v2036
    %v2128 = vpop.f32.mrf.mxu0
    %v2129 = vadd.f32 %v2071, %v2128
    %2130 = vmatmul.f32.gmra.mxu0 %v2038
    %v2131 = vpop.f32.mrf.mxu0
    %v2132 = vadd.f32 %v2071, %v2131
    %2133 = vmatmul.f32.gmra.mxu0 %v2040
    %v2134 = vpop.f32.mrf.mxu0
    %v2135 = vadd.f32 %v2071, %v2134
    %2136 = vdwg.mxu0
    %2137 = vmatpush.msra.mxu0 0.0
    %2138 = vmatpush.msra.mxu0 0.0
    %2139 = vmatpush.msra.mxu0 0.0
    %2140 = vmatpush.msra.mxu0 0.0
    %2141 = vmatpush.msra.mxu0 %v2069
    %2142 = vmatpush.msra.mxu0 %v2068
    %2143 = vmatpush.msra.mxu0 %v2067
    %2144 = vmatpush.msra.mxu0 %v2066
    %2145 = vmatpush.msra.mxu0 %v2065
    %2146 = vmatpush.msra.mxu0 %v2064
    %2147 = vmatpush.msra.mxu0 %v2063
    %2148 = vmatpush.msra.mxu0 %v2062
    %2149 = vmatpush.msra.mxu0 %v2061
    %2150 = vmatpush.msra.mxu0 %v2060
    %2151 = vmatpush.msra.mxu0 %v2059
    %2152 = vmatpush.msra.mxu0 %v2058
    %2153 = vmatmul.f32.gmra.mxu0 %v2073
    %v2154 = vpop.f32.mrf.mxu0
    %v2155 = vadd.f32 %v2114, %v2154
    %2156 = vmatmul.f32.gmra.mxu0 %v2076
    %v2157 = vpop.f32.mrf.mxu0
    %v2158 = vadd.f32 %v2117, %v2157
    %2159 = vmatmul.f32.gmra.mxu0 %v2079
    %v2160 = vpop.f32.mrf.mxu0
    %v2161 = vadd.f32 %v2120, %v2160
    %2162 = vmatmul.f32.gmra.mxu0 %v2082
    %v2163 = vpop.f32.mrf.mxu0
    %v2164 = vadd.f32 %v2123, %v2163
    %2165 = vmatmul.f32.gmra.mxu0 %v2085
    %v2166 = vpop.f32.mrf.mxu0
    %v2167 = vadd.f32 %v2126, %v2166
    %2168 = vmatmul.f32.gmra.mxu0 %v2088
    %v2169 = vpop.f32.mrf.mxu0
    %v2170 = vadd.f32 %v2129, %v2169
    %2171 = vmatmul.f32.gmra.mxu0 %v2091
    %v2172 = vpop.f32.mrf.mxu0
    %v2173 = vadd.f32 %v2132, %v2172
    %2174 = vmatmul.f32.gmra.mxu0 %v2094
    %v2175 = vpop.f32.mrf.mxu0
    %v2176 = vadd.f32 %v2135, %v2175
    %2177 = vdwg.mxu0
    %v2178 = vperm.slane %v2070, 1
    %v2179 = vmul.f32 %v2155, %v2178
    %v2180 = vmul.f32 %v2158, %v2178
    %v2181 = vmul.f32 %v2161, %v2178
    %v2182 = vmul.f32 %v2164, %v2178
    %v2183 = vmul.f32 %v2167, %v2178
    %v2184 = vmul.f32 %v2170, %v2178
    %v2185 = vmul.f32 %v2173, %v2178
    %v2186 = vmul.f32 %v2176, %v2178
    %v2187 = vperm.slane %v2070, 2
    %v2188 = vadd.f32 %v2179, %v2187
    %v2189 = vadd.f32 %v2180, %v2187
    %v2190 = vadd.f32 %v2181, %v2187
    %v2191 = vadd.f32 %v2182, %v2187
    %v2192 = vadd.f32 %v2183, %v2187
    %v2193 = vadd.f32 %v2184, %v2187
    %v2194 = vadd.f32 %v2185, %v2187
    %v2195 = vadd.f32 %v2186, %v2187
    %2196 = vst.msk [vmem:[#allocation5 + $0x8] sm:$0xff] %vm33, %v2188
    %2197 = vst.msk [vmem:[#allocation5 + $0x10] sm:$0xff] %vm33, %v2189
    %2198 = vst.msk [vmem:[#allocation5 + $0x18] sm:$0xff] %vm33, %v2190
    %2199 = vst.msk [vmem:[#allocation5 + $0x20] sm:$0xff] %vm33, %v2191
    %2200 = vst.msk [vmem:[#allocation5 + $0x28] sm:$0xff] %vm33, %v2192
    %2201 = vst.msk [vmem:[#allocation5 + $0x30] sm:$0xff] %vm33, %v2193
    %2202 = vst.msk [vmem:[#allocation5 + $0x38] sm:$0xff] %vm33, %v2194
    %2203 = vst.msk [vmem:[#allocation5 + $0x40] sm:$0xff] %vm33, %v2195
    %v2204 = vld [vmem:[#allocation5 + $0x8] sm:$0xff]
    %v2205 = vld [vmem:[#allocation5 + $0x10] sm:$0xff]
    %v2206 = vld [vmem:[#allocation5 + $0x18] sm:$0xff]
    %v2207 = vld [vmem:[#allocation5 + $0x20] sm:$0xff]
    %v2208 = vld [vmem:[#allocation5 + $0x28] sm:$0xff]
    %v2209 = vld [vmem:[#allocation5 + $0x30] sm:$0xff]
    %v2210 = vld [vmem:[#allocation5 + $0x38] sm:$0xff]
    %v2211 = vld [vmem:[#allocation5 + $0x40] sm:$0xff]
    %v2212 = vld [vmem:[%s1 + $0x720] sm:$0xff]
    %v2213 = vld [vmem:[%s1 + $0x728] sm:$0xff]
    %v2214 = vld [vmem:[%s1 + $0x730] sm:$0xff]
    %v2215 = vld [vmem:[%s1 + $0x738] sm:$0xff]
    %v2216 = vld [vmem:[%s1 + $0x740] sm:$0xff]
    %v2217 = vld [vmem:[%s1 + $0x748] sm:$0xff]
    %v2218 = vld [vmem:[%s1 + $0x750] sm:$0xff]
    %v2219 = vld [vmem:[%s1 + $0x758] sm:$0xff]
    %v2220 = vld [vmem:[%s1 + $0x760] sm:$0xff]
    %v2221 = vld [vmem:[%s1 + $0x768] sm:$0xff]
    %v2222 = vld [vmem:[%s1 + $0x770] sm:$0xff]
    %v2223 = vld [vmem:[%s1 + $0x778] sm:$0xff]
    %v2224 = vld [vmem:[%s1 + $0x780] sm:$0xff]
    %v2225 = vld [vmem:[%s1 + $0x788] sm:$0xff]
    %v2226 = vld [vmem:[%s1 + $0x790] sm:$0xff]
    %v2227 = vld [vmem:[%s1 + $0x798] sm:$0xff]
    %v2228 = vld [vmem:[%s1 + $0x7a0] sm:$0xff]
    %v2229 = vld [vmem:[%s1 + $0x7a8] sm:$0xff]
    %v2230 = vld [vmem:[%s1 + $0x7b0] sm:$0xff]
    %v2231 = vld [vmem:[%s1 + $0x7b8] sm:$0xff]
    %v2232 = vld [vmem:[%s1 + $0x7c0] sm:$0xff]
    %v2233 = vld [vmem:[%s1 + $0x7c8] sm:$0xff]
    %v2234 = vld [vmem:[%s1 + $0x7d0] sm:$0xff]
    %v2235 = vld [vmem:[%s1 + $0x7d8] sm:$0xff]
    %v2236 = vld [vmem:[%s1 + $0x7e0] sm:$0xff]
    %v2237 = vld [vmem:[%s1 + $0x7e8] sm:$0xff]
    %v2238 = vld [vmem:[%s1 + $0x7f0] sm:$0xff]
    %v2239 = vld [vmem:[%s1 + $0x7f8] sm:$0xff]
    %v2240 = vld [vmem:[#allocation5 + $0xc] sm:$0xff]
    %v2241 = vld [vmem:[#allocation5 + $0x14] sm:$0xff]
    %v2242 = vld [vmem:[#allocation5 + $0x1c] sm:$0xff]
    %v2243 = vld [vmem:[#allocation5 + $0x24] sm:$0xff]
    %v2244 = vld [vmem:[#allocation5 + $0x2c] sm:$0xff]
    %v2245 = vld [vmem:[#allocation5 + $0x34] sm:$0xff]
    %v2246 = vld [vmem:[#allocation5 + $0x3c] sm:$0xff]
    %v2247 = vld [vmem:[#allocation5 + $0x44] sm:$0xff]
    %v2248 = vld [vmem:[%s1 + $0x800] sm:$0xff]
    %v2249 = vld [vmem:[%s1 + $0x808] sm:$0xff]
    %v2250 = vld [vmem:[%s1 + $0x810] sm:$0xff]
    %v2251 = vld [vmem:[%s1 + $0x818] sm:$0xff]
    %v2252 = vld [vmem:[%s1 + $0x820] sm:$0xff]
    %v2253 = vld [vmem:[%s1 + $0x828] sm:$0xff]
    %v2254 = vld [vmem:[%s1 + $0x830] sm:$0xff]
    %v2255 = vld [vmem:[%s1 + $0x838] sm:$0xff]
    %v2256 = vld [vmem:[%s1 + $0x840] sm:$0xff]
    %v2257 = vld [vmem:[%s1 + $0x848] sm:$0xff]
    %v2258 = vld [vmem:[%s1 + $0x850] sm:$0xff]
    %v2259 = vld [vmem:[%s1 + $0x858] sm:$0xff]
    %v2260 = vld [vmem:[%s1 + $0x860] sm:$0xff]
    %v2261 = vld [vmem:[%s1 + $0x868] sm:$0xff]
    %v2262 = vld [vmem:[%s1 + $0x870] sm:$0xff]
    %v2263 = vld [vmem:[%s1 + $0x878] sm:$0xff]
    %v2264 = vld [vmem:[%s1 + $0x880] sm:$0xff]
    %v2265 = vld [vmem:[%s1 + $0x888] sm:$0xff]
    %v2266 = vld [vmem:[%s1 + $0x890] sm:$0xff]
    %v2267 = vld [vmem:[%s1 + $0x898] sm:$0xff]
    %v2268 = vld [vmem:[%s1 + $0x8a0] sm:$0xff]
    %v2269 = vld [vmem:[%s1 + $0x8a8] sm:$0xff]
    %v2270 = vld [vmem:[%s1 + $0x8b0] sm:$0xff]
    %v2271 = vld [vmem:[%s1 + $0x8b8] sm:$0xff]
    %v2272 = vld [vmem:[%s1 + $0x8c0] sm:$0xff]
    %v2273 = vld [vmem:[%s1 + $0x8c8] sm:$0xff]
    %v2274 = vld [vmem:[%s1 + $0x8d0] sm:$0xff]
    %v2275 = vld [vmem:[%s1 + $0x8d8] sm:$0xff]
    %v2277 = vsel %vm33, %v2240, 0
    %v2280 = vsel %vm33, %v2241, 0
    %v2283 = vsel %vm33, %v2242, 0
    %v2286 = vsel %vm33, %v2243, 0
    %v2289 = vsel %vm33, %v2244, 0
    %v2292 = vsel %vm33, %v2245, 0
    %v2295 = vsel %vm33, %v2246, 0
    %v2298 = vsel %vm33, %v2247, 0
    %2300 = vmatpush.msra.mxu0 0.0
    %2301 = vmatpush.msra.mxu0 0.0
    %2302 = vmatpush.msra.mxu0 %v2274
    %2303 = vmatpush.msra.mxu0 %v2272
    %2304 = vmatpush.msra.mxu0 %v2270
    %2305 = vmatpush.msra.mxu0 %v2268
    %2306 = vmatpush.msra.mxu0 %v2266
    %2307 = vmatpush.msra.mxu0 %v2264
    %2308 = vmatpush.msra.mxu0 %v2262
    %2309 = vmatpush.msra.mxu0 %v2260
    %2310 = vmatpush.msra.mxu0 %v2258
    %2311 = vmatpush.msra.mxu0 %v2256
    %2312 = vmatpush.msra.mxu0 %v2254
    %2313 = vmatpush.msra.mxu0 %v2252
    %2314 = vmatpush.msra.mxu0 %v2250
    %2315 = vmatpush.msra.mxu0 %v2248
    %2316 = vmatmul.f32.gmra.mxu0 %v2277
    %v2317 = vpop.f32.mrf.mxu0
    %v2318 = vadd.f32 0.0, %v2317
    %2319 = vmatmul.f32.gmra.mxu0 %v2280
    %v2320 = vpop.f32.mrf.mxu0
    %v2321 = vadd.f32 0.0, %v2320
    %2322 = vmatmul.f32.gmra.mxu0 %v2283
    %v2323 = vpop.f32.mrf.mxu0
    %v2324 = vadd.f32 0.0, %v2323
    %2325 = vmatmul.f32.gmra.mxu0 %v2286
    %v2326 = vpop.f32.mrf.mxu0
    %v2327 = vadd.f32 0.0, %v2326
    %2328 = vmatmul.f32.gmra.mxu0 %v2289
    %v2329 = vpop.f32.mrf.mxu0
    %v2330 = vadd.f32 0.0, %v2329
    %2331 = vmatmul.f32.gmra.mxu0 %v2292
    %v2332 = vpop.f32.mrf.mxu0
    %v2333 = vadd.f32 0.0, %v2332
    %2334 = vmatmul.f32.gmra.mxu0 %v2295
    %v2335 = vpop.f32.mrf.mxu0
    %v2336 = vadd.f32 0.0, %v2335
    %2337 = vmatmul.f32.gmra.mxu0 %v2298
    %v2338 = vpop.f32.mrf.mxu0
    %v2339 = vadd.f32 0.0, %v2338
    %2340 = vdwg.mxu0
    %2341 = vmatpush.msra.mxu0 0.0
    %2342 = vmatpush.msra.mxu0 0.0
    %2343 = vmatpush.msra.mxu0 %v2275
    %2344 = vmatpush.msra.mxu0 %v2273
    %2345 = vmatpush.msra.mxu0 %v2271
    %2346 = vmatpush.msra.mxu0 %v2269
    %2347 = vmatpush.msra.mxu0 %v2267
    %2348 = vmatpush.msra.mxu0 %v2265
    %2349 = vmatpush.msra.mxu0 %v2263
    %2350 = vmatpush.msra.mxu0 %v2261
    %2351 = vmatpush.msra.mxu0 %v2259
    %2352 = vmatpush.msra.mxu0 %v2257
    %2353 = vmatpush.msra.mxu0 %v2255
    %2354 = vmatpush.msra.mxu0 %v2253
    %2355 = vmatpush.msra.mxu0 %v2251
    %2356 = vmatpush.msra.mxu0 %v2249
    %2357 = vmatmul.f32.gmra.mxu0 %v2277
    %v2358 = vpop.f32.mrf.mxu0
    %v2359 = vadd.f32 0.0, %v2358
    %2360 = vmatmul.f32.gmra.mxu0 %v2280
    %v2361 = vpop.f32.mrf.mxu0
    %v2362 = vadd.f32 0.0, %v2361
    %2363 = vmatmul.f32.gmra.mxu0 %v2283
    %v2364 = vpop.f32.mrf.mxu0
    %v2365 = vadd.f32 0.0, %v2364
    %2366 = vmatmul.f32.gmra.mxu0 %v2286
    %v2367 = vpop.f32.mrf.mxu0
    %v2368 = vadd.f32 0.0, %v2367
    %2369 = vmatmul.f32.gmra.mxu0 %v2289
    %v2370 = vpop.f32.mrf.mxu0
    %v2371 = vadd.f32 0.0, %v2370
    %2372 = vmatmul.f32.gmra.mxu0 %v2292
    %v2373 = vpop.f32.mrf.mxu0
    %v2374 = vadd.f32 0.0, %v2373
    %2375 = vmatmul.f32.gmra.mxu0 %v2295
    %v2376 = vpop.f32.mrf.mxu0
    %v2377 = vadd.f32 0.0, %v2376
    %2378 = vmatmul.f32.gmra.mxu0 %v2298
    %v2379 = vpop.f32.mrf.mxu0
    %v2380 = vadd.f32 0.0, %v2379
    %2381 = vdwg.mxu0
    %v2383 = vsel %vm33, %v2204, 0
    %v2386 = vsel %vm33, %v2205, 0
    %v2389 = vsel %vm33, %v2206, 0
    %v2392 = vsel %vm33, %v2207, 0
    %v2395 = vsel %vm33, %v2208, 0
    %v2398 = vsel %vm33, %v2209, 0
    %v2401 = vsel %vm33, %v2210, 0
    %v2404 = vsel %vm33, %v2211, 0
    %2406 = vmatpush.msra.mxu0 0.0
    %2407 = vmatpush.msra.mxu0 0.0
    %2408 = vmatpush.msra.mxu0 %v2238
    %2409 = vmatpush.msra.mxu0 %v2236
    %2410 = vmatpush.msra.mxu0 %v2234
    %2411 = vmatpush.msra.mxu0 %v2232
    %2412 = vmatpush.msra.mxu0 %v2230
    %2413 = vmatpush.msra.mxu0 %v2228
    %2414 = vmatpush.msra.mxu0 %v2226
    %2415 = vmatpush.msra.mxu0 %v2224
    %2416 = vmatpush.msra.mxu0 %v2222
    %2417 = vmatpush.msra.mxu0 %v2220
    %2418 = vmatpush.msra.mxu0 %v2218
    %2419 = vmatpush.msra.mxu0 %v2216
    %2420 = vmatpush.msra.mxu0 %v2214
    %2421 = vmatpush.msra.mxu0 %v2212
    %2422 = vmatmul.f32.gmra.mxu0 %v2383
    %v2423 = vpop.f32.mrf.mxu0
    %v2424 = vadd.f32 %v2318, %v2423
    %2425 = vmatmul.f32.gmra.mxu0 %v2386
    %v2426 = vpop.f32.mrf.mxu0
    %v2427 = vadd.f32 %v2321, %v2426
    %2428 = vmatmul.f32.gmra.mxu0 %v2389
    %v2429 = vpop.f32.mrf.mxu0
    %v2430 = vadd.f32 %v2324, %v2429
    %2431 = vmatmul.f32.gmra.mxu0 %v2392
    %v2432 = vpop.f32.mrf.mxu0
    %v2433 = vadd.f32 %v2327, %v2432
    %2434 = vmatmul.f32.gmra.mxu0 %v2395
    %v2435 = vpop.f32.mrf.mxu0
    %v2436 = vadd.f32 %v2330, %v2435
    %2437 = vmatmul.f32.gmra.mxu0 %v2398
    %v2438 = vpop.f32.mrf.mxu0
    %v2439 = vadd.f32 %v2333, %v2438
    %2440 = vmatmul.f32.gmra.mxu0 %v2401
    %v2441 = vpop.f32.mrf.mxu0
    %v2442 = vadd.f32 %v2336, %v2441
    %2443 = vmatmul.f32.gmra.mxu0 %v2404
    %v2444 = vpop.f32.mrf.mxu0
    %v2445 = vadd.f32 %v2339, %v2444
    %2446 = vdwg.mxu0
    %2447 = vmatpush.msra.mxu0 0.0
    %2448 = vmatpush.msra.mxu0 0.0
    %2449 = vmatpush.msra.mxu0 %v2239
    %2450 = vmatpush.msra.mxu0 %v2237
    %2451 = vmatpush.msra.mxu0 %v2235
    %2452 = vmatpush.msra.mxu0 %v2233
    %2453 = vmatpush.msra.mxu0 %v2231
    %2454 = vmatpush.msra.mxu0 %v2229
    %2455 = vmatpush.msra.mxu0 %v2227
    %2456 = vmatpush.msra.mxu0 %v2225
    %2457 = vmatpush.msra.mxu0 %v2223
    %2458 = vmatpush.msra.mxu0 %v2221
    %2459 = vmatpush.msra.mxu0 %v2219
    %2460 = vmatpush.msra.mxu0 %v2217
    %2461 = vmatpush.msra.mxu0 %v2215
    %2462 = vmatpush.msra.mxu0 %v2213
    %2463 = vmatmul.f32.gmra.mxu0 %v2383
    %v2464 = vpop.f32.mrf.mxu0
    %v2465 = vadd.f32 %v2359, %v2464
    %2466 = vmatmul.f32.gmra.mxu0 %v2386
    %v2467 = vpop.f32.mrf.mxu0
    %v2468 = vadd.f32 %v2362, %v2467
    %2469 = vmatmul.f32.gmra.mxu0 %v2389
    %v2470 = vpop.f32.mrf.mxu0
    %v2471 = vadd.f32 %v2365, %v2470
    %2472 = vmatmul.f32.gmra.mxu0 %v2392
    %v2473 = vpop.f32.mrf.mxu0
    %v2474 = vadd.f32 %v2368, %v2473
    %2475 = vmatmul.f32.gmra.mxu0 %v2395
    %v2476 = vpop.f32.mrf.mxu0
    %v2477 = vadd.f32 %v2371, %v2476
    %2478 = vmatmul.f32.gmra.mxu0 %v2398
    %v2479 = vpop.f32.mrf.mxu0
    %v2480 = vadd.f32 %v2374, %v2479
    %2481 = vmatmul.f32.gmra.mxu0 %v2401
    %v2482 = vpop.f32.mrf.mxu0
    %v2483 = vadd.f32 %v2377, %v2482
    %2484 = vmatmul.f32.gmra.mxu0 %v2404
    %v2485 = vpop.f32.mrf.mxu0
    %v2486 = vadd.f32 %v2380, %v2485
    %2487 = vdwg.mxu0
    %v2488 = vld [vmem:[#allocation5 + $0x10] sm:$0xff]
    %v2489 = vld [vmem:[#allocation5 + $0x18] sm:$0xff]
    %v2490 = vld [vmem:[#allocation5 + $0x20] sm:$0xff]
    %v2491 = vld [vmem:[#allocation5 + $0x28] sm:$0xff]
    %v2492 = vld [vmem:[#allocation5 + $0x30] sm:$0xff]
    %v2493 = vld [vmem:[#allocation5 + $0x38] sm:$0xff]
    %v2494 = vld [vmem:[#allocation5 + $0x40] sm:$0xff]
    %v2495 = vld [vmem:[#allocation5 + $0x48] sm:$0xff]
    %v2496 = vld [vmem:[%s1 + $0x8e0] sm:$0xff]
    %v2497 = vld [vmem:[%s1 + $0x8e8] sm:$0xff]
    %v2498 = vld [vmem:[%s1 + $0x8f0] sm:$0xff]
    %v2499 = vld [vmem:[%s1 + $0x8f8] sm:$0xff]
    %v2500 = vld [vmem:[%s1 + $0x900] sm:$0xff]
    %v2501 = vld [vmem:[%s1 + $0x908] sm:$0xff]
    %v2502 = vld [vmem:[%s1 + $0x910] sm:$0xff]
    %v2503 = vld [vmem:[%s1 + $0x918] sm:$0xff]
    %v2504 = vld [vmem:[%s1 + $0x920] sm:$0xff]
    %v2505 = vld [vmem:[%s1 + $0x928] sm:$0xff]
    %v2506 = vld [vmem:[%s1 + $0x930] sm:$0xff]
    %v2507 = vld [vmem:[%s1 + $0x938] sm:$0xff]
    %v2508 = vld [vmem:[%s1 + $0x940] sm:$0xff]
    %v2509 = vld [vmem:[%s1 + $0x948] sm:$0xff]
    %v2510 = vld [vmem:[%s1 + $0x950] sm:$0xff]
    %v2511 = vld [vmem:[%s1 + $0x958] sm:$0xff]
    %v2512 = vld [vmem:[%s1 + $0x960] sm:$0xff]
    %v2513 = vld [vmem:[%s1 + $0x968] sm:$0xff]
    %v2514 = vld [vmem:[%s1 + $0x970] sm:$0xff]
    %v2515 = vld [vmem:[%s1 + $0x978] sm:$0xff]
    %v2516 = vld [vmem:[%s1 + $0x980] sm:$0xff]
    %v2517 = vld [vmem:[%s1 + $0x988] sm:$0xff]
    %v2518 = vld [vmem:[%s1 + $0x990] sm:$0xff]
    %v2519 = vld [vmem:[%s1 + $0x998] sm:$0xff]
    %v2520 = vld [vmem:[%s1 + $0x9a0] sm:$0xff]
    %v2521 = vld [vmem:[%s1 + $0x9a8] sm:$0xff]
    %v2522 = vld [vmem:[%s1 + $0x9b0] sm:$0xff]
    %v2523 = vld [vmem:[%s1 + $0x9b8] sm:$0xff]
    %v2525 = vsel %vm33, %v2488, 0
    %v2528 = vsel %vm33, %v2489, 0
    %v2531 = vsel %vm33, %v2490, 0
    %v2534 = vsel %vm33, %v2491, 0
    %v2537 = vsel %vm33, %v2492, 0
    %v2540 = vsel %vm33, %v2493, 0
    %v2543 = vsel %vm33, %v2494, 0
    %v2546 = vsel %vm33, %v2495, 0
    %2548 = vmatpush.msra.mxu0 0.0
    %2549 = vmatpush.msra.mxu0 0.0
    %2550 = vmatpush.msra.mxu0 %v2522
    %2551 = vmatpush.msra.mxu0 %v2520
    %2552 = vmatpush.msra.mxu0 %v2518
    %2553 = vmatpush.msra.mxu0 %v2516
    %2554 = vmatpush.msra.mxu0 %v2514
    %2555 = vmatpush.msra.mxu0 %v2512
    %2556 = vmatpush.msra.mxu0 %v2510
    %2557 = vmatpush.msra.mxu0 %v2508
    %2558 = vmatpush.msra.mxu0 %v2506
    %2559 = vmatpush.msra.mxu0 %v2504
    %2560 = vmatpush.msra.mxu0 %v2502
    %2561 = vmatpush.msra.mxu0 %v2500
    %2562 = vmatpush.msra.mxu0 %v2498
    %2563 = vmatpush.msra.mxu0 %v2496
    %2564 = vmatmul.f32.gmra.mxu0 %v2525
    %v2565 = vpop.f32.mrf.mxu0
    %v2566 = vadd.f32 0.0, %v2565
    %2567 = vmatmul.f32.gmra.mxu0 %v2528
    %v2568 = vpop.f32.mrf.mxu0
    %v2569 = vadd.f32 0.0, %v2568
    %2570 = vmatmul.f32.gmra.mxu0 %v2531
    %v2571 = vpop.f32.mrf.mxu0
    %v2572 = vadd.f32 0.0, %v2571
    %2573 = vmatmul.f32.gmra.mxu0 %v2534
    %v2574 = vpop.f32.mrf.mxu0
    %v2575 = vadd.f32 0.0, %v2574
    %2576 = vmatmul.f32.gmra.mxu0 %v2537
    %v2577 = vpop.f32.mrf.mxu0
    %v2578 = vadd.f32 0.0, %v2577
    %2579 = vmatmul.f32.gmra.mxu0 %v2540
    %v2580 = vpop.f32.mrf.mxu0
    %v2581 = vadd.f32 0.0, %v2580
    %2582 = vmatmul.f32.gmra.mxu0 %v2543
    %v2583 = vpop.f32.mrf.mxu0
    %v2584 = vadd.f32 0.0, %v2583
    %2585 = vmatmul.f32.gmra.mxu0 %v2546
    %v2586 = vpop.f32.mrf.mxu0
    %v2587 = vadd.f32 0.0, %v2586
    %2588 = vdwg.mxu0
    %2589 = vmatpush.msra.mxu0 0.0
    %2590 = vmatpush.msra.mxu0 0.0
    %2591 = vmatpush.msra.mxu0 %v2523
    %2592 = vmatpush.msra.mxu0 %v2521
    %2593 = vmatpush.msra.mxu0 %v2519
    %2594 = vmatpush.msra.mxu0 %v2517
    %2595 = vmatpush.msra.mxu0 %v2515
    %2596 = vmatpush.msra.mxu0 %v2513
    %2597 = vmatpush.msra.mxu0 %v2511
    %2598 = vmatpush.msra.mxu0 %v2509
    %2599 = vmatpush.msra.mxu0 %v2507
    %2600 = vmatpush.msra.mxu0 %v2505
    %2601 = vmatpush.msra.mxu0 %v2503
    %2602 = vmatpush.msra.mxu0 %v2501
    %2603 = vmatpush.msra.mxu0 %v2499
    %2604 = vmatpush.msra.mxu0 %v2497
    %2605 = vmatmul.f32.gmra.mxu0 %v2525
    %v2606 = vpop.f32.mrf.mxu0
    %v2607 = vadd.f32 0.0, %v2606
    %2608 = vmatmul.f32.gmra.mxu0 %v2528
    %v2609 = vpop.f32.mrf.mxu0
    %v2610 = vadd.f32 0.0, %v2609
    %2611 = vmatmul.f32.gmra.mxu0 %v2531
    %v2612 = vpop.f32.mrf.mxu0
    %v2613 = vadd.f32 0.0, %v2612
    %2614 = vmatmul.f32.gmra.mxu0 %v2534
    %v2615 = vpop.f32.mrf.mxu0
    %v2616 = vadd.f32 0.0, %v2615
    %2617 = vmatmul.f32.gmra.mxu0 %v2537
    %v2618 = vpop.f32.mrf.mxu0
    %v2619 = vadd.f32 0.0, %v2618
    %2620 = vmatmul.f32.gmra.mxu0 %v2540
    %v2621 = vpop.f32.mrf.mxu0
    %v2622 = vadd.f32 0.0, %v2621
    %2623 = vmatmul.f32.gmra.mxu0 %v2543
    %v2624 = vpop.f32.mrf.mxu0
    %v2625 = vadd.f32 0.0, %v2624
    %2626 = vmatmul.f32.gmra.mxu0 %v2546
    %v2627 = vpop.f32.mrf.mxu0
    %v2628 = vadd.f32 0.0, %v2627
    %2629 = vdwg.mxu0
    %v2630 = vadd.f32 %v2424, %v2566
    %v2631 = vadd.f32 %v2465, %v2607
    %v2632 = vadd.f32 %v2427, %v2569
    %v2633 = vadd.f32 %v2468, %v2610
    %v2634 = vadd.f32 %v2430, %v2572
    %v2635 = vadd.f32 %v2471, %v2613
    %v2636 = vadd.f32 %v2433, %v2575
    %v2637 = vadd.f32 %v2474, %v2616
    %v2638 = vadd.f32 %v2436, %v2578
    %v2639 = vadd.f32 %v2477, %v2619
    %v2640 = vadd.f32 %v2439, %v2581
    %v2641 = vadd.f32 %v2480, %v2622
    %v2642 = vadd.f32 %v2442, %v2584
    %v2643 = vadd.f32 %v2483, %v2625
    %v2644 = vadd.f32 %v2445, %v2587
    %v2645 = vadd.f32 %v2486, %v2628
    %v2646 = vld [vmem:[%s1 + $0x9c0] sm:$0x7]
    %v2647 = vld [vmem:[%s1 + $0x9c8] sm:$0x7]
    %v2648 = vperm.slane %v2646, 0
    %v2649 = vperm.slane %v2647, 0
    %v2650 = vadd.f32 %v2630, %v2648
    %v2651 = vadd.f32 %v2631, %v2649
    %v2652 = vadd.f32 %v2632, %v2648
    %v2653 = vadd.f32 %v2633, %v2649
    %v2654 = vadd.f32 %v2634, %v2648
    %v2655 = vadd.f32 %v2635, %v2649
    %v2656 = vadd.f32 %v2636, %v2648
    %v2657 = vadd.f32 %v2637, %v2649
    %v2658 = vadd.f32 %v2638, %v2648
    %v2659 = vadd.f32 %v2639, %v2649
    %v2660 = vadd.f32 %v2640, %v2648
    %v2661 = vadd.f32 %v2641, %v2649
    %v2662 = vadd.f32 %v2642, %v2648
    %v2663 = vadd.f32 %v2643, %v2649
    %v2664 = vadd.f32 %v2644, %v2648
    %v2665 = vadd.f32 %v2645, %v2649
    %v2666 = vmax.f32 %v2650, 0.0
    %v2667 = vmax.f32 %v2651, 0.0
    %v2668 = vmax.f32 %v2652, 0.0
    %v2669 = vmax.f32 %v2653, 0.0
    %v2670 = vmax.f32 %v2654, 0.0
    %v2671 = vmax.f32 %v2655, 0.0
    %v2672 = vmax.f32 %v2656, 0.0
    %v2673 = vmax.f32 %v2657, 0.0
    %v2674 = vmax.f32 %v2658, 0.0
    %v2675 = vmax.f32 %v2659, 0.0
    %v2676 = vmax.f32 %v2660, 0.0
    %v2677 = vmax.f32 %v2661, 0.0
    %v2678 = vmax.f32 %v2662, 0.0
    %v2679 = vmax.f32 %v2663, 0.0
    %v2680 = vmax.f32 %v2664, 0.0
    %v2681 = vmax.f32 %v2665, 0.0
    %v2682 = vperm.slane %v2646, 1
    %v2683 = vperm.slane %v2647, 1
    %v2684 = vmul.f32 %v2666, %v2682
    %v2685 = vmul.f32 %v2667, %v2683
    %v2686 = vmul.f32 %v2668, %v2682
    %v2687 = vmul.f32 %v2669, %v2683
    %v2688 = vmul.f32 %v2670, %v2682
    %v2689 = vmul.f32 %v2671, %v2683
    %v2690 = vmul.f32 %v2672, %v2682
    %v2691 = vmul.f32 %v2673, %v2683
    %v2692 = vmul.f32 %v2674, %v2682
    %v2693 = vmul.f32 %v2675, %v2683
    %v2694 = vmul.f32 %v2676, %v2682
    %v2695 = vmul.f32 %v2677, %v2683
    %v2696 = vmul.f32 %v2678, %v2682
    %v2697 = vmul.f32 %v2679, %v2683
    %v2698 = vmul.f32 %v2680, %v2682
    %v2699 = vmul.f32 %v2681, %v2683
    %v2700 = vperm.slane %v2646, 2
    %v2701 = vperm.slane %v2647, 2
    %v2702 = vadd.f32 %v2684, %v2700
    %v2703 = vadd.f32 %v2685, %v2701
    %v2704 = vadd.f32 %v2686, %v2700
    %v2705 = vadd.f32 %v2687, %v2701
    %v2706 = vadd.f32 %v2688, %v2700
    %v2707 = vadd.f32 %v2689, %v2701
    %v2708 = vadd.f32 %v2690, %v2700
    %v2709 = vadd.f32 %v2691, %v2701
    %v2710 = vadd.f32 %v2692, %v2700
    %v2711 = vadd.f32 %v2693, %v2701
    %v2712 = vadd.f32 %v2694, %v2700
    %v2713 = vadd.f32 %v2695, %v2701
    %v2714 = vadd.f32 %v2696, %v2700
    %v2715 = vadd.f32 %v2697, %v2701
    %v2716 = vadd.f32 %v2698, %v2700
    %v2717 = vadd.f32 %v2699, %v2701
    %2718 = vst [vmem:[#allocation6 + $0x10] sm:$0xff] %v2702
    %2719 = vst.msk [vmem:[#allocation6 + $0x18] sm:$0xff] %vm75, %v2703
    %2720 = vst [vmem:[#allocation6 + $0x20] sm:$0xff] %v2704
    %2721 = vst.msk [vmem:[#allocation6 + $0x28] sm:$0xff] %vm75, %v2705
    %2722 = vst [vmem:[#allocation6 + $0x30] sm:$0xff] %v2706
    %2723 = vst.msk [vmem:[#allocation6 + $0x38] sm:$0xff] %vm75, %v2707
    %2724 = vst [vmem:[#allocation6 + $0x40] sm:$0xff] %v2708
    %2725 = vst.msk [vmem:[#allocation6 + $0x48] sm:$0xff] %vm75, %v2709
    %2726 = vst [vmem:[#allocation6 + $0x50] sm:$0xff] %v2710
    %2727 = vst.msk [vmem:[#allocation6 + $0x58] sm:$0xff] %vm75, %v2711
    %2728 = vst [vmem:[#allocation6 + $0x60] sm:$0xff] %v2712
    %2729 = vst.msk [vmem:[#allocation6 + $0x68] sm:$0xff] %vm75, %v2713
    %2730 = vst [vmem:[#allocation6 + $0x70] sm:$0xff] %v2714
    %2731 = vst.msk [vmem:[#allocation6 + $0x78] sm:$0xff] %vm75, %v2715
    %2732 = vst [vmem:[#allocation6 + $0x80] sm:$0xff] %v2716
    %2733 = vst.msk [vmem:[#allocation6 + $0x88] sm:$0xff] %vm75, %v2717
    %v2734 = vld [vmem:[#allocation6 + $0x10] sm:$0xff]
    %v2735 = vld [vmem:[#allocation6 + $0x18] sm:$0xff]
    %v2736 = vld [vmem:[#allocation6 + $0x20] sm:$0xff]
    %v2737 = vld [vmem:[#allocation6 + $0x28] sm:$0xff]
    %v2738 = vld [vmem:[#allocation6 + $0x30] sm:$0xff]
    %v2739 = vld [vmem:[#allocation6 + $0x38] sm:$0xff]
    %v2740 = vld [vmem:[#allocation6 + $0x40] sm:$0xff]
    %v2741 = vld [vmem:[#allocation6 + $0x48] sm:$0xff]
    %v2742 = vld [vmem:[#allocation6 + $0x50] sm:$0xff]
    %v2743 = vld [vmem:[#allocation6 + $0x58] sm:$0xff]
    %v2744 = vld [vmem:[#allocation6 + $0x60] sm:$0xff]
    %v2745 = vld [vmem:[#allocation6 + $0x68] sm:$0xff]
    %v2746 = vld [vmem:[#allocation6 + $0x70] sm:$0xff]
    %v2747 = vld [vmem:[#allocation6 + $0x78] sm:$0xff]
    %v2748 = vld [vmem:[#allocation6 + $0x80] sm:$0xff]
    %v2749 = vld [vmem:[#allocation6 + $0x88] sm:$0xff]
    %v2750 = vld [vmem:[%s1 + $0x9d0] sm:$0xff]
    %v2751 = vld [vmem:[%s1 + $0x9e0] sm:$0xff]
    %v2752 = vld [vmem:[%s1 + $0x9f0] sm:$0xff]
    %v2753 = vld [vmem:[%s1 + $0xa00] sm:$0xff]
    %v2754 = vld [vmem:[%s1 + $0xa10] sm:$0xff]
    %v2755 = vld [vmem:[%s1 + $0xa20] sm:$0xff]
    %v2756 = vld [vmem:[%s1 + $0xa30] sm:$0xff]
    %v2757 = vld [vmem:[%s1 + $0xa40] sm:$0xff]
    %v2758 = vld [vmem:[%s1 + $0xa50] sm:$0xff]
    %v2759 = vld [vmem:[%s1 + $0xa60] sm:$0xff]
    %v2760 = vld [vmem:[%s1 + $0xa70] sm:$0xff]
    %v2761 = vld [vmem:[%s1 + $0xa80] sm:$0xff]
    %v2762 = vld [vmem:[%s1 + $0xa90] sm:$0xff]
    %v2763 = vld [vmem:[%s1 + $0xaa0] sm:$0xff]
    %v2764 = vld [vmem:[%s1 + $0xab0] sm:$0xff]
    %v2765 = vld [vmem:[%s1 + $0xac0] sm:$0xff]
    %v2766 = vld [vmem:[%s1 + $0xad0] sm:$0xff]
    %v2767 = vld [vmem:[%s1 + $0xae0] sm:$0xff]
    %v2768 = vld [vmem:[%s1 + $0xaf0] sm:$0xff]
    %v2769 = vld [vmem:[%s1 + $0xb00] sm:$0xff]
    %v2770 = vld [vmem:[#allocation6 + $0x10] sm:$0xf0]
    %v2771 = vld [vmem:[#allocation6 + $0x18] sm:$0xf0]
    %v2772 = vld [vmem:[#allocation6 + $0x90] sm:$0xf]
    %v2773 = vld [vmem:[#allocation6 + $0x98] sm:$0xf]
    %v2774 = vld [vmem:[%s1 + $0xb10] sm:$0xff]
    %v2775 = vld [vmem:[%s1 + $0xb20] sm:$0xff]
    %v2776 = vld [vmem:[%s1 + $0xb30] sm:$0xff]
    %v2777 = vld [vmem:[%s1 + $0xb40] sm:$0xff]
    %v2778 = vld [vmem:[%s1 + $0xb50] sm:$0xff]
    %v2779 = vld [vmem:[%s1 + $0xb60] sm:$0xff]
    %v2780 = vld [vmem:[%s1 + $0xb70] sm:$0xff]
    %v2781 = vld [vmem:[%s1 + $0xb80] sm:$0xff]
    %v2782 = vld [vmem:[%s1 + $0xb90] sm:$0xff]
    %v2783 = vld [vmem:[%s1 + $0xba0] sm:$0xff]
    %v2784 = vld [vmem:[%s1 + $0xbb0] sm:$0xff]
    %v2785 = vld [vmem:[%s1 + $0xbc0] sm:$0xff]
    %v2786 = vld [vmem:[%s1 + $0xbd0] sm:$0xff]
    %v2787 = vld [vmem:[%s1 + $0xbe0] sm:$0xff]
    %v2788 = vld [vmem:[%s1 + $0xbf0] sm:$0xff]
    %v2789 = vld [vmem:[%s1 + $0xc00] sm:$0xff]
    %v2790 = vld [vmem:[%s1 + $0xc10] sm:$0xff]
    %v2791 = vld [vmem:[%s1 + $0xc20] sm:$0xff]
    %v2792 = vld [vmem:[%s1 + $0xc30] sm:$0xff]
    %v2793 = vld [vmem:[%s1 + $0xc40] sm:$0xff]
    %vm2812 = vcmask 1043456
    %v2813 = vrot.slane %v2770, 4
    %v2814 = vrot.slane %v2736, 4
    %v2815 = vsel %vm2812, %v2813, %v2814
    %v2816 = vrot.slane %v2771, 4
    %v2817 = vrot.slane %v2737, 4
    %v2818 = vsel %vm2812, %v2816, %v2817
    %v2819 = vrot.slane %v2738, 4
    %v2820 = vsel %vm2812, %v2814, %v2819
    %v2821 = vrot.slane %v2739, 4
    %v2822 = vsel %vm2812, %v2817, %v2821
    %v2823 = vrot.slane %v2740, 4
    %v2824 = vsel %vm2812, %v2819, %v2823
    %v2825 = vrot.slane %v2741, 4
    %v2826 = vsel %vm2812, %v2821, %v2825
    %v2827 = vrot.slane %v2742, 4
    %v2828 = vsel %vm2812, %v2823, %v2827
    %v2829 = vrot.slane %v2743, 4
    %v2830 = vsel %vm2812, %v2825, %v2829
    %v2831 = vrot.slane %v2744, 4
    %v2832 = vsel %vm2812, %v2827, %v2831
    %v2833 = vrot.slane %v2745, 4
    %v2834 = vsel %vm2812, %v2829, %v2833
    %v2835 = vrot.slane %v2746, 4
    %v2836 = vsel %vm2812, %v2831, %v2835
    %v2837 = vrot.slane %v2747, 4
    %v2838 = vsel %vm2812, %v2833, %v2837
    %v2839 = vrot.slane %v2748, 4
    %v2840 = vsel %vm2812, %v2835, %v2839
    %v2841 = vrot.slane %v2749, 4
    %v2842 = vsel %vm2812, %v2837, %v2841
    %v2843 = vrot.slane %v2772, 4
    %v2844 = vsel %vm2812, %v2839, %v2843
    %v2845 = vrot.slane %v2773, 4
    %v2846 = vsel %vm2812, %v2841, %v2845
    %v2855 = vsel %vm75, %v2818, 0
    %v2857 = vsel %vm75, %v2822, 0
    %v2859 = vsel %vm75, %v2826, 0
    %v2861 = vsel %vm75, %v2830, 0
    %v2863 = vsel %vm75, %v2834, 0
    %v2865 = vsel %vm75, %v2838, 0
    %v2867 = vsel %vm75, %v2842, 0
    %v2869 = vsel %vm75, %v2846, 0
    %2871 = vmatpush.msra.mxu0 %v2789
    %2872 = vmatpush.msra.mxu0 %v2788
    %2873 = vmatpush.msra.mxu0 %v2787
    %2874 = vmatpush.msra.mxu0 %v2786
    %2875 = vmatpush.msra.mxu0 %v2785
    %2876 = vmatpush.msra.mxu0 %v2784
    %2877 = vmatpush.msra.mxu0 %v2783
    %2878 = vmatpush.msra.mxu0 %v2782
    %2879 = vmatpush.msra.mxu0 %v2781
    %2880 = vmatpush.msra.mxu0 %v2780
    %2881 = vmatpush.msra.mxu0 %v2779
    %2882 = vmatpush.msra.mxu0 %v2778
    %2883 = vmatpush.msra.mxu0 %v2777
    %2884 = vmatpush.msra.mxu0 %v2776
    %2885 = vmatpush.msra.mxu0 %v2775
    %2886 = vmatpush.msra.mxu0 %v2774
    %2887 = vmatmul.f32.gmra.mxu0 %v2815
    %v2888 = vpop.f32.mrf.mxu0
    %v2889 = vadd.f32 0.0, %v2888
    %2890 = vmatmul.f32.gmra.mxu0 %v2820
    %v2891 = vpop.f32.mrf.mxu0
    %v2892 = vadd.f32 0.0, %v2891
    %2893 = vmatmul.f32.gmra.mxu0 %v2824
    %v2894 = vpop.f32.mrf.mxu0
    %v2895 = vadd.f32 0.0, %v2894
    %2896 = vmatmul.f32.gmra.mxu0 %v2828
    %v2897 = vpop.f32.mrf.mxu0
    %v2898 = vadd.f32 0.0, %v2897
    %2899 = vmatmul.f32.gmra.mxu0 %v2832
    %v2900 = vpop.f32.mrf.mxu0
    %v2901 = vadd.f32 0.0, %v2900
    %2902 = vmatmul.f32.gmra.mxu0 %v2836
    %v2903 = vpop.f32.mrf.mxu0
    %v2904 = vadd.f32 0.0, %v2903
    %2905 = vmatmul.f32.gmra.mxu0 %v2840
    %v2906 = vpop.f32.mrf.mxu0
    %v2907 = vadd.f32 0.0, %v2906
    %2908 = vmatmul.f32.gmra.mxu0 %v2844
    %v2909 = vpop.f32.mrf.mxu0
    %v2910 = vadd.f32 0.0, %v2909
    %2911 = vdwg.mxu0
    %2912 = vmatpush.msra.mxu0 0.0
    %2913 = vmatpush.msra.mxu0 0.0
    %2914 = vmatpush.msra.mxu0 0.0
    %2915 = vmatpush.msra.mxu0 0.0
    %2916 = vmatpush.msra.mxu0 0.0
    %2917 = vmatpush.msra.mxu0 0.0
    %2918 = vmatpush.msra.mxu0 0.0
    %2919 = vmatpush.msra.mxu0 0.0
    %2920 = vmatpush.msra.mxu0 0.0
    %2921 = vmatpush.msra.mxu0 0.0
    %2922 = vmatpush.msra.mxu0 0.0
    %2923 = vmatpush.msra.mxu0 0.0
    %2924 = vmatpush.msra.mxu0 %v2793
    %2925 = vmatpush.msra.mxu0 %v2792
    %2926 = vmatpush.msra.mxu0 %v2791
    %2927 = vmatpush.msra.mxu0 %v2790
    %2928 = vmatmul.f32.gmra.mxu0 %v2855
    %v2929 = vpop.f32.mrf.mxu0
    %v2930 = vadd.f32 %v2889, %v2929
    %2931 = vmatmul.f32.gmra.mxu0 %v2857
    %v2932 = vpop.f32.mrf.mxu0
    %v2933 = vadd.f32 %v2892, %v2932
    %2934 = vmatmul.f32.gmra.mxu0 %v2859
    %v2935 = vpop.f32.mrf.mxu0
    %v2936 = vadd.f32 %v2895, %v2935
    %2937 = vmatmul.f32.gmra.mxu0 %v2861
    %v2938 = vpop.f32.mrf.mxu0
    %v2939 = vadd.f32 %v2898, %v2938
    %2940 = vmatmul.f32.gmra.mxu0 %v2863
    %v2941 = vpop.f32.mrf.mxu0
    %v2942 = vadd.f32 %v2901, %v2941
    %2943 = vmatmul.f32.gmra.mxu0 %v2865
    %v2944 = vpop.f32.mrf.mxu0
    %v2945 = vadd.f32 %v2904, %v2944
    %2946 = vmatmul.f32.gmra.mxu0 %v2867
    %v2947 = vpop.f32.mrf.mxu0
    %v2948 = vadd.f32 %v2907, %v2947
    %2949 = vmatmul.f32.gmra.mxu0 %v2869
    %v2950 = vpop.f32.mrf.mxu0
    %v2951 = vadd.f32 %v2910, %v2950
    %2952 = vdwg.mxu0
    %v2954 = vsel %vm75, %v2735, 0
    %v2956 = vsel %vm75, %v2737, 0
    %v2958 = vsel %vm75, %v2739, 0
    %v2960 = vsel %vm75, %v2741, 0
    %v2962 = vsel %vm75, %v2743, 0
    %v2964 = vsel %vm75, %v2745, 0
    %v2966 = vsel %vm75, %v2747, 0
    %v2968 = vsel %vm75, %v2749, 0
    %2970 = vmatpush.msra.mxu0 %v2765
    %2971 = vmatpush.msra.mxu0 %v2764
    %2972 = vmatpush.msra.mxu0 %v2763
    %2973 = vmatpush.msra.mxu0 %v2762
    %2974 = vmatpush.msra.mxu0 %v2761
    %2975 = vmatpush.msra.mxu0 %v2760
    %2976 = vmatpush.msra.mxu0 %v2759
    %2977 = vmatpush.msra.mxu0 %v2758
    %2978 = vmatpush.msra.mxu0 %v2757
    %2979 = vmatpush.msra.mxu0 %v2756
    %2980 = vmatpush.msra.mxu0 %v2755
    %2981 = vmatpush.msra.mxu0 %v2754
    %2982 = vmatpush.msra.mxu0 %v2753
    %2983 = vmatpush.msra.mxu0 %v2752
    %2984 = vmatpush.msra.mxu0 %v2751
    %2985 = vmatpush.msra.mxu0 %v2750
    %2986 = vmatmul.f32.gmra.mxu0 %v2734
    %v2987 = vpop.f32.mrf.mxu0
    %v2988 = vadd.f32 %v2930, %v2987
    %2989 = vmatmul.f32.gmra.mxu0 %v2736
    %v2990 = vpop.f32.mrf.mxu0
    %v2991 = vadd.f32 %v2933, %v2990
    %2992 = vmatmul.f32.gmra.mxu0 %v2738
    %v2993 = vpop.f32.mrf.mxu0
    %v2994 = vadd.f32 %v2936, %v2993
    %2995 = vmatmul.f32.gmra.mxu0 %v2740
    %v2996 = vpop.f32.mrf.mxu0
    %v2997 = vadd.f32 %v2939, %v2996
    %2998 = vmatmul.f32.gmra.mxu0 %v2742
    %v2999 = vpop.f32.mrf.mxu0
    %v3000 = vadd.f32 %v2942, %v2999
    %3001 = vmatmul.f32.gmra.mxu0 %v2744
    %v3002 = vpop.f32.mrf.mxu0
    %v3003 = vadd.f32 %v2945, %v3002
    %3004 = vmatmul.f32.gmra.mxu0 %v2746
    %v3005 = vpop.f32.mrf.mxu0
    %v3006 = vadd.f32 %v2948, %v3005
    %3007 = vmatmul.f32.gmra.mxu0 %v2748
    %v3008 = vpop.f32.mrf.mxu0
    %v3009 = vadd.f32 %v2951, %v3008
    %3010 = vdwg.mxu0
    %3011 = vmatpush.msra.mxu0 0.0
    %3012 = vmatpush.msra.mxu0 0.0
    %3013 = vmatpush.msra.mxu0 0.0
    %3014 = vmatpush.msra.mxu0 0.0
    %3015 = vmatpush.msra.mxu0 0.0
    %3016 = vmatpush.msra.mxu0 0.0
    %3017 = vmatpush.msra.mxu0 0.0
    %3018 = vmatpush.msra.mxu0 0.0
    %3019 = vmatpush.msra.mxu0 0.0
    %3020 = vmatpush.msra.mxu0 0.0
    %3021 = vmatpush.msra.mxu0 0.0
    %3022 = vmatpush.msra.mxu0 0.0
    %3023 = vmatpush.msra.mxu0 %v2769
    %3024 = vmatpush.msra.mxu0 %v2768
    %3025 = vmatpush.msra.mxu0 %v2767
    %3026 = vmatpush.msra.mxu0 %v2766
    %3027 = vmatmul.f32.gmra.mxu0 %v2954
    %v3028 = vpop.f32.mrf.mxu0
    %v3029 = vadd.f32 %v2988, %v3028
    %3030 = vmatmul.f32.gmra.mxu0 %v2956
    %v3031 = vpop.f32.mrf.mxu0
    %v3032 = vadd.f32 %v2991, %v3031
    %3033 = vmatmul.f32.gmra.mxu0 %v2958
    %v3034 = vpop.f32.mrf.mxu0
    %v3035 = vadd.f32 %v2994, %v3034
    %3036 = vmatmul.f32.gmra.mxu0 %v2960
    %v3037 = vpop.f32.mrf.mxu0
    %v3038 = vadd.f32 %v2997, %v3037
    %3039 = vmatmul.f32.gmra.mxu0 %v2962
    %v3040 = vpop.f32.mrf.mxu0
    %v3041 = vadd.f32 %v3000, %v3040
    %3042 = vmatmul.f32.gmra.mxu0 %v2964
    %v3043 = vpop.f32.mrf.mxu0
    %v3044 = vadd.f32 %v3003, %v3043
    %3045 = vmatmul.f32.gmra.mxu0 %v2966
    %v3046 = vpop.f32.mrf.mxu0
    %v3047 = vadd.f32 %v3006, %v3046
    %3048 = vmatmul.f32.gmra.mxu0 %v2968
    %v3049 = vpop.f32.mrf.mxu0
    %v3050 = vadd.f32 %v3009, %v3049
    %3051 = vdwg.mxu0
    %v3052 = vld [vmem:[#allocation6 + $0x90] sm:$0xff]
    %v3053 = vld [vmem:[#allocation6 + $0x98] sm:$0xff]
    %v3054 = vld [vmem:[%s1 + $0xc50] sm:$0xff]
    %v3055 = vld [vmem:[%s1 + $0xc60] sm:$0xff]
    %v3056 = vld [vmem:[%s1 + $0xc70] sm:$0xff]
    %v3057 = vld [vmem:[%s1 + $0xc80] sm:$0xff]
    %v3058 = vld [vmem:[%s1 + $0xc90] sm:$0xff]
    %v3059 = vld [vmem:[%s1 + $0xca0] sm:$0xff]
    %v3060 = vld [vmem:[%s1 + $0xcb0] sm:$0xff]
    %v3061 = vld [vmem:[%s1 + $0xcc0] sm:$0xff]
    %v3062 = vld [vmem:[%s1 + $0xcd0] sm:$0xff]
    %v3063 = vld [vmem:[%s1 + $0xce0] sm:$0xff]
    %v3064 = vld [vmem:[%s1 + $0xcf0] sm:$0xff]
    %v3065 = vld [vmem:[%s1 + $0xd00] sm:$0xff]
    %v3066 = vld [vmem:[%s1 + $0xd10] sm:$0xff]
    %v3067 = vld [vmem:[%s1 + $0xd20] sm:$0xff]
    %v3068 = vld [vmem:[%s1 + $0xd30] sm:$0xff]
    %v3069 = vld [vmem:[%s1 + $0xd40] sm:$0xff]
    %v3070 = vld [vmem:[%s1 + $0xd50] sm:$0xff]
    %v3071 = vld [vmem:[%s1 + $0xd60] sm:$0xff]
    %v3072 = vld [vmem:[%s1 + $0xd70] sm:$0xff]
    %v3073 = vld [vmem:[%s1 + $0xd80] sm:$0xff]
    %v3075 = vsel %vm75, %v3053, 0
    %3077 = vmatpush.msra.mxu0 %v3069
    %3078 = vmatpush.msra.mxu0 %v3068
    %3079 = vmatpush.msra.mxu0 %v3067
    %3080 = vmatpush.msra.mxu0 %v3066
    %3081 = vmatpush.msra.mxu0 %v3065
    %3082 = vmatpush.msra.mxu0 %v3064
    %3083 = vmatpush.msra.mxu0 %v3063
    %3084 = vmatpush.msra.mxu0 %v3062
    %3085 = vmatpush.msra.mxu0 %v3061
    %3086 = vmatpush.msra.mxu0 %v3060
    %3087 = vmatpush.msra.mxu0 %v3059
    %3088 = vmatpush.msra.mxu0 %v3058
    %3089 = vmatpush.msra.mxu0 %v3057
    %3090 = vmatpush.msra.mxu0 %v3056
    %3091 = vmatpush.msra.mxu0 %v3055
    %3092 = vmatpush.msra.mxu0 %v3054
    %3093 = vmatmul.f32.gmra.mxu0 %v2736
    %v3094 = vpop.f32.mrf.mxu0
    %v3095 = vadd.f32 0.0, %v3094
    %3096 = vmatmul.f32.gmra.mxu0 %v2738
    %v3097 = vpop.f32.mrf.mxu0
    %v3098 = vadd.f32 0.0, %v3097
    %3099 = vmatmul.f32.gmra.mxu0 %v2740
    %v3100 = vpop.f32.mrf.mxu0
    %v3101 = vadd.f32 0.0, %v3100
    %3102 = vmatmul.f32.gmra.mxu0 %v2742
    %v3103 = vpop.f32.mrf.mxu0
    %v3104 = vadd.f32 0.0, %v3103
    %3105 = vmatmul.f32.gmra.mxu0 %v2744
    %v3106 = vpop.f32.mrf.mxu0
    %v3107 = vadd.f32 0.0, %v3106
    %3108 = vmatmul.f32.gmra.mxu0 %v2746
    %v3109 = vpop.f32.mrf.mxu0
    %v3110 = vadd.f32 0.0, %v3109
    %3111 = vmatmul.f32.gmra.mxu0 %v2748
    %v3112 = vpop.f32.mrf.mxu0
    %v3113 = vadd.f32 0.0, %v3112
    %3114 = vmatmul.f32.gmra.mxu0 %v3052
    %v3115 = vpop.f32.mrf.mxu0
    %v3116 = vadd.f32 0.0, %v3115
    %3117 = vdwg.mxu0
    %3118 = vmatpush.msra.mxu0 0.0
    %3119 = vmatpush.msra.mxu0 0.0
    %3120 = vmatpush.msra.mxu0 0.0
    %3121 = vmatpush.msra.mxu0 0.0
    %3122 = vmatpush.msra.mxu0 0.0
    %3123 = vmatpush.msra.mxu0 0.0
    %3124 = vmatpush.msra.mxu0 0.0
    %3125 = vmatpush.msra.mxu0 0.0
    %3126 = vmatpush.msra.mxu0 0.0
    %3127 = vmatpush.msra.mxu0 0.0
    %3128 = vmatpush.msra.mxu0 0.0
    %3129 = vmatpush.msra.mxu0 0.0
    %3130 = vmatpush.msra.mxu0 %v3073
    %3131 = vmatpush.msra.mxu0 %v3072
    %3132 = vmatpush.msra.mxu0 %v3071
    %3133 = vmatpush.msra.mxu0 %v3070
    %3134 = vmatmul.f32.gmra.mxu0 %v2956
    %v3135 = vpop.f32.mrf.mxu0
    %v3136 = vadd.f32 %v3095, %v3135
    %3137 = vmatmul.f32.gmra.mxu0 %v2958
    %v3138 = vpop.f32.mrf.mxu0
    %v3139 = vadd.f32 %v3098, %v3138
    %3140 = vmatmul.f32.gmra.mxu0 %v2960
    %v3141 = vpop.f32.mrf.mxu0
    %v3142 = vadd.f32 %v3101, %v3141
    %3143 = vmatmul.f32.gmra.mxu0 %v2962
    %v3144 = vpop.f32.mrf.mxu0
    %v3145 = vadd.f32 %v3104, %v3144
    %3146 = vmatmul.f32.gmra.mxu0 %v2964
    %v3147 = vpop.f32.mrf.mxu0
    %v3148 = vadd.f32 %v3107, %v3147
    %3149 = vmatmul.f32.gmra.mxu0 %v2966
    %v3150 = vpop.f32.mrf.mxu0
    %v3151 = vadd.f32 %v3110, %v3150
    %3152 = vmatmul.f32.gmra.mxu0 %v2968
    %v3153 = vpop.f32.mrf.mxu0
    %v3154 = vadd.f32 %v3113, %v3153
    %3155 = vmatmul.f32.gmra.mxu0 %v3075
    %v3156 = vpop.f32.mrf.mxu0
    %v3157 = vadd.f32 %v3116, %v3156
    %3158 = vdwg.mxu0
    %v3159 = vadd.f32 %v3029, %v3136
    %v3160 = vadd.f32 %v3032, %v3139
    %v3161 = vadd.f32 %v3035, %v3142
    %v3162 = vadd.f32 %v3038, %v3145
    %v3163 = vadd.f32 %v3041, %v3148
    %v3164 = vadd.f32 %v3044, %v3151
    %v3165 = vadd.f32 %v3047, %v3154
    %v3166 = vadd.f32 %v3050, %v3157
    %v3167 = vld [vmem:[%s1 + $0xd90] sm:$0x7]
    %v3168 = vperm.slane %v3167, 0
    %v3169 = vadd.f32 %v3159, %v3168
    %v3170 = vadd.f32 %v3160, %v3168
    %v3171 = vadd.f32 %v3161, %v3168
    %v3172 = vadd.f32 %v3162, %v3168
    %v3173 = vadd.f32 %v3163, %v3168
    %v3174 = vadd.f32 %v3164, %v3168
    %v3175 = vadd.f32 %v3165, %v3168
    %v3176 = vadd.f32 %v3166, %v3168
    %v3177 = vmax.f32 %v3169, 0.0
    %v3178 = vmax.f32 %v3170, 0.0
    %v3179 = vmax.f32 %v3171, 0.0
    %v3180 = vmax.f32 %v3172, 0.0
    %v3181 = vmax.f32 %v3173, 0.0
    %v3182 = vmax.f32 %v3174, 0.0
    %v3183 = vmax.f32 %v3175, 0.0
    %v3184 = vmax.f32 %v3176, 0.0
    %v3185 = vperm.slane %v3167, 1
    %v3186 = vmul.f32 %v3177, %v3185
    %v3187 = vmul.f32 %v3178, %v3185
    %v3188 = vmul.f32 %v3179, %v3185
    %v3189 = vmul.f32 %v3180, %v3185
    %v3190 = vmul.f32 %v3181, %v3185
    %v3191 = vmul.f32 %v3182, %v3185
    %v3192 = vmul.f32 %v3183, %v3185
    %v3193 = vmul.f32 %v3184, %v3185
    %v3194 = vperm.slane %v3167, 2
    %v3195 = vadd.f32 %v3186, %v3194
    %v3196 = vadd.f32 %v3187, %v3194
    %v3197 = vadd.f32 %v3188, %v3194
    %v3198 = vadd.f32 %v3189, %v3194
    %v3199 = vadd.f32 %v3190, %v3194
    %v3200 = vadd.f32 %v3191, %v3194
    %v3201 = vadd.f32 %v3192, %v3194
    %v3202 = vadd.f32 %v3193, %v3194
    %3203 = vst.msk [vmem:[#allocation7 + $0x8] sm:$0xff] %vm95, %v3195
    %3204 = vst.msk [vmem:[#allocation7 + $0x10] sm:$0xff] %vm95, %v3196
    %3205 = vst.msk [vmem:[#allocation7 + $0x18] sm:$0xff] %vm95, %v3197
    %3206 = vst.msk [vmem:[#allocation7 + $0x20] sm:$0xff] %vm95, %v3198
    %3207 = vst.msk [vmem:[#allocation7 + $0x28] sm:$0xff] %vm95, %v3199
    %3208 = vst.msk [vmem:[#allocation7 + $0x30] sm:$0xff] %vm95, %v3200
    %3209 = vst.msk [vmem:[#allocation7 + $0x38] sm:$0xff] %vm95, %v3201
    %3210 = vst.msk [vmem:[#allocation7 + $0x40] sm:$0xff] %vm95, %v3202
    %v3211 = vld [vmem:[#allocation7 + $0x8] sm:$0xff]
    %v3212 = vld [vmem:[#allocation7 + $0x10] sm:$0xff]
    %v3213 = vld [vmem:[#allocation7 + $0x18] sm:$0xff]
    %v3214 = vld [vmem:[#allocation7 + $0x20] sm:$0xff]
    %v3215 = vld [vmem:[#allocation7 + $0x28] sm:$0xff]
    %v3216 = vld [vmem:[#allocation7 + $0x30] sm:$0xff]
    %v3217 = vld [vmem:[#allocation7 + $0x38] sm:$0xff]
    %v3218 = vld [vmem:[#allocation7 + $0x40] sm:$0xff]
    %v3219 = vld [vmem:[%s1 + $0xda0] sm:$0xff]
    %v3220 = vld [vmem:[%s1 + $0xdb0] sm:$0xff]
    %v3221 = vld [vmem:[%s1 + $0xdc0] sm:$0xff]
    %v3222 = vld [vmem:[%s1 + $0xdd0] sm:$0xff]
    %v3223 = vld [vmem:[%s1 + $0xde0] sm:$0xff]
    %v3224 = vld [vmem:[%s1 + $0xdf0] sm:$0xff]
    %v3225 = vld [vmem:[%s1 + $0xe00] sm:$0xff]
    %v3226 = vld [vmem:[%s1 + $0xe10] sm:$0xff]
    %v3227 = vld [vmem:[%s1 + $0xe20] sm:$0xff]
    %v3228 = vld [vmem:[%s1 + $0xe30] sm:$0xff]
    %v3229 = vld [vmem:[%s1 + $0xe40] sm:$0xff]
    %v3230 = vld [vmem:[%s1 + $0xe50] sm:$0xff]
    %v3231 = vld [vmem:[%s1 + $0xe60] sm:$0x7]
    %v3232 = vperm.slane %v3231, 0
    %v3234 = vsel %vm95, %v3211, 0
    %v3237 = vsel %vm95, %v3212, 0
    %v3240 = vsel %vm95, %v3213, 0
    %v3243 = vsel %vm95, %v3214, 0
    %v3246 = vsel %vm95, %v3215, 0
    %v3249 = vsel %vm95, %v3216, 0
    %v3252 = vsel %vm95, %v3217, 0
    %v3255 = vsel %vm95, %v3218, 0
    %3257 = vmatpush.msra.mxu0 0.0
    %3258 = vmatpush.msra.mxu0 0.0
    %3259 = vmatpush.msra.mxu0 0.0
    %3260 = vmatpush.msra.mxu0 0.0
    %3261 = vmatpush.msra.mxu0 %v3230
    %3262 = vmatpush.msra.mxu0 %v3229
    %3263 = vmatpush.msra.mxu0 %v3228
    %3264 = vmatpush.msra.mxu0 %v3227
    %3265 = vmatpush.msra.mxu0 %v3226
    %3266 = vmatpush.msra.mxu0 %v3225
    %3267 = vmatpush.msra.mxu0 %v3224
    %3268 = vmatpush.msra.mxu0 %v3223
    %3269 = vmatpush.msra.mxu0 %v3222
    %3270 = vmatpush.msra.mxu0 %v3221
    %3271 = vmatpush.msra.mxu0 %v3220
    %3272 = vmatpush.msra.mxu0 %v3219
    %3273 = vmatmul.f32.gmra.mxu0 %v3234
    %v3274 = vpop.f32.mrf.mxu0
    %v3275 = vadd.f32 %v3232, %v3274
    %3276 = vmatmul.f32.gmra.mxu0 %v3237
    %v3277 = vpop.f32.mrf.mxu0
    %v3278 = vadd.f32 %v3232, %v3277
    %3279 = vmatmul.f32.gmra.mxu0 %v3240
    %v3280 = vpop.f32.mrf.mxu0
    %v3281 = vadd.f32 %v3232, %v3280
    %3282 = vmatmul.f32.gmra.mxu0 %v3243
    %v3283 = vpop.f32.mrf.mxu0
    %v3284 = vadd.f32 %v3232, %v3283
    %3285 = vmatmul.f32.gmra.mxu0 %v3246
    %v3286 = vpop.f32.mrf.mxu0
    %v3287 = vadd.f32 %v3232, %v3286
    %3288 = vmatmul.f32.gmra.mxu0 %v3249
    %v3289 = vpop.f32.mrf.mxu0
    %v3290 = vadd.f32 %v3232, %v3289
    %3291 = vmatmul.f32.gmra.mxu0 %v3252
    %v3292 = vpop.f32.mrf.mxu0
    %v3293 = vadd.f32 %v3232, %v3292
    %3294 = vmatmul.f32.gmra.mxu0 %v3255
    %v3295 = vpop.f32.mrf.mxu0
    %v3296 = vadd.f32 %v3232, %v3295
    %3297 = vdwg.mxu0
    %v3298 = vmax.f32 %v3275, 0.0
    %v3299 = vmax.f32 %v3278, 0.0
    %v3300 = vmax.f32 %v3281, 0.0
    %v3301 = vmax.f32 %v3284, 0.0
    %v3302 = vmax.f32 %v3287, 0.0
    %v3303 = vmax.f32 %v3290, 0.0
    %v3304 = vmax.f32 %v3293, 0.0
    %v3305 = vmax.f32 %v3296, 0.0
    %v3306 = vperm.slane %v3231, 1
    %v3307 = vmul.f32 %v3298, %v3306
    %v3308 = vmul.f32 %v3299, %v3306
    %v3309 = vmul.f32 %v3300, %v3306
    %v3310 = vmul.f32 %v3301, %v3306
    %v3311 = vmul.f32 %v3302, %v3306
    %v3312 = vmul.f32 %v3303, %v3306
    %v3313 = vmul.f32 %v3304, %v3306
    %v3314 = vmul.f32 %v3305, %v3306
    %v3315 = vperm.slane %v3231, 2
    %v3316 = vadd.f32 %v3307, %v3315
    %v3317 = vadd.f32 %v3308, %v3315
    %v3318 = vadd.f32 %v3309, %v3315
    %v3319 = vadd.f32 %v3310, %v3315
    %v3320 = vadd.f32 %v3311, %v3315
    %v3321 = vadd.f32 %v3312, %v3315
    %v3322 = vadd.f32 %v3313, %v3315
    %v3323 = vadd.f32 %v3314, %v3315
    %3324 = vst.msk [vmem:[#allocation8 + $0x8] sm:$0xff] %vm95, %v3316
    %3325 = vst.msk [vmem:[#allocation8 + $0x10] sm:$0xff] %vm95, %v3317
    %3326 = vst.msk [vmem:[#allocation8 + $0x18] sm:$0xff] %vm95, %v3318
    %3327 = vst.msk [vmem:[#allocation8 + $0x20] sm:$0xff] %vm95, %v3319
    %3328 = vst.msk [vmem:[#allocation8 + $0x28] sm:$0xff] %vm95, %v3320
    %3329 = vst.msk [vmem:[#allocation8 + $0x30] sm:$0xff] %vm95, %v3321
    %3330 = vst.msk [vmem:[#allocation8 + $0x38] sm:$0xff] %vm95, %v3322
    %3331 = vst.msk [vmem:[#allocation8 + $0x40] sm:$0xff] %vm95, %v3323
    %v3332 = vld [vmem:[%s1 + $0x10b0] ss:$0 sm:$0xff]
    %v3333 = vadd.f32 %v3332, 0.0
    %s3334 = scalar_lea.vmem [#allocation8], 9
    %v3335 = vld [vmem:[%s3334] ss:$32 sm:$0x1]
    %v3336 = vld [vmem:[%s3334] ss:$32 sm:$0x2]
    %v3337 = vor.u32 %v3335, %v3336
    %v3338 = vld [vmem:[%s1 + $0xe70] sm:$0xff]
    %v3339 = vld [vmem:[%s1 + $0xe80] sm:$0xff]
    %v3340 = vld [vmem:[%s1 + $0xe90] sm:$0xff]
    %v3341 = vld [vmem:[%s1 + $0xea0] sm:$0xff]
    %v3342 = vld [vmem:[%s1 + $0xeb0] sm:$0xff]
    %v3343 = vld [vmem:[%s1 + $0xec0] sm:$0xff]
    %v3344 = vld [vmem:[%s1 + $0xed0] sm:$0xff]
    %v3345 = vld [vmem:[%s1 + $0xee0] sm:$0xff]
    %v3346 = vld [vmem:[%s1 + $0xef0] sm:$0xff]
    %v3347 = vld [vmem:[%s1 + $0xf00] sm:$0xff]
    %v3348 = vld [vmem:[%s1 + $0xf10] sm:$0xff]
    %v3349 = vld [vmem:[%s1 + $0xf20] sm:$0xff]
    %v3351 = vsel %vm95, %v3337, 0
    %3353 = vmatpush.msra.mxu0 0.0
    %3354 = vmatpush.msra.mxu0 0.0
    %3355 = vmatpush.msra.mxu0 0.0
    %3356 = vmatpush.msra.mxu0 0.0
    %3357 = vmatpush.msra.mxu0 %v3349
    %3358 = vmatpush.msra.mxu0 %v3348
    %3359 = vmatpush.msra.mxu0 %v3347
    %3360 = vmatpush.msra.mxu0 %v3346
    %3361 = vmatpush.msra.mxu0 %v3345
    %3362 = vmatpush.msra.mxu0 %v3344
    %3363 = vmatpush.msra.mxu0 %v3343
    %3364 = vmatpush.msra.mxu0 %v3342
    %3365 = vmatpush.msra.mxu0 %v3341
    %3366 = vmatpush.msra.mxu0 %v3340
    %3367 = vmatpush.msra.mxu0 %v3339
    %3368 = vmatpush.msra.mxu0 %v3338
    %3369 = vmatmul.f32.gmra.mxu0 %v3351
    %v3370 = vpop.f32.mrf.mxu0
    %v3371 = vadd.f32 0.0, %v3370
    %3372 = vdwg.mxu0
    %v3373 = vadd.f32 %v3333, %v3371
    %s3374 = scalar_lea.vmem [#allocation8], 13
    %v3375 = vld [vmem:[%s3374] ss:$32 sm:$0x1]
    %v3376 = vld [vmem:[%s3374] ss:$32 sm:$0x2]
    %v3377 = vor.u32 %v3375, %v3376
    %v3378 = vld [vmem:[%s1 + $0xf30] sm:$0xff]
    %v3379 = vld [vmem:[%s1 + $0xf40] sm:$0xff]
    %v3380 = vld [vmem:[%s1 + $0xf50] sm:$0xff]
    %v3381 = vld [vmem:[%s1 + $0xf60] sm:$0xff]
    %v3382 = vld [vmem:[%s1 + $0xf70] sm:$0xff]
    %v3383 = vld [vmem:[%s1 + $0xf80] sm:$0xff]
    %v3384 = vld [vmem:[%s1 + $0xf90] sm:$0xff]
    %v3385 = vld [vmem:[%s1 + $0xfa0] sm:$0xff]
    %v3386 = vld [vmem:[%s1 + $0xfb0] sm:$0xff]
    %v3387 = vld [vmem:[%s1 + $0xfc0] sm:$0xff]
    %v3388 = vld [vmem:[%s1 + $0xfd0] sm:$0xff]
    %v3389 = vld [vmem:[%s1 + $0xfe0] sm:$0xff]
    %v3391 = vsel %vm95, %v3377, 0
    %3393 = vmatpush.msra.mxu0 0.0
    %3394 = vmatpush.msra.mxu0 0.0
    %3395 = vmatpush.msra.mxu0 0.0
    %3396 = vmatpush.msra.mxu0 0.0
    %3397 = vmatpush.msra.mxu0 %v3389
    %3398 = vmatpush.msra.mxu0 %v3388
    %3399 = vmatpush.msra.mxu0 %v3387
    %3400 = vmatpush.msra.mxu0 %v3386
    %3401 = vmatpush.msra.mxu0 %v3385
    %3402 = vmatpush.msra.mxu0 %v3384
    %3403 = vmatpush.msra.mxu0 %v3383
    %3404 = vmatpush.msra.mxu0 %v3382
    %3405 = vmatpush.msra.mxu0 %v3381
    %3406 = vmatpush.msra.mxu0 %v3380
    %3407 = vmatpush.msra.mxu0 %v3379
    %3408 = vmatpush.msra.mxu0 %v3378
    %3409 = vmatmul.f32.gmra.mxu0 %v3391
    %v3410 = vpop.f32.mrf.mxu0
    %v3411 = vadd.f32 0.0, %v3410
    %3412 = vdwg.mxu0
    %v3413 = vadd.f32 %v3373, %v3411
    %s3414 = scalar_lea.vmem [#allocation8], 17
    %v3415 = vld [vmem:[%s3414] ss:$32 sm:$0x1]
    %v3416 = vld [vmem:[%s3414] ss:$32 sm:$0x2]
    %v3417 = vor.u32 %v3415, %v3416
    %v3418 = vld [vmem:[%s1 + $0xff0] sm:$0xff]
    %v3419 = vld [vmem:[%s1 + $0x1000] sm:$0xff]
    %v3420 = vld [vmem:[%s1 + $0x1010] sm:$0xff]
    %v3421 = vld [vmem:[%s1 + $0x1020] sm:$0xff]
    %v3422 = vld [vmem:[%s1 + $0x1030] sm:$0xff]
    %v3423 = vld [vmem:[%s1 + $0x1040] sm:$0xff]
    %v3424 = vld [vmem:[%s1 + $0x1050] sm:$0xff]
    %v3425 = vld [vmem:[%s1 + $0x1060] sm:$0xff]
    %v3426 = vld [vmem:[%s1 + $0x1070] sm:$0xff]
    %v3427 = vld [vmem:[%s1 + $0x1080] sm:$0xff]
    %v3428 = vld [vmem:[%s1 + $0x1090] sm:$0xff]
    %v3429 = vld [vmem:[%s1 + $0x10a0] sm:$0xff]
    %v3431 = vsel %vm95, %v3417, 0
    %3433 = vmatpush.msra.mxu0 0.0
    %3434 = vmatpush.msra.mxu0 0.0
    %3435 = vmatpush.msra.mxu0 0.0
    %3436 = vmatpush.msra.mxu0 0.0
    %3437 = vmatpush.msra.mxu0 %v3429
    %3438 = vmatpush.msra.mxu0 %v3428
    %3439 = vmatpush.msra.mxu0 %v3427
    %3440 = vmatpush.msra.mxu0 %v3426
    %3441 = vmatpush.msra.mxu0 %v3425
    %3442 = vmatpush.msra.mxu0 %v3424
    %3443 = vmatpush.msra.mxu0 %v3423
    %3444 = vmatpush.msra.mxu0 %v3422
    %3445 = vmatpush.msra.mxu0 %v3421
    %3446 = vmatpush.msra.mxu0 %v3420
    %3447 = vmatpush.msra.mxu0 %v3419
    %3448 = vmatpush.msra.mxu0 %v3418
    %3449 = vmatmul.f32.gmra.mxu0 %v3431
    %v3450 = vpop.f32.mrf.mxu0
    %v3451 = vadd.f32 0.0, %v3450
    %3452 = vdwg.mxu0
    %v3453 = vadd.f32 %v3413, %v3451
    %vm3454 = vcmask 74752
    %v3455 = vsel %vm3454, %v3453, -inf
    %3456 = vmax.xlane.f32.xlu0 %v3455
    %v3457 = vpop.xlane.xlu0 %3456
    %v3458 = vsub.f32 %v3453, %v3457
    %v3459 = vmul.f32 %v3458, 1.442695
    %v3460 = vpow.pop %v3459
    %v3461 = vsel %vm3454, %v3460, 0.0
    %3462 = vadd.xlane.f32.xlu0 %v3461
    %v3463 = vpop.xlane.xlu0 %3462
    %v3464 = vlog2.pop %v3463
    %v3465 = vmul.f32 %v3464, 0.6931472
    %v3466 = vsub.f32 %v3458, %v3465
    %3467 = vst.msk [vmem:[#allocation9] sm:$0x3] %vm3454, %v3466
    // Predicated region
    $region10: #{net_forward.1} parent=1 // pred_check
      _
    $region11: #{net_forward.1} parent=1 // pred_check_branch
      %3469 = sbr.rel (0) target = $region13
    $region12: #{net_forward.1} parent=1 // pred_region
      %3471 = vsyncadd [#allocation10], 0
      %s3473 = sshll.u32 [#allocation9], 4
      %s3474 = int_to_ptr.vmem [resolvable:$true] %s3473
      %s3475 = sshll.u32 %s2, 4
      %s3476 = int_to_ptr.hbm [resolvable:$true] %s3475
      %3478 = dma.vmem_to_hbm [thread:$0]  %s3474, 32, %s3476, [#allocation10]
    $region13: #{net_forward.1} parent=1 // pred_fallthru
      _
    // Predicated region
    $region14: #{net_forward.1} parent=1 // pred_check
      _
    $region15: #{net_forward.1} parent=1 // pred_check_branch
      %3480 = sbr.rel (0) target = $region17
    $region16: #{net_forward.1} parent=1 // pred_region
      %3482 = dma.done [#allocation10], 32
    $region17: #{net_forward.1} parent=1 // pred_fallthru
      _
    %3483 = vsyncpa [#allocation10], 1

</llo_original>
